<compile_context>
chip_gen: v7x
topology: tpu7x:2x2x1
jax: 0.10.0
libtpu: 0.0.40
codegen_flags: <defaults>
</compile_context>

<pallas_src>
import functools

import jax
import jax.numpy as jnp
from jax import lax
from jax.experimental import pallas as pl
from jax.experimental.pallas import tpu as pltpu


def _round_up(x, m):
    return (x + m - 1) // m * m


def _choose_strip_rows(oh, ow, n):
    """Output rows per strip: multiple of 8 dividing OH (aligned tiles / free
    grouped reductions), modest pixel count, and >=2 total grid tiles so both
    v7x TensorCores get work."""
    cands = [d for d in range(8, oh + 1, 8) if oh % d == 0 and d * ow <= 2048]
    pref = [d for d in cands if n * (oh // d) >= 2]
    if pref:
        return max(pref)
    if cands:
        return max(cands)
    return oh   # whole image per strip (block dim == full extent is always legal)


# ----------------------------- Pallas kernels ------------------------------ #

def conv_stats_kernel(x_ref, w_ref, y_ref, psum_ref, psq_ref,
                      *, tro, ow, n_kh, n_kw, stride):
    """One output strip (tro rows x ow cols) of the conv for one image:
    KH*KW shifted bf16 GEMMs over the resident padded image, f32 accumulation,
    per-strip channel sum / sum-of-squares from the f32 accumulator, then a
    channel-major bf16 y tile (the transpose is hidden under the MXU work)."""
    r = pl.program_id(1)
    rows_in = (tro - 1) * stride + n_kh                 # input rows incl. halo
    row0 = pl.multiple_of(r * (tro * stride), tro * stride)
    strip = x_ref[0, pl.ds(row0, rows_in), :, :]        # (rows_in, Wp, C) bf16
    c_in = strip.shape[-1]
    ocp = w_ref.shape[-1]
    pix = tro * ow

    acc = jnp.zeros((pix, ocp), jnp.float32)
    for kh in range(n_kh):
        for kw in range(n_kw):
            # TODO(synk): stride > 1 relies on strided value slices; for large
            # strided convs a dedicated gather path would be cheaper.
            win = strip[kh:kh + (tro - 1) * stride + 1:stride,
                        kw:kw + (ow - 1) * stride + 1:stride, :]
            acc = acc + jnp.dot(win.reshape(pix, c_in),
                                w_ref[kh * n_kw + kw],
                                preferred_element_type=jnp.float32)

    # Partial channel stats from the f32 accumulator (before the bf16 downcast).
    # TODO(synk): E[y^2]-mean^2 is cancellation-prone for very large M; use a
    # shifted / Welford-style accumulation for production shapes.
    if pix % 8 == 0:
        g = acc.reshape(pix // 8, 8, ocp)               # sublane-aligned split
        psum_ref[0, 0] = jnp.sum(g, axis=0)             # (8, OCp)
        psq_ref[0, 0] = jnp.sum(g * g, axis=0)
    else:
        zeros7 = jnp.zeros((7, ocp), jnp.float32)
        psum_ref[0, 0] = jnp.concatenate(
            [jnp.sum(acc, axis=0, keepdims=True), zeros7], axis=0)
        psq_ref[0, 0] = jnp.concatenate(
            [jnp.sum(acc * acc, axis=0, keepdims=True), zeros7], axis=0)

    # Channel-major bf16 intermediate (halves the HBM round-trip of the BN pass).
    y_ref[0, 0] = jnp.transpose(acc).astype(y_ref.dtype)


def bn_lrelu_nchw_kernel(y_ref, scale_ref, shift_ref, o_ref, *, oc, tro, ow):
    """Fused affine batch-norm apply + LeakyReLU(0.1) on the bf16 y tile, with
    the NCHW writeback folded into the stores (no trailing XLA transpose)."""
    z = y_ref[0, 0].astype(jnp.float32)                 # (OCp, tro*ow)
    z = z * scale_ref[...] + shift_ref[...]             # (OCp, 1) broadcast
    z = jnp.where(z > 0, z, 0.1 * z)
    for lr in range(tro):                               # static unroll
        o_ref[0, :, lr, :] = z[:oc, lr * ow:(lr + 1) * ow]


# ------------------------------ Glue (JAX) --------------------------------- #

@functools.partial(jax.jit, static_argnames=("stride", "padding", "eps"))
def cnn_block_forward(x, conv_w, gamma, beta, *, stride, padding, eps=1e-5):
    """Equivalent of CNNBlock.forward(x): x NCHW, conv_w (OC, C, KH, KW)."""
    N, C, H, W = x.shape
    OC, _, KH, KW = conv_w.shape
    OH = (H + 2 * padding - KH) // stride + 1
    OW = (W + 2 * padding - KW) // stride + 1
    OCp = _round_up(OC, 128)                            # lane-dense output channels
    M = N * OH * OW

    TRo = _choose_strip_rows(OH, OW, N)                 # output rows per strip
    n_strips = OH // TRo
    PIX = TRo * OW

    # NCHW -> NHWC, spatial zero-pad and bf16 cast fused into one XLA pass.
    x_pad = jnp.pad(jnp.transpose(x, (0, 2, 3, 1)).astype(jnp.bfloat16),
                    ((0, 0), (padding, padding), (padding, padding), (0, 0)))
    Hp, Wp = x_pad.shape[1], x_pad.shape[2]

    # Weights as (KH*KW, C, OCp) bf16 taps, zero-padded along OC (lane dim).
    w_taps = jnp.pad(
        jnp.transpose(conv_w, (2, 3, 1, 0)).reshape(KH * KW, C, OC),
        ((0, 0), (0, 0), (0, OCp - OC))).astype(jnp.bfloat16)

    conv_kernel = functools.partial(conv_stats_kernel, tro=TRo, ow=OW,
                                    n_kh=KH, n_kw=KW, stride=stride)
    # TODO(synk): for very large images (whole padded image tile > VMEM budget),
    # switch the input to row-strip halo DMA instead of whole-image residency.
    y, psum, psq = pl.pallas_call(
        conv_kernel,
        out_shape=(
            jax.ShapeDtypeStruct((N, n_strips, OCp, PIX), jnp.bfloat16),
            jax.ShapeDtypeStruct((N, n_strips, 8, OCp), jnp.float32),
            jax.ShapeDtypeStruct((N, n_strips, 8, OCp), jnp.float32),
        ),
        grid=(N, n_strips),
        in_specs=[
            # whole padded image: re-used across strips (constant block index in r)
            pl.BlockSpec((1, Hp, Wp, C), lambda n, r: (n, 0, 0, 0)),
            # resident weights: constant block index for the whole grid
            pl.BlockSpec((KH * KW, C, OCp), lambda n, r: (0, 0, 0)),
        ],
        out_specs=(
            pl.BlockSpec((1, 1, OCp, PIX), lambda n, r: (n, r, 0, 0)),
            pl.BlockSpec((1, 1, 8, OCp), lambda n, r: (n, r, 0, 0)),
            pl.BlockSpec((1, 1, 8, OCp), lambda n, r: (n, r, 0, 0)),
        ),
        compiler_params=pltpu.CompilerParams(
            dimension_semantics=("parallel", "parallel")),
    )(x_pad, w_taps)

    # BatchNorm2d (training mode): biased batch statistics over (N, H, W) per
    # channel, from the f32 partial sums. Tiny reduction -> XLA.
    s = jnp.sum(psum, axis=(0, 1, 2))
    q = jnp.sum(psq, axis=(0, 1, 2))
    mean = s / M
    var = jnp.maximum(q / M - mean * mean, 0.0)
    gamma_p = jnp.pad(gamma.astype(jnp.float32), (0, OCp - OC))
    beta_p = jnp.pad(beta.astype(jnp.float32), (0, OCp - OC))
    inv = gamma_p * lax.rsqrt(var + eps)
    scale = inv.reshape(OCp, 1)
    shift = (beta_p - mean * inv).reshape(OCp, 1)

    bn_kernel = functools.partial(bn_lrelu_nchw_kernel, oc=OC, tro=TRo, ow=OW)
    out = pl.pallas_call(
        bn_kernel,
        out_shape=jax.ShapeDtypeStruct((N, OC, OH, OW), jnp.float32),
        grid=(N, n_strips),
        in_specs=[
            pl.BlockSpec((1, 1, OCp, PIX), lambda n, r: (n, r, 0, 0)),
            pl.BlockSpec((OCp, 1), lambda n, r: (0, 0)),
            pl.BlockSpec((OCp, 1), lambda n, r: (0, 0)),
        ],
        out_specs=pl.BlockSpec((1, OC, TRo, OW), lambda n, r: (n, 0, r, 0)),
        compiler_params=pltpu.CompilerParams(
            dimension_semantics=("parallel", "parallel")),
    )(y, scale, shift)
    return out


# ------------------------------ Reference ---------------------------------- #

def reference_forward(x, conv_w, gamma, beta, *, stride, padding, eps=1e-5):
    y = lax.conv_general_dilated(
        x.astype(jnp.float32), conv_w.astype(jnp.float32),
        window_strides=(stride, stride),
        padding=((padding, padding), (padding, padding)),
        dimension_numbers=("NCHW", "OIHW", "NCHW"),
    )
    mean = jnp.mean(y, axis=(0, 2, 3), keepdims=True)
    var = jnp.mean((y - mean) ** 2, axis=(0, 2, 3), keepdims=True)
    z = (y - mean) / jnp.sqrt(var + eps)
    z = z * gamma.reshape(1, -1, 1, 1) + beta.reshape(1, -1, 1, 1)
    return jnp.where(z > 0, z, 0.1 * z)


# --------------------------------- Main ------------------------------------ #

if __name__ == "__main__":
    key = jax.random.PRNGKey(0)
    k_x, k_w = jax.random.split(key)

    N, C_in, H, W = 2, 4, 16, 16
    C_out, KS, stride, padding = 8, 3, 1, 1

    x = jax.random.normal(k_x, (N, C_in, H, W), dtype=jnp.float32)
    conv_w = jax.random.normal(k_w, (C_out, C_in, KS, KS), dtype=jnp.float32) * 0.1
    gamma = jnp.ones((C_out,), dtype=jnp.float32)   # BatchNorm2d default weight
    beta = jnp.zeros((C_out,), dtype=jnp.float32)   # BatchNorm2d default bias

    out = cnn_block_forward(x, conv_w, gamma, beta, stride=stride, padding=padding)
    out = jax.block_until_ready(out)

    # Reference on the same bf16-rounded operands (kernel feeds the MXU in bf16
    # per the perf review); stats/BN/accumulation stay f32 in both paths.
    x_q = x.astype(jnp.bfloat16).astype(jnp.float32)
    w_q = conv_w.astype(jnp.bfloat16).astype(jnp.float32)
    ref = reference_forward(x_q, w_q, gamma, beta, stride=stride, padding=padding)

    assert out.shape == ref.shape == (N, C_out, H, W)
    err = float(jnp.max(jnp.abs(out - ref)))
    assert jnp.allclose(out, ref, rtol=3e-2, atol=3e-2), err

    print("KERNEL_OK")
</pallas_src>

<mosaic_0001>
module attributes {stable_mosaic.version = 11 : i64} {
  func.func @conv_stats_kernel(%arg0: i32, %arg1: i32, %arg2: memref<1x18x18x4xbf16, #tpu.memory_space<vmem>>, %arg3: memref<9x4x128xbf16, #tpu.memory_space<vmem>>, %arg4: memref<1x1x128x256xbf16, #tpu.memory_space<vmem>>, %arg5: memref<1x1x8x128xf32, #tpu.memory_space<vmem>>, %arg6: memref<1x1x8x128xf32, #tpu.memory_space<vmem>>) attributes {dimension_semantics = [#tpu.dimension_semantics<parallel>, #tpu.dimension_semantics<parallel>], iteration_bounds = array<i64: 2, 1>, scalar_prefetch = 0 : i64, scratch_operands = 0 : i64, tpu.core_type = #tpu.core_type<tc>, window_params = [{transform_indices = @transform_0, window_bounds = array<i64: 1, 18, 18, 4>}, {pipeline_mode = #tpu.pipeline_mode<synchronous>, transform_indices = @transform_1, window_bounds = array<i64: 9, 4, 128>}, {transform_indices = @transform_2, window_bounds = array<i64: 1, 1, 128, 256>}, {transform_indices = @transform_3, window_bounds = array<i64: 1, 1, 8, 128>}, {transform_indices = @transform_4, window_bounds = array<i64: 1, 1, 8, 128>}]} {
    %c16_i32 = arith.constant 16 : i32
    %0 = arith.muli %arg1, %c16_i32 : i32
    %1 = tpu.assume_multiple %0, 16 : i32
    %c0 = arith.constant 0 : index
    %2 = arith.index_cast %1 : i32 to index
    %c0_0 = arith.constant 0 : index
    %c0_1 = arith.constant 0 : index
    %3 = vector.load %arg2[%c0, %2, %c0_0, %c0_1] : memref<1x18x18x4xbf16, #tpu.memory_space<vmem>>, vector<1x18x18x4xbf16>
    %4 = vector.shape_cast %3 : vector<1x18x18x4xbf16> to vector<18x18x4xbf16>
    %cst = arith.constant 0.000000e+00 : f32
    %5 = vector.broadcast %cst : f32 to vector<256x128xf32>
    %6 = vector.extract_strided_slice %4 {offsets = [0, 0, 0], sizes = [16, 16, 4], strides = [1, 1, 1]} : vector<18x18x4xbf16> to vector<16x16x4xbf16>
    %7 = vector.shape_cast %6 : vector<16x16x4xbf16> to vector<256x4xbf16>
    %c0_2 = arith.constant 0 : index
    %c0_3 = arith.constant 0 : index
    %c0_4 = arith.constant 0 : index
    %8 = vector.load %arg3[%c0_2, %c0_3, %c0_4] : memref<9x4x128xbf16, #tpu.memory_space<vmem>>, vector<1x4x128xbf16>
    %9 = vector.shape_cast %8 : vector<1x4x128xbf16> to vector<4x128xbf16>
    %cst_5 = arith.constant dense<0.000000e+00> : vector<256x128xf32>
    %10 = tpu.matmul %7, %9, %cst_5 {dimension_numbers = #tpu.dot_dimension_numbers<[1], [0], [0], [1], [0, 0, 1, 1], [], []>} : vector<256x4xbf16>, vector<4x128xbf16>, vector<256x128xf32> -> vector<256x128xf32>
    %11 = arith.addf %5, %10 : vector<256x128xf32>
    %12 = vector.extract_strided_slice %4 {offsets = [0, 1, 0], sizes = [16, 16, 4], strides = [1, 1, 1]} : vector<18x18x4xbf16> to vector<16x16x4xbf16>
    %13 = vector.shape_cast %12 : vector<16x16x4xbf16> to vector<256x4xbf16>
    %c1 = arith.constant 1 : index
    %c0_6 = arith.constant 0 : index
    %c0_7 = arith.constant 0 : index
    %14 = vector.load %arg3[%c1, %c0_6, %c0_7] : memref<9x4x128xbf16, #tpu.memory_space<vmem>>, vector<1x4x128xbf16>
    %15 = vector.shape_cast %14 : vector<1x4x128xbf16> to vector<4x128xbf16>
    %cst_8 = arith.constant dense<0.000000e+00> : vector<256x128xf32>
    %16 = tpu.matmul %13, %15, %cst_8 {dimension_numbers = #tpu.dot_dimension_numbers<[1], [0], [0], [1], [0, 0, 1, 1], [], []>} : vector<256x4xbf16>, vector<4x128xbf16>, vector<256x128xf32> -> vector<256x128xf32>
    %17 = arith.addf %11, %16 : vector<256x128xf32>
    %18 = vector.extract_strided_slice %4 {offsets = [0, 2, 0], sizes = [16, 16, 4], strides = [1, 1, 1]} : vector<18x18x4xbf16> to vector<16x16x4xbf16>
    %19 = vector.shape_cast %18 : vector<16x16x4xbf16> to vector<256x4xbf16>
    %c2 = arith.constant 2 : index
    %c0_9 = arith.constant 0 : index
    %c0_10 = arith.constant 0 : index
    %20 = vector.load %arg3[%c2, %c0_9, %c0_10] : memref<9x4x128xbf16, #tpu.memory_space<vmem>>, vector<1x4x128xbf16>
    %21 = vector.shape_cast %20 : vector<1x4x128xbf16> to vector<4x128xbf16>
    %cst_11 = arith.constant dense<0.000000e+00> : vector<256x128xf32>
    %22 = tpu.matmul %19, %21, %cst_11 {dimension_numbers = #tpu.dot_dimension_numbers<[1], [0], [0], [1], [0, 0, 1, 1], [], []>} : vector<256x4xbf16>, vector<4x128xbf16>, vector<256x128xf32> -> vector<256x128xf32>
    %23 = arith.addf %17, %22 : vector<256x128xf32>
    %24 = vector.extract_strided_slice %4 {offsets = [1, 0, 0], sizes = [16, 16, 4], strides = [1, 1, 1]} : vector<18x18x4xbf16> to vector<16x16x4xbf16>
    %25 = vector.shape_cast %24 : vector<16x16x4xbf16> to vector<256x4xbf16>
    %c3 = arith.constant 3 : index
    %c0_12 = arith.constant 0 : index
    %c0_13 = arith.constant 0 : index
    %26 = vector.load %arg3[%c3, %c0_12, %c0_13] : memref<9x4x128xbf16, #tpu.memory_space<vmem>>, vector<1x4x128xbf16>
    %27 = vector.shape_cast %26 : vector<1x4x128xbf16> to vector<4x128xbf16>
    %cst_14 = arith.constant dense<0.000000e+00> : vector<256x128xf32>
    %28 = tpu.matmul %25, %27, %cst_14 {dimension_numbers = #tpu.dot_dimension_numbers<[1], [0], [0], [1], [0, 0, 1, 1], [], []>} : vector<256x4xbf16>, vector<4x128xbf16>, vector<256x128xf32> -> vector<256x128xf32>
    %29 = arith.addf %23, %28 : vector<256x128xf32>
    %30 = vector.extract_strided_slice %4 {offsets = [1, 1, 0], sizes = [16, 16, 4], strides = [1, 1, 1]} : vector<18x18x4xbf16> to vector<16x16x4xbf16>
    %31 = vector.shape_cast %30 : vector<16x16x4xbf16> to vector<256x4xbf16>
    %c4 = arith.constant 4 : index
    %c0_15 = arith.constant 0 : index
    %c0_16 = arith.constant 0 : index
    %32 = vector.load %arg3[%c4, %c0_15, %c0_16] : memref<9x4x128xbf16, #tpu.memory_space<vmem>>, vector<1x4x128xbf16>
    %33 = vector.shape_cast %32 : vector<1x4x128xbf16> to vector<4x128xbf16>
    %cst_17 = arith.constant dense<0.000000e+00> : vector<256x128xf32>
    %34 = tpu.matmul %31, %33, %cst_17 {dimension_numbers = #tpu.dot_dimension_numbers<[1], [0], [0], [1], [0, 0, 1, 1], [], []>} : vector<256x4xbf16>, vector<4x128xbf16>, vector<256x128xf32> -> vector<256x128xf32>
    %35 = arith.addf %29, %34 : vector<256x128xf32>
    %36 = vector.extract_strided_slice %4 {offsets = [1, 2, 0], sizes = [16, 16, 4], strides = [1, 1, 1]} : vector<18x18x4xbf16> to vector<16x16x4xbf16>
    %37 = vector.shape_cast %36 : vector<16x16x4xbf16> to vector<256x4xbf16>
    %c5 = arith.constant 5 : index
    %c0_18 = arith.constant 0 : index
    %c0_19 = arith.constant 0 : index
    %38 = vector.load %arg3[%c5, %c0_18, %c0_19] : memref<9x4x128xbf16, #tpu.memory_space<vmem>>, vector<1x4x128xbf16>
    %39 = vector.shape_cast %38 : vector<1x4x128xbf16> to vector<4x128xbf16>
    %cst_20 = arith.constant dense<0.000000e+00> : vector<256x128xf32>
    %40 = tpu.matmul %37, %39, %cst_20 {dimension_numbers = #tpu.dot_dimension_numbers<[1], [0], [0], [1], [0, 0, 1, 1], [], []>} : vector<256x4xbf16>, vector<4x128xbf16>, vector<256x128xf32> -> vector<256x128xf32>
    %41 = arith.addf %35, %40 : vector<256x128xf32>
    %42 = vector.extract_strided_slice %4 {offsets = [2, 0, 0], sizes = [16, 16, 4], strides = [1, 1, 1]} : vector<18x18x4xbf16> to vector<16x16x4xbf16>
    %43 = vector.shape_cast %42 : vector<16x16x4xbf16> to vector<256x4xbf16>
    %c6 = arith.constant 6 : index
    %c0_21 = arith.constant 0 : index
    %c0_22 = arith.constant 0 : index
    %44 = vector.load %arg3[%c6, %c0_21, %c0_22] : memref<9x4x128xbf16, #tpu.memory_space<vmem>>, vector<1x4x128xbf16>
    %45 = vector.shape_cast %44 : vector<1x4x128xbf16> to vector<4x128xbf16>
    %cst_23 = arith.constant dense<0.000000e+00> : vector<256x128xf32>
    %46 = tpu.matmul %43, %45, %cst_23 {dimension_numbers = #tpu.dot_dimension_numbers<[1], [0], [0], [1], [0, 0, 1, 1], [], []>} : vector<256x4xbf16>, vector<4x128xbf16>, vector<256x128xf32> -> vector<256x128xf32>
    %47 = arith.addf %41, %46 : vector<256x128xf32>
    %48 = vector.extract_strided_slice %4 {offsets = [2, 1, 0], sizes = [16, 16, 4], strides = [1, 1, 1]} : vector<18x18x4xbf16> to vector<16x16x4xbf16>
    %49 = vector.shape_cast %48 : vector<16x16x4xbf16> to vector<256x4xbf16>
    %c7 = arith.constant 7 : index
    %c0_24 = arith.constant 0 : index
    %c0_25 = arith.constant 0 : index
    %50 = vector.load %arg3[%c7, %c0_24, %c0_25] : memref<9x4x128xbf16, #tpu.memory_space<vmem>>, vector<1x4x128xbf16>
    %51 = vector.shape_cast %50 : vector<1x4x128xbf16> to vector<4x128xbf16>
    %cst_26 = arith.constant dense<0.000000e+00> : vector<256x128xf32>
    %52 = tpu.matmul %49, %51, %cst_26 {dimension_numbers = #tpu.dot_dimension_numbers<[1], [0], [0], [1], [0, 0, 1, 1], [], []>} : vector<256x4xbf16>, vector<4x128xbf16>, vector<256x128xf32> -> vector<256x128xf32>
    %53 = arith.addf %47, %52 : vector<256x128xf32>
    %54 = vector.extract_strided_slice %4 {offsets = [2, 2, 0], sizes = [16, 16, 4], strides = [1, 1, 1]} : vector<18x18x4xbf16> to vector<16x16x4xbf16>
    %55 = vector.shape_cast %54 : vector<16x16x4xbf16> to vector<256x4xbf16>
    %c8 = arith.constant 8 : index
    %c0_27 = arith.constant 0 : index
    %c0_28 = arith.constant 0 : index
    %56 = vector.load %arg3[%c8, %c0_27, %c0_28] : memref<9x4x128xbf16, #tpu.memory_space<vmem>>, vector<1x4x128xbf16>
    %57 = vector.shape_cast %56 : vector<1x4x128xbf16> to vector<4x128xbf16>
    %cst_29 = arith.constant dense<0.000000e+00> : vector<256x128xf32>
    %58 = tpu.matmul %55, %57, %cst_29 {dimension_numbers = #tpu.dot_dimension_numbers<[1], [0], [0], [1], [0, 0, 1, 1], [], []>} : vector<256x4xbf16>, vector<4x128xbf16>, vector<256x128xf32> -> vector<256x128xf32>
    %59 = arith.addf %53, %58 : vector<256x128xf32>
    %60 = vector.shape_cast %59 : vector<256x128xf32> to vector<32x8x128xf32>
    %cst_30 = arith.constant dense<0.000000e+00> : vector<8x128xf32>
    %61 = vector.multi_reduction <add>, %60, %cst_30 [0] : vector<32x8x128xf32> to vector<8x128xf32>
    %c0_31 = arith.constant 0 : index
    %c0_32 = arith.constant 0 : index
    %c0_33 = arith.constant 0 : index
    %c0_34 = arith.constant 0 : index
    %62 = vector.load %arg5[%c0_31, %c0_32, %c0_33, %c0_34] : memref<1x1x8x128xf32, #tpu.memory_space<vmem>>, vector<1x1x8x128xf32>
    %63 = vector.shape_cast %62 : vector<1x1x8x128xf32> to vector<8x128xf32>
    %64 = vector.shape_cast %61 : vector<8x128xf32> to vector<1x1x8x128xf32>
    tpu.vector_store %arg5[%c0_31, %c0_32, %c0_33, %c0_34], %64 {strides = array<i32>} : memref<1x1x8x128xf32, #tpu.memory_space<vmem>>, vector<1x1x8x128xf32>,
    %65 = arith.mulf %60, %60 : vector<32x8x128xf32>
    %cst_35 = arith.constant dense<0.000000e+00> : vector<8x128xf32>
    %66 = vector.multi_reduction <add>, %65, %cst_35 [0] : vector<32x8x128xf32> to vector<8x128xf32>
    %c0_36 = arith.constant 0 : index
    %c0_37 = arith.constant 0 : index
    %c0_38 = arith.constant 0 : index
    %c0_39 = arith.constant 0 : index
    %67 = vector.load %arg6[%c0_36, %c0_37, %c0_38, %c0_39] : memref<1x1x8x128xf32, #tpu.memory_space<vmem>>, vector<1x1x8x128xf32>
    %68 = vector.shape_cast %67 : vector<1x1x8x128xf32> to vector<8x128xf32>
    %69 = vector.shape_cast %66 : vector<8x128xf32> to vector<1x1x8x128xf32>
    tpu.vector_store %arg6[%c0_36, %c0_37, %c0_38, %c0_39], %69 {strides = array<i32>} : memref<1x1x8x128xf32, #tpu.memory_space<vmem>>, vector<1x1x8x128xf32>,
    %70 = tpu.transpose %59, [1, 0] : vector<256x128xf32> -> vector<128x256xf32>
    %71 = arith.truncf %70 : vector<128x256xf32> to vector<128x256xbf16>
    %c0_40 = arith.constant 0 : index
    %c0_41 = arith.constant 0 : index
    %c0_42 = arith.constant 0 : index
    %c0_43 = arith.constant 0 : index
    %72 = vector.load %arg4[%c0_40, %c0_41, %c0_42, %c0_43] : memref<1x1x128x256xbf16, #tpu.memory_space<vmem>>, vector<1x1x128x256xbf16>
    %73 = vector.shape_cast %72 : vector<1x1x128x256xbf16> to vector<128x256xbf16>
    %74 = vector.shape_cast %71 : vector<128x256xbf16> to vector<1x1x128x256xbf16>
    tpu.vector_store %arg4[%c0_40, %c0_41, %c0_42, %c0_43], %74 {strides = array<i32>} : memref<1x1x128x256xbf16, #tpu.memory_space<vmem>>, vector<1x1x128x256xbf16>,
    return
  }
  func.func @transform_0(%arg0: i32, %arg1: i32) -> (i32, i32, i32, i32) {
    %c0_i32 = arith.constant 0 : i32
    %c0_i32_0 = arith.constant 0 : i32
    %c0_i32_1 = arith.constant 0 : i32
    %c0_i32_2 = arith.constant 0 : i32
    return %arg0, %c0_i32, %c0_i32_0, %c0_i32_1 : i32, i32, i32, i32
  }
  func.func @transform_1(%arg0: i32, %arg1: i32) -> (i32, i32, i32) {
    %c0_i32 = arith.constant 0 : i32
    %c0_i32_0 = arith.constant 0 : i32
    %c0_i32_1 = arith.constant 0 : i32
    %c0_i32_2 = arith.constant 0 : i32
    return %c0_i32, %c0_i32_0, %c0_i32_1 : i32, i32, i32
  }
  func.func @transform_2(%arg0: i32, %arg1: i32) -> (i32, i32, i32, i32) {
    %c0_i32 = arith.constant 0 : i32
    %c0_i32_0 = arith.constant 0 : i32
    %c0_i32_1 = arith.constant 0 : i32
    return %arg0, %arg1, %c0_i32, %c0_i32_0 : i32, i32, i32, i32
  }
  func.func @transform_3(%arg0: i32, %arg1: i32) -> (i32, i32, i32, i32) {
    %c0_i32 = arith.constant 0 : i32
    %c0_i32_0 = arith.constant 0 : i32
    %c0_i32_1 = arith.constant 0 : i32
    return %arg0, %arg1, %c0_i32, %c0_i32_0 : i32, i32, i32, i32
  }
  func.func @transform_4(%arg0: i32, %arg1: i32) -> (i32, i32, i32, i32) {
    %c0_i32 = arith.constant 0 : i32
    %c0_i32_0 = arith.constant 0 : i32
    %c0_i32_1 = arith.constant 0 : i32
    return %arg0, %arg1, %c0_i32, %c0_i32_0 : i32, i32, i32, i32
  }
}

module attributes {stable_mosaic.version = 11 : i64} {
  func.func @bn_lrelu_nchw_kernel(%arg0: i32, %arg1: i32, %arg2: memref<1x1x128x256xbf16, #tpu.memory_space<vmem>>, %arg3: memref<128x1xf32, #tpu.memory_space<vmem>>, %arg4: memref<128x1xf32, #tpu.memory_space<vmem>>, %arg5: memref<1x8x16x16xf32, #tpu.memory_space<vmem>>) attributes {dimension_semantics = [#tpu.dimension_semantics<parallel>, #tpu.dimension_semantics<parallel>], iteration_bounds = array<i64: 2, 1>, scalar_prefetch = 0 : i64, scratch_operands = 0 : i64, tpu.core_type = #tpu.core_type<tc>, window_params = [{transform_indices = @transform_0, window_bounds = array<i64: 1, 1, 128, 256>}, {pipeline_mode = #tpu.pipeline_mode<synchronous>, transform_indices = @transform_1, window_bounds = array<i64: 128, 1>}, {pipeline_mode = #tpu.pipeline_mode<synchronous>, transform_indices = @transform_2, window_bounds = array<i64: 128, 1>}, {transform_indices = @transform_3, window_bounds = array<i64: 1, 8, 16, 16>}]} {
    %c0 = arith.constant 0 : index
    %c0_0 = arith.constant 0 : index
    %c0_1 = arith.constant 0 : index
    %c0_2 = arith.constant 0 : index
    %0 = vector.load %arg2[%c0, %c0_0, %c0_1, %c0_2] : memref<1x1x128x256xbf16, #tpu.memory_space<vmem>>, vector<1x1x128x256xbf16>
    %1 = vector.shape_cast %0 : vector<1x1x128x256xbf16> to vector<128x256xbf16>
    %2 = arith.extf %1 : vector<128x256xbf16> to vector<128x256xf32>
    %c0_3 = arith.constant 0 : index
    %c0_4 = arith.constant 0 : index
    %3 = vector.load %arg3[%c0_3, %c0_4] : memref<128x1xf32, #tpu.memory_space<vmem>>, vector<128x1xf32>
    %4 = vector.broadcast %3 : vector<128x1xf32> to vector<128x256xf32>
    %5 = arith.mulf %2, %4 : vector<128x256xf32>
    %c0_5 = arith.constant 0 : index
    %c0_6 = arith.constant 0 : index
    %6 = vector.load %arg4[%c0_5, %c0_6] : memref<128x1xf32, #tpu.memory_space<vmem>>, vector<128x1xf32>
    %7 = vector.broadcast %6 : vector<128x1xf32> to vector<128x256xf32>
    %8 = arith.addf %5, %7 : vector<128x256xf32>
    %cst = arith.constant 0.000000e+00 : f32
    %9 = vector.broadcast %cst : f32 to vector<128x256xf32>
    %10 = arith.cmpf ogt, %8, %9 : vector<128x256xf32>
    %cst_7 = arith.constant 1.000000e-01 : f32
    %11 = vector.broadcast %cst_7 : f32 to vector<128x256xf32>
    %12 = arith.mulf %11, %8 : vector<128x256xf32>
    %13 = arith.select %10, %8, %12 : vector<128x256xi1>, vector<128x256xf32>
    %14 = vector.extract_strided_slice %13 {offsets = [0, 0], sizes = [8, 16], strides = [1, 1]} : vector<128x256xf32> to vector<8x16xf32>
    %c0_8 = arith.constant 0 : index
    %c0_9 = arith.constant 0 : index
    %c0_10 = arith.constant 0 : index
    %c0_11 = arith.constant 0 : index
    %15 = vector.load %arg5[%c0_8, %c0_9, %c0_10, %c0_11] : memref<1x8x16x16xf32, #tpu.memory_space<vmem>>, vector<1x8x1x16xf32>
    %16 = vector.shape_cast %15 : vector<1x8x1x16xf32> to vector<8x16xf32>
    %17 = vector.shape_cast %14 : vector<8x16xf32> to vector<1x8x1x16xf32>
    tpu.vector_store %arg5[%c0_8, %c0_9, %c0_10, %c0_11], %17 {strides = array<i32>} : memref<1x8x16x16xf32, #tpu.memory_space<vmem>>, vector<1x8x1x16xf32>,
    %18 = vector.extract_strided_slice %13 {offsets = [0, 16], sizes = [8, 16], strides = [1, 1]} : vector<128x256xf32> to vector<8x16xf32>
    %c0_12 = arith.constant 0 : index
    %c0_13 = arith.constant 0 : index
    %c1 = arith.constant 1 : index
    %c0_14 = arith.constant 0 : index
    %19 = vector.load %arg5[%c0_12, %c0_13, %c1, %c0_14] : memref<1x8x16x16xf32, #tpu.memory_space<vmem>>, vector<1x8x1x16xf32>
    %20 = vector.shape_cast %19 : vector<1x8x1x16xf32> to vector<8x16xf32>
    %21 = vector.shape_cast %18 : vector<8x16xf32> to vector<1x8x1x16xf32>
    tpu.vector_store %arg5[%c0_12, %c0_13, %c1, %c0_14], %21 {strides = array<i32>} : memref<1x8x16x16xf32, #tpu.memory_space<vmem>>, vector<1x8x1x16xf32>,
    %22 = vector.extract_strided_slice %13 {offsets = [0, 32], sizes = [8, 16], strides = [1, 1]} : vector<128x256xf32> to vector<8x16xf32>
    %c0_15 = arith.constant 0 : index
    %c0_16 = arith.constant 0 : index
    %c2 = arith.constant 2 : index
    %c0_17 = arith.constant 0 : index
    %23 = vector.load %arg5[%c0_15, %c0_16, %c2, %c0_17] : memref<1x8x16x16xf32, #tpu.memory_space<vmem>>, vector<1x8x1x16xf32>
    %24 = vector.shape_cast %23 : vector<1x8x1x16xf32> to vector<8x16xf32>
    %25 = vector.shape_cast %22 : vector<8x16xf32> to vector<1x8x1x16xf32>
    tpu.vector_store %arg5[%c0_15, %c0_16, %c2, %c0_17], %25 {strides = array<i32>} : memref<1x8x16x16xf32, #tpu.memory_space<vmem>>, vector<1x8x1x16xf32>,
    %26 = vector.extract_strided_slice %13 {offsets = [0, 48], sizes = [8, 16], strides = [1, 1]} : vector<128x256xf32> to vector<8x16xf32>
    %c0_18 = arith.constant 0 : index
    %c0_19 = arith.constant 0 : index
    %c3 = arith.constant 3 : index
    %c0_20 = arith.constant 0 : index
    %27 = vector.load %arg5[%c0_18, %c0_19, %c3, %c0_20] : memref<1x8x16x16xf32, #tpu.memory_space<vmem>>, vector<1x8x1x16xf32>
    %28 = vector.shape_cast %27 : vector<1x8x1x16xf32> to vector<8x16xf32>
    %29 = vector.shape_cast %26 : vector<8x16xf32> to vector<1x8x1x16xf32>
    tpu.vector_store %arg5[%c0_18, %c0_19, %c3, %c0_20], %29 {strides = array<i32>} : memref<1x8x16x16xf32, #tpu.memory_space<vmem>>, vector<1x8x1x16xf32>,
    %30 = vector.extract_strided_slice %13 {offsets = [0, 64], sizes = [8, 16], strides = [1, 1]} : vector<128x256xf32> to vector<8x16xf32>
    %c0_21 = arith.constant 0 : index
    %c0_22 = arith.constant 0 : index
    %c4 = arith.constant 4 : index
    %c0_23 = arith.constant 0 : index
    %31 = vector.load %arg5[%c0_21, %c0_22, %c4, %c0_23] : memref<1x8x16x16xf32, #tpu.memory_space<vmem>>, vector<1x8x1x16xf32>
    %32 = vector.shape_cast %31 : vector<1x8x1x16xf32> to vector<8x16xf32>
    %33 = vector.shape_cast %30 : vector<8x16xf32> to vector<1x8x1x16xf32>
    tpu.vector_store %arg5[%c0_21, %c0_22, %c4, %c0_23], %33 {strides = array<i32>} : memref<1x8x16x16xf32, #tpu.memory_space<vmem>>, vector<1x8x1x16xf32>,
    %34 = vector.extract_strided_slice %13 {offsets = [0, 80], sizes = [8, 16], strides = [1, 1]} : vector<128x256xf32> to vector<8x16xf32>
    %c0_24 = arith.constant 0 : index
    %c0_25 = arith.constant 0 : index
    %c5 = arith.constant 5 : index
    %c0_26 = arith.constant 0 : index
    %35 = vector.load %arg5[%c0_24, %c0_25, %c5, %c0_26] : memref<1x8x16x16xf32, #tpu.memory_space<vmem>>, vector<1x8x1x16xf32>
    %36 = vector.shape_cast %35 : vector<1x8x1x16xf32> to vector<8x16xf32>
    %37 = vector.shape_cast %34 : vector<8x16xf32> to vector<1x8x1x16xf32>
    tpu.vector_store %arg5[%c0_24, %c0_25, %c5, %c0_26], %37 {strides = array<i32>} : memref<1x8x16x16xf32, #tpu.memory_space<vmem>>, vector<1x8x1x16xf32>,
    %38 = vector.extract_strided_slice %13 {offsets = [0, 96], sizes = [8, 16], strides = [1, 1]} : vector<128x256xf32> to vector<8x16xf32>
    %c0_27 = arith.constant 0 : index
    %c0_28 = arith.constant 0 : index
    %c6 = arith.constant 6 : index
    %c0_29 = arith.constant 0 : index
    %39 = vector.load %arg5[%c0_27, %c0_28, %c6, %c0_29] : memref<1x8x16x16xf32, #tpu.memory_space<vmem>>, vector<1x8x1x16xf32>
    %40 = vector.shape_cast %39 : vector<1x8x1x16xf32> to vector<8x16xf32>
    %41 = vector.shape_cast %38 : vector<8x16xf32> to vector<1x8x1x16xf32>
    tpu.vector_store %arg5[%c0_27, %c0_28, %c6, %c0_29], %41 {strides = array<i32>} : memref<1x8x16x16xf32, #tpu.memory_space<vmem>>, vector<1x8x1x16xf32>,
    %42 = vector.extract_strided_slice %13 {offsets = [0, 112], sizes = [8, 16], strides = [1, 1]} : vector<128x256xf32> to vector<8x16xf32>
    %c0_30 = arith.constant 0 : index
    %c0_31 = arith.constant 0 : index
    %c7 = arith.constant 7 : index
    %c0_32 = arith.constant 0 : index
    %43 = vector.load %arg5[%c0_30, %c0_31, %c7, %c0_32] : memref<1x8x16x16xf32, #tpu.memory_space<vmem>>, vector<1x8x1x16xf32>
    %44 = vector.shape_cast %43 : vector<1x8x1x16xf32> to vector<8x16xf32>
    %45 = vector.shape_cast %42 : vector<8x16xf32> to vector<1x8x1x16xf32>
    tpu.vector_store %arg5[%c0_30, %c0_31, %c7, %c0_32], %45 {strides = array<i32>} : memref<1x8x16x16xf32, #tpu.memory_space<vmem>>, vector<1x8x1x16xf32>,
    %46 = vector.extract_strided_slice %13 {offsets = [0, 128], sizes = [8, 16], strides = [1, 1]} : vector<128x256xf32> to vector<8x16xf32>
    %c0_33 = arith.constant 0 : index
    %c0_34 = arith.constant 0 : index
    %c8 = arith.constant 8 : index
    %c0_35 = arith.constant 0 : index
    %47 = vector.load %arg5[%c0_33, %c0_34, %c8, %c0_35] : memref<1x8x16x16xf32, #tpu.memory_space<vmem>>, vector<1x8x1x16xf32>
    %48 = vector.shape_cast %47 : vector<1x8x1x16xf32> to vector<8x16xf32>
    %49 = vector.shape_cast %46 : vector<8x16xf32> to vector<1x8x1x16xf32>
    tpu.vector_store %arg5[%c0_33, %c0_34, %c8, %c0_35], %49 {strides = array<i32>} : memref<1x8x16x16xf32, #tpu.memory_space<vmem>>, vector<1x8x1x16xf32>,
    %50 = vector.extract_strided_slice %13 {offsets = [0, 144], sizes = [8, 16], strides = [1, 1]} : vector<128x256xf32> to vector<8x16xf32>
    %c0_36 = arith.constant 0 : index
    %c0_37 = arith.constant 0 : index
    %c9 = arith.constant 9 : index
    %c0_38 = arith.constant 0 : index
    %51 = vector.load %arg5[%c0_36, %c0_37, %c9, %c0_38] : memref<1x8x16x16xf32, #tpu.memory_space<vmem>>, vector<1x8x1x16xf32>
    %52 = vector.shape_cast %51 : vector<1x8x1x16xf32> to vector<8x16xf32>
    %53 = vector.shape_cast %50 : vector<8x16xf32> to vector<1x8x1x16xf32>
    tpu.vector_store %arg5[%c0_36, %c0_37, %c9, %c0_38], %53 {strides = array<i32>} : memref<1x8x16x16xf32, #tpu.memory_space<vmem>>, vector<1x8x1x16xf32>,
    %54 = vector.extract_strided_slice %13 {offsets = [0, 160], sizes = [8, 16], strides = [1, 1]} : vector<128x256xf32> to vector<8x16xf32>
    %c0_39 = arith.constant 0 : index
    %c0_40 = arith.constant 0 : index
    %c10 = arith.constant 10 : index
    %c0_41 = arith.constant 0 : index
    %55 = vector.load %arg5[%c0_39, %c0_40, %c10, %c0_41] : memref<1x8x16x16xf32, #tpu.memory_space<vmem>>, vector<1x8x1x16xf32>
    %56 = vector.shape_cast %55 : vector<1x8x1x16xf32> to vector<8x16xf32>
    %57 = vector.shape_cast %54 : vector<8x16xf32> to vector<1x8x1x16xf32>
    tpu.vector_store %arg5[%c0_39, %c0_40, %c10, %c0_41], %57 {strides = array<i32>} : memref<1x8x16x16xf32, #tpu.memory_space<vmem>>, vector<1x8x1x16xf32>,
    %58 = vector.extract_strided_slice %13 {offsets = [0, 176], sizes = [8, 16], strides = [1, 1]} : vector<128x256xf32> to vector<8x16xf32>
    %c0_42 = arith.constant 0 : index
    %c0_43 = arith.constant 0 : index
    %c11 = arith.constant 11 : index
    %c0_44 = arith.constant 0 : index
    %59 = vector.load %arg5[%c0_42, %c0_43, %c11, %c0_44] : memref<1x8x16x16xf32, #tpu.memory_space<vmem>>, vector<1x8x1x16xf32>
    %60 = vector.shape_cast %59 : vector<1x8x1x16xf32> to vector<8x16xf32>
    %61 = vector.shape_cast %58 : vector<8x16xf32> to vector<1x8x1x16xf32>
    tpu.vector_store %arg5[%c0_42, %c0_43, %c11, %c0_44], %61 {strides = array<i32>} : memref<1x8x16x16xf32, #tpu.memory_space<vmem>>, vector<1x8x1x16xf32>,
    %62 = vector.extract_strided_slice %13 {offsets = [0, 192], sizes = [8, 16], strides = [1, 1]} : vector<128x256xf32> to vector<8x16xf32>
    %c0_45 = arith.constant 0 : index
    %c0_46 = arith.constant 0 : index
    %c12 = arith.constant 12 : index
    %c0_47 = arith.constant 0 : index
    %63 = vector.load %arg5[%c0_45, %c0_46, %c12, %c0_47] : memref<1x8x16x16xf32, #tpu.memory_space<vmem>>, vector<1x8x1x16xf32>
    %64 = vector.shape_cast %63 : vector<1x8x1x16xf32> to vector<8x16xf32>
    %65 = vector.shape_cast %62 : vector<8x16xf32> to vector<1x8x1x16xf32>
    tpu.vector_store %arg5[%c0_45, %c0_46, %c12, %c0_47], %65 {strides = array<i32>} : memref<1x8x16x16xf32, #tpu.memory_space<vmem>>, vector<1x8x1x16xf32>,
    %66 = vector.extract_strided_slice %13 {offsets = [0, 208], sizes = [8, 16], strides = [1, 1]} : vector<128x256xf32> to vector<8x16xf32>
    %c0_48 = arith.constant 0 : index
    %c0_49 = arith.constant 0 : index
    %c13 = arith.constant 13 : index
    %c0_50 = arith.constant 0 : index
    %67 = vector.load %arg5[%c0_48, %c0_49, %c13, %c0_50] : memref<1x8x16x16xf32, #tpu.memory_space<vmem>>, vector<1x8x1x16xf32>
    %68 = vector.shape_cast %67 : vector<1x8x1x16xf32> to vector<8x16xf32>
    %69 = vector.shape_cast %66 : vector<8x16xf32> to vector<1x8x1x16xf32>
    tpu.vector_store %arg5[%c0_48, %c0_49, %c13, %c0_50], %69 {strides = array<i32>} : memref<1x8x16x16xf32, #tpu.memory_space<vmem>>, vector<1x8x1x16xf32>,
    %70 = vector.extract_strided_slice %13 {offsets = [0, 224], sizes = [8, 16], strides = [1, 1]} : vector<128x256xf32> to vector<8x16xf32>
    %c0_51 = arith.constant 0 : index
    %c0_52 = arith.constant 0 : index
    %c14 = arith.constant 14 : index
    %c0_53 = arith.constant 0 : index
    %71 = vector.load %arg5[%c0_51, %c0_52, %c14, %c0_53] : memref<1x8x16x16xf32, #tpu.memory_space<vmem>>, vector<1x8x1x16xf32>
    %72 = vector.shape_cast %71 : vector<1x8x1x16xf32> to vector<8x16xf32>
    %73 = vector.shape_cast %70 : vector<8x16xf32> to vector<1x8x1x16xf32>
    tpu.vector_store %arg5[%c0_51, %c0_52, %c14, %c0_53], %73 {strides = array<i32>} : memref<1x8x16x16xf32, #tpu.memory_space<vmem>>, vector<1x8x1x16xf32>,
    %74 = vector.extract_strided_slice %13 {offsets = [0, 240], sizes = [8, 16], strides = [1, 1]} : vector<128x256xf32> to vector<8x16xf32>
    %c0_54 = arith.constant 0 : index
    %c0_55 = arith.constant 0 : index
    %c15 = arith.constant 15 : index
    %c0_56 = arith.constant 0 : index
    %75 = vector.load %arg5[%c0_54, %c0_55, %c15, %c0_56] : memref<1x8x16x16xf32, #tpu.memory_space<vmem>>, vector<1x8x1x16xf32>
    %76 = vector.shape_cast %75 : vector<1x8x1x16xf32> to vector<8x16xf32>
    %77 = vector.shape_cast %74 : vector<8x16xf32> to vector<1x8x1x16xf32>
    tpu.vector_store %arg5[%c0_54, %c0_55, %c15, %c0_56], %77 {strides = array<i32>} : memref<1x8x16x16xf32, #tpu.memory_space<vmem>>, vector<1x8x1x16xf32>,
    return
  }
  func.func @transform_0(%arg0: i32, %arg1: i32) -> (i32, i32, i32, i32) {
    %c0_i32 = arith.constant 0 : i32
    %c0_i32_0 = arith.constant 0 : i32
    %c0_i32_1 = arith.constant 0 : i32
    return %arg0, %arg1, %c0_i32, %c0_i32_0 : i32, i32, i32, i32
  }
  func.func @transform_1(%arg0: i32, %arg1: i32) -> (i32, i32) {
    %c0_i32 = arith.constant 0 : i32
    %c0_i32_0 = arith.constant 0 : i32
    %c0_i32_1 = arith.constant 0 : i32
    return %c0_i32, %c0_i32_0 : i32, i32
  }
  func.func @transform_2(%arg0: i32, %arg1: i32) -> (i32, i32) {
    %c0_i32 = arith.constant 0 : i32
    %c0_i32_0 = arith.constant 0 : i32
    %c0_i32_1 = arith.constant 0 : i32
    return %c0_i32, %c0_i32_0 : i32, i32
  }
  func.func @transform_3(%arg0: i32, %arg1: i32) -> (i32, i32, i32, i32) {
    %c0_i32 = arith.constant 0 : i32
    %c0_i32_0 = arith.constant 0 : i32
    %c0_i32_1 = arith.constant 0 : i32
    return %arg0, %c0_i32, %arg1, %c0_i32_0 : i32, i32, i32, i32
  }
}

</mosaic_0001>

<llo_original>
// kernel: cnn_block_forward.3
$region0: #{cnn_block_forward.3}
  #allocation0 [shape = 'u32[]', space=smem, size = 0x4, offset = 0x4, fixed_abs, tag = 'smem constant byte address 0x4 - core index']
  #allocation1 [shape = 'u32[144,128]{1,0:T(1,128)}', space=vmem, size = 0x12000, scoped, tag = 'internal scratch']
  %s0 = inlined_call_operand.vmem [shape: bf16[2,1,128,256], index: 0, kind: input, shape index: {}]
  %s1 = inlined_call_operand.vmem [shape: f32[128,1], index: 1, kind: input, shape index: {}]
  %s2 = inlined_call_operand.vmem [shape: f32[128,1], index: 2, kind: input, shape index: {}]
  %s3 = inlined_call_operand.hbm [shape: f32[2,8,16,16], index: 3, kind: output, shape index: {}]
  %s4 = sld [smem:[#allocation0]]
  $region45: #{cnn_block_forward.3} parent=0
    _
  %s6 = ssub.s32 1, %s4
  %s7 = scalar_select 0, %s6, %s4
  $region1: #{cnn_block_forward.3} parent=0
    #allocation2 [shape = 'u8[131072]{0}', space=vmem, size = 0x20000, scoped, tag = 'output window, operand 0']
    #allocation3 [shape = 's32[2]{0}', space=sflag, size = 0x8, scoped, tag = 'scoped memory for cnn_block_forward.3']
    %8 = vsyncpa [#allocation3], 0
    %s9 = scalar_lea.sflag [#allocation3], 1
    %10 = vsyncpa %s9, 0
    loop: start=0, step=1, limit=4
    $region2: #{cnn_block_forward.3} parent=1 // loop_pre_header
      _
    $region3: #{cnn_block_forward.3} parent=1 // loop_header
      %s12 = sphi 0, %s16
      %p13 = scmp.ge.s32.totalorder %s12, 4
      %s19 = sphi 0, %s31
      %s20 = sphi 0, %s27
      %s21 = sphi 0, %s19
      %s22 = sphi 0, %s20
      %s23 = sphi 0, %s21
      %s24 = sphi 0, %s22
      %s36 = sphi 0, %s38
      %s39 = sphi 0, %s36
      %s40 = sphi 0, %s39
      %s56 = sphi 0, %s40
      %s60 = sphi 0, %s60
      %s62 = sphi 0, %s60
      %s63 = sphi 0, %s62
      %s77 = sphi 0, %s63
      %s81 = sphi 0, %s81
      %s83 = sphi 0, %s81
      %s84 = sphi 0, %s83
      %s98 = sphi 0, %s84
      %s106 = sphi 0, %s108
      %s109 = sphi 0, %s106
      %s110 = sphi 0, %s109
      %s126 = sphi 0, %s110
    $region4: #{cnn_block_forward.3} parent=1 // loop_header_branch
      %15 = sbr.rel (%p13) target = $region8
    $region5: #{cnn_block_forward.3} parent=1 // loop_body
      %s17 = ssub.s32 %s12, 1
      %s18 = ssub.s32 %s12, 2
      %s25 = sadd.s32 1, %s20
      %p26 = scmp.ge.s32.totalorder %s25, 1
      %s27 = scalar_select %p26, 0, %s25
      %s28 = sadd.s32 1, %s19
      %s29 = scalar_select %p26, %s28, %s19
      %p30 = scmp.ge.s32.totalorder %s29, 2
      %s31 = scalar_select %p30, 0, %s29
      %s32 = ssub.s32 %s19, %s31
      %s33 = ssub.s32 %s20, %s27
      %s34 = sor.u32 %s32, %s33
      %p35 = scmp.eq.s32.totalorder %s34, 0
      %s37 = sadd.s32 %s36, 1
      %s38 = scalar_select %p35, %s36, %s37
      %p41 = pneg %p35
      %p42 = scmp.eq.s32.totalorder %s12, 1
      %p43 = por %p41, %p42
      %p44 = scmp.ne.s32.totalorder %s36, %s39
      %p45 = scmp.eq.s32.totalorder %s12, 0
      %p46 = por %p44, %p45
      %p47 = scmp.ne.s32.totalorder %s36, %s39
      %p48 = scmp.eq.s32.totalorder %s17, 1
      %p49 = por %p47, %p48
      %p50 = scmp.ne.s32.totalorder %s39, %s40
      %p51 = scmp.eq.s32.totalorder %s17, 0
      %p52 = por %p50, %p51
      %p53 = scmp.ne.s32.totalorder %s39, %s40
      %p54 = scmp.eq.s32.totalorder %s18, 1
      %p55 = por %p53, %p54
      %p57 = scmp.ne.s32.totalorder %s40, %s56
      %p58 = scmp.eq.s32.totalorder %s18, 0
      %p59 = por %p57, %p58
      %s61 = sadd.s32 %s60, 1
      %p64 = scmp.eq.s32.totalorder %s12, 1
      %p65 = scmp.ne.s32.totalorder %s60, %s62
      %p66 = scmp.eq.s32.totalorder %s12, 0
      %p67 = por %p65, %p66
      %p68 = scmp.ne.s32.totalorder %s60, %s62
      %p69 = scmp.eq.s32.totalorder %s17, 1
      %p70 = por %p68, %p69
      %p71 = scmp.ne.s32.totalorder %s62, %s63
      %p72 = scmp.eq.s32.totalorder %s17, 0
      %p73 = por %p71, %p72
      %p74 = scmp.ne.s32.totalorder %s62, %s63
      %p75 = scmp.eq.s32.totalorder %s18, 1
      %p76 = por %p74, %p75
      %p78 = scmp.ne.s32.totalorder %s63, %s77
      %p79 = scmp.eq.s32.totalorder %s18, 0
      %p80 = por %p78, %p79
      %s82 = sadd.s32 %s81, 1
      %p85 = scmp.eq.s32.totalorder %s12, 1
      %p86 = scmp.ne.s32.totalorder %s81, %s83
      %p87 = scmp.eq.s32.totalorder %s12, 0
      %p88 = por %p86, %p87
      %p89 = scmp.ne.s32.totalorder %s81, %s83
      %p90 = scmp.eq.s32.totalorder %s17, 1
      %p91 = por %p89, %p90
      %p92 = scmp.ne.s32.totalorder %s83, %s84
      %p93 = scmp.eq.s32.totalorder %s17, 0
      %p94 = por %p92, %p93
      %p95 = scmp.ne.s32.totalorder %s83, %s84
      %p96 = scmp.eq.s32.totalorder %s18, 1
      %p97 = por %p95, %p96
      %p99 = scmp.ne.s32.totalorder %s84, %s98
      %p100 = scmp.eq.s32.totalorder %s18, 0
      %p101 = por %p99, %p100
      %s102 = ssub.s32 %s19, %s31
      %s103 = ssub.s32 %s20, %s27
      %s104 = sor.u32 %s102, %s103
      %p105 = scmp.eq.s32.totalorder %s104, 0
      %s107 = sadd.s32 %s106, 1
      %s108 = scalar_select %p105, %s106, %s107
      %p111 = pneg %p105
      %p112 = scmp.eq.s32.totalorder %s12, 1
      %p113 = por %p111, %p112
      %p114 = scmp.ne.s32.totalorder %s106, %s109
      %p115 = scmp.eq.s32.totalorder %s12, 0
      %p116 = por %p114, %p115
      %p117 = scmp.ne.s32.totalorder %s106, %s109
      %p118 = scmp.eq.s32.totalorder %s17, 1
      %p119 = por %p117, %p118
      %p120 = scmp.ne.s32.totalorder %s109, %s110
      %p121 = scmp.eq.s32.totalorder %s17, 0
      %p122 = por %p120, %p121
      %p123 = scmp.ne.s32.totalorder %s109, %s110
      %p124 = scmp.eq.s32.totalorder %s18, 1
      %p125 = por %p123, %p124
      %p127 = scmp.ne.s32.totalorder %s110, %s126
      %p128 = scmp.eq.s32.totalorder %s18, 0
      %p129 = por %p127, %p128
      %p130 = scmp.le.s32.totalorder 1, %s12
      %p131 = scmp.lt.s32.totalorder %s12, 3
      %p132 = pnand %p130, %p131
      %p133 = pneg %p132
      // Predicated region
      $region9: #{cnn_block_forward.3} parent=5 // pred_check
        _
      $region10: #{cnn_block_forward.3} parent=5 // pred_check_branch
        %135 = sbr.rel (%p132) target = $region12
      $region11: #{cnn_block_forward.3} parent=5 // pred_region
        %s136 = ssub.s32 %s12, 1
        // Predicated region
        $region13: #{cnn_block_forward.3} parent=11 // pred_check
          %p137 = pneg %p73
        $region14: #{cnn_block_forward.3} parent=11 // pred_check_branch
          %139 = sbr.rel (%p137) target = $region16
        $region15: #{cnn_block_forward.3} parent=11 // pred_region
          _
        $region16: #{cnn_block_forward.3} parent=11 // pred_fallthru
          _
        // Predicated region
        $region17: #{cnn_block_forward.3} parent=11 // pred_check
          %p140 = pneg %p94
        $region18: #{cnn_block_forward.3} parent=11 // pred_check_branch
          %142 = sbr.rel (%p140) target = $region20
        $region19: #{cnn_block_forward.3} parent=11 // pred_region
          _
        $region20: #{cnn_block_forward.3} parent=11 // pred_fallthru
          _
      $region12: #{cnn_block_forward.3} parent=5 // pred_fallthru
        _
      %p143 = scmp.lt.s32.totalorder %s12, 2
      // Predicated region
      $region21: #{cnn_block_forward.3} parent=5 // pred_check
        %p144 = pneg %p143
      $region22: #{cnn_block_forward.3} parent=5 // pred_check_branch
        %146 = sbr.rel (%p144) target = $region24
      $region23: #{cnn_block_forward.3} parent=5 // pred_region
        // Predicated region
        $region25: #{cnn_block_forward.3} parent=23 // pred_check
          %p147 = pneg %p46
        $region26: #{cnn_block_forward.3} parent=23 // pred_check_branch
          %149 = sbr.rel (%p147) target = $region28
        $region27: #{cnn_block_forward.3} parent=23 // pred_region
          %p150 = scmp.lt.s32.totalorder %s19, 1
          %s151 = scalar_select %p150, %s19, 1
          %p152 = scmp.lt.s32.totalorder %s20, 0
          %s153 = scalar_select %p152, %s20, 0
          %s154 = smul.addr %s153, 32
          %s155 = smul.addr %s151, 32
          %s156 = sadd.s32 %s154, %s155
          %s157 = smul.addr %s156, 4
          %s158 = scalar_lea.vmem %s0, %s157
        $region28: #{cnn_block_forward.3} parent=23 // pred_fallthru
          _
      $region24: #{cnn_block_forward.3} parent=5 // pred_fallthru
        _
      %p159 = scmp.le.s32.totalorder 1, %s12
      %p160 = scmp.lt.s32.totalorder %s12, 3
      %p161 = pnand %p159, %p160
      %p162 = pneg %p161
      // Predicated region
      $region29: #{cnn_block_forward.3} parent=5 // pred_check
        _
      $region30: #{cnn_block_forward.3} parent=5 // pred_check_branch
        %164 = sbr.rel (%p161) target = $region32
      $region31: #{cnn_block_forward.3} parent=5 // pred_region
        %s165 = ssub.s32 %s12, 1
        %p166 = scmp.lt.s32.totalorder %s21, 1
        %s167 = scalar_select %p166, %s21, 1
        %p168 = scmp.lt.s32.totalorder %s22, 0
        %s169 = scalar_select %p168, %s22, 0
        %s170 = smul.addr %s169, 32
        %s171 = smul.addr %s167, 32
        %s172 = sadd.s32 %s170, %s171
        %s173 = smul.addr %s172, 4
        %s174 = scalar_lea.vmem %s0, %s173
        %p175 = pneg %p52
        %p176 = pneg %p49
        %p177 = pneg %p73
        %p178 = pneg %p70
        %p179 = pneg %p94
        %p180 = pneg %p91
        %p181 = pneg %p122
        %p182 = pneg %p119
        %s183 = sand.u32 %s109, 1
        %s184 = scalar_lea.sflag [#allocation3], %s183
        %s185 = sand.u32 %s109, 1
        %s186 = smul.addr %s185, 128
        %s187 = scalar_lea.vmem [#allocation2], %s186
        %p188 = scmp.lt.s32.totalorder %s21, 1
        %s189 = scalar_select %p188, %s21, 1
        %p190 = scmp.lt.s32.totalorder %s22, 0
        %s191 = scalar_select %p190, %s22, 0
        %s192 = smul.addr %s191, 32
        %s193 = smul.addr %s189, 32
        %s194 = sadd.s32 %s192, %s193
        %s195 = smul.addr %s194, 4
        %s196 = scalar_lea.vmem %s0, %s195
        %s197 = smul.u32 2, %s22
        %v198 = vld [vmem:[%s196] sm:$0xff]
        %v199 = vunpack.c.l.bf16 %v198
        %v200 = vunpack.c.h.bf16 %v198
        %v201 = vld [vmem:[%s1] sm:$0xff]
        %203 = vset.pattern.permute.xlu0 0
        %204 = vperm.xlu0 %203, %v201
        %v205 = vpop.permute.xlu0 %204
        %v207 = vmul.f32 %v199, %v205
        %v208 = vmul.f32 %v200, %v205
        %v209 = vld [vmem:[%s2] sm:$0xff]
        %211 = vset.pattern.permute.xlu0 0
        %212 = vperm.xlu0 %211, %v209
        %v213 = vpop.permute.xlu0 %212
        %v215 = vadd.f32 %v207, %v213
        %v216 = vadd.f32 %v208, %v213
        %vm217 = vcmp.gt.f32.partialorder %v215, 0.0
        %vm218 = vcmp.gt.f32.partialorder %v216, 0.0
        %v219 = vmul.f32 %v215, 0.1
        %v220 = vmul.f32 %v216, 0.1
        %v221 = vsel %vm217, %v215, %v219
        %v222 = vsel %vm218, %v216, %v220
        %v224 = vcombine.high %v221, %v221
        %v226 = vunpack.c.l.s4 1966171168
        %v227 = vunpack.c.0.s8 %v226
        %v228 = vlaneseq
        %v229 = vshrl.u32 %v228, 7
        %v230 = vsub.s32 %v227, %v229
        %v231 = vrot.slane %v221, %v230
        %v233 = vunpack.c.l.s4 1966171168
        %v234 = vunpack.c.0.s8 %v233
        %v235 = vlaneseq
        %v236 = vshrl.u32 %v235, 7
        %v237 = vsub.s32 %v234, %v236
        %v238 = vrot.slane %v224, %v237
        %v239 = vcombine.high %v231, %v231
        %v240 = vcombine.high %v238, %v238
        %v242 = vunpack.c.l.s4 1966171168
        %v243 = vunpack.c.0.s8 %v242
        %v244 = vlaneseq
        %v245 = vshrl.u32 %v244, 7
        %v246 = vsub.s32 %v243, %v245
        %v247 = vrot.slane %v231, %v246
        %v249 = vunpack.c.l.s4 1966171168
        %v250 = vunpack.c.0.s8 %v249
        %v251 = vlaneseq
        %v252 = vshrl.u32 %v251, 7
        %v253 = vsub.s32 %v250, %v252
        %v254 = vrot.slane %v238, %v253
        %v256 = vunpack.c.l.s4 1966171168
        %v257 = vunpack.c.0.s8 %v256
        %v258 = vlaneseq
        %v259 = vshrl.u32 %v258, 7
        %v260 = vsub.s32 %v257, %v259
        %v261 = vrot.slane %v239, %v260
        %v263 = vunpack.c.l.s4 1966171168
        %v264 = vunpack.c.0.s8 %v263
        %v265 = vlaneseq
        %v266 = vshrl.u32 %v265, 7
        %v267 = vsub.s32 %v264, %v266
        %v268 = vrot.slane %v240, %v267
        %v269 = vcombine.high %v247, %v247
        %v270 = vcombine.high %v254, %v254
        %v271 = vcombine.high %v261, %v261
        %v272 = vcombine.high %v268, %v268
        %vm281 = vcmask 122880
        %282 = vst.msk [vmem:[%s187] sm:$0x1] %vm281, %v247
        %283 = vst.msk [vmem:[%s187 + $0x10] sm:$0x1] %vm281, %v261
        %284 = vst.msk [vmem:[%s187 + $0x20] sm:$0x1] %vm281, %v269
        %285 = vst.msk [vmem:[%s187 + $0x30] sm:$0x1] %vm281, %v271
        %286 = vst.msk [vmem:[%s187 + $0x40] sm:$0x1] %vm281, %v254
        %287 = vst.msk [vmem:[%s187 + $0x50] sm:$0x1] %vm281, %v268
        %288 = vst.msk [vmem:[%s187 + $0x60] sm:$0x1] %vm281, %v270
        %289 = vst.msk [vmem:[%s187 + $0x70] sm:$0x1] %vm281, %v272
        %v290 = vlaneseq
        %v291 = vshrl.u32 %v290, 7
        %v292 = vsub.s32 0, %v291
        %v293 = vrot.slane %v247, %v292
        %v294 = vlaneseq
        %v295 = vshrl.u32 %v294, 7
        %v296 = vsub.s32 0, %v295
        %v297 = vrot.slane %v261, %v296
        %v298 = vlaneseq
        %v299 = vshrl.u32 %v298, 7
        %v300 = vsub.s32 0, %v299
        %v301 = vrot.slane %v269, %v300
        %v302 = vlaneseq
        %v303 = vshrl.u32 %v302, 7
        %v304 = vsub.s32 0, %v303
        %v305 = vrot.slane %v271, %v304
        %v306 = vlaneseq
        %v307 = vshrl.u32 %v306, 7
        %v308 = vsub.s32 0, %v307
        %v309 = vrot.slane %v254, %v308
        %v310 = vlaneseq
        %v311 = vshrl.u32 %v310, 7
        %v312 = vsub.s32 0, %v311
        %v313 = vrot.slane %v268, %v312
        %v314 = vlaneseq
        %v315 = vshrl.u32 %v314, 7
        %v316 = vsub.s32 0, %v315
        %v317 = vrot.slane %v270, %v316
        %v318 = vlaneseq
        %v319 = vshrl.u32 %v318, 7
        %v320 = vsub.s32 0, %v319
        %v321 = vrot.slane %v272, %v320
        %322 = vrot.lane.b32.xlu0 %v293, 112
        %v323 = vpop.permute.xlu0 %322
        %324 = vrot.lane.b32.xlu0 %v297, 112
        %v325 = vpop.permute.xlu0 %324
        %326 = vrot.lane.b32.xlu0 %v301, 112
        %v327 = vpop.permute.xlu0 %326
        %328 = vrot.lane.b32.xlu0 %v305, 112
        %v329 = vpop.permute.xlu0 %328
        %330 = vrot.lane.b32.xlu0 %v309, 112
        %v331 = vpop.permute.xlu0 %330
        %332 = vrot.lane.b32.xlu0 %v313, 112
        %v333 = vpop.permute.xlu0 %332
        %334 = vrot.lane.b32.xlu0 %v317, 112
        %v335 = vpop.permute.xlu0 %334
        %336 = vrot.lane.b32.xlu0 %v321, 112
        %v337 = vpop.permute.xlu0 %336
        %346 = vst.msk [vmem:[%s187 + $0x1] sm:$0x1] %vm281, %v323
        %347 = vst.msk [vmem:[%s187 + $0x11] sm:$0x1] %vm281, %v325
        %348 = vst.msk [vmem:[%s187 + $0x21] sm:$0x1] %vm281, %v327
        %349 = vst.msk [vmem:[%s187 + $0x31] sm:$0x1] %vm281, %v329
        %350 = vst.msk [vmem:[%s187 + $0x41] sm:$0x1] %vm281, %v331
        %351 = vst.msk [vmem:[%s187 + $0x51] sm:$0x1] %vm281, %v333
        %352 = vst.msk [vmem:[%s187 + $0x61] sm:$0x1] %vm281, %v335
        %353 = vst.msk [vmem:[%s187 + $0x71] sm:$0x1] %vm281, %v337
        %354 = vrot.lane.b32.xlu0 %v293, 96
        %v355 = vpop.permute.xlu0 %354
        %356 = vrot.lane.b32.xlu0 %v297, 96
        %v357 = vpop.permute.xlu0 %356
        %358 = vrot.lane.b32.xlu0 %v301, 96
        %v359 = vpop.permute.xlu0 %358
        %360 = vrot.lane.b32.xlu0 %v305, 96
        %v361 = vpop.permute.xlu0 %360
        %362 = vrot.lane.b32.xlu0 %v309, 96
        %v363 = vpop.permute.xlu0 %362
        %364 = vrot.lane.b32.xlu0 %v313, 96
        %v365 = vpop.permute.xlu0 %364
        %366 = vrot.lane.b32.xlu0 %v317, 96
        %v367 = vpop.permute.xlu0 %366
        %368 = vrot.lane.b32.xlu0 %v321, 96
        %v369 = vpop.permute.xlu0 %368
        %378 = vst.msk [vmem:[%s187 + $0x2] sm:$0x1] %vm281, %v355
        %379 = vst.msk [vmem:[%s187 + $0x12] sm:$0x1] %vm281, %v357
        %380 = vst.msk [vmem:[%s187 + $0x22] sm:$0x1] %vm281, %v359
        %381 = vst.msk [vmem:[%s187 + $0x32] sm:$0x1] %vm281, %v361
        %382 = vst.msk [vmem:[%s187 + $0x42] sm:$0x1] %vm281, %v363
        %383 = vst.msk [vmem:[%s187 + $0x52] sm:$0x1] %vm281, %v365
        %384 = vst.msk [vmem:[%s187 + $0x62] sm:$0x1] %vm281, %v367
        %385 = vst.msk [vmem:[%s187 + $0x72] sm:$0x1] %vm281, %v369
        %386 = vrot.lane.b32.xlu0 %v293, 80
        %v387 = vpop.permute.xlu0 %386
        %388 = vrot.lane.b32.xlu0 %v297, 80
        %v389 = vpop.permute.xlu0 %388
        %390 = vrot.lane.b32.xlu0 %v301, 80
        %v391 = vpop.permute.xlu0 %390
        %392 = vrot.lane.b32.xlu0 %v305, 80
        %v393 = vpop.permute.xlu0 %392
        %394 = vrot.lane.b32.xlu0 %v309, 80
        %v395 = vpop.permute.xlu0 %394
        %396 = vrot.lane.b32.xlu0 %v313, 80
        %v397 = vpop.permute.xlu0 %396
        %398 = vrot.lane.b32.xlu0 %v317, 80
        %v399 = vpop.permute.xlu0 %398
        %400 = vrot.lane.b32.xlu0 %v321, 80
        %v401 = vpop.permute.xlu0 %400
        %410 = vst.msk [vmem:[%s187 + $0x3] sm:$0x1] %vm281, %v387
        %411 = vst.msk [vmem:[%s187 + $0x13] sm:$0x1] %vm281, %v389
        %412 = vst.msk [vmem:[%s187 + $0x23] sm:$0x1] %vm281, %v391
        %413 = vst.msk [vmem:[%s187 + $0x33] sm:$0x1] %vm281, %v393
        %414 = vst.msk [vmem:[%s187 + $0x43] sm:$0x1] %vm281, %v395
        %415 = vst.msk [vmem:[%s187 + $0x53] sm:$0x1] %vm281, %v397
        %416 = vst.msk [vmem:[%s187 + $0x63] sm:$0x1] %vm281, %v399
        %417 = vst.msk [vmem:[%s187 + $0x73] sm:$0x1] %vm281, %v401
        %418 = vrot.lane.b32.xlu0 %v293, 64
        %v419 = vpop.permute.xlu0 %418
        %420 = vrot.lane.b32.xlu0 %v297, 64
        %v421 = vpop.permute.xlu0 %420
        %422 = vrot.lane.b32.xlu0 %v301, 64
        %v423 = vpop.permute.xlu0 %422
        %424 = vrot.lane.b32.xlu0 %v305, 64
        %v425 = vpop.permute.xlu0 %424
        %426 = vrot.lane.b32.xlu0 %v309, 64
        %v427 = vpop.permute.xlu0 %426
        %428 = vrot.lane.b32.xlu0 %v313, 64
        %v429 = vpop.permute.xlu0 %428
        %430 = vrot.lane.b32.xlu0 %v317, 64
        %v431 = vpop.permute.xlu0 %430
        %432 = vrot.lane.b32.xlu0 %v321, 64
        %v433 = vpop.permute.xlu0 %432
        %442 = vst.msk [vmem:[%s187 + $0x4] sm:$0x1] %vm281, %v419
        %443 = vst.msk [vmem:[%s187 + $0x14] sm:$0x1] %vm281, %v421
        %444 = vst.msk [vmem:[%s187 + $0x24] sm:$0x1] %vm281, %v423
        %445 = vst.msk [vmem:[%s187 + $0x34] sm:$0x1] %vm281, %v425
        %446 = vst.msk [vmem:[%s187 + $0x44] sm:$0x1] %vm281, %v427
        %447 = vst.msk [vmem:[%s187 + $0x54] sm:$0x1] %vm281, %v429
        %448 = vst.msk [vmem:[%s187 + $0x64] sm:$0x1] %vm281, %v431
        %449 = vst.msk [vmem:[%s187 + $0x74] sm:$0x1] %vm281, %v433
        %450 = vrot.lane.b32.xlu0 %v293, 48
        %v451 = vpop.permute.xlu0 %450
        %452 = vrot.lane.b32.xlu0 %v297, 48
        %v453 = vpop.permute.xlu0 %452
        %454 = vrot.lane.b32.xlu0 %v301, 48
        %v455 = vpop.permute.xlu0 %454
        %456 = vrot.lane.b32.xlu0 %v305, 48
        %v457 = vpop.permute.xlu0 %456
        %458 = vrot.lane.b32.xlu0 %v309, 48
        %v459 = vpop.permute.xlu0 %458
        %460 = vrot.lane.b32.xlu0 %v313, 48
        %v461 = vpop.permute.xlu0 %460
        %462 = vrot.lane.b32.xlu0 %v317, 48
        %v463 = vpop.permute.xlu0 %462
        %464 = vrot.lane.b32.xlu0 %v321, 48
        %v465 = vpop.permute.xlu0 %464
        %474 = vst.msk [vmem:[%s187 + $0x5] sm:$0x1] %vm281, %v451
        %475 = vst.msk [vmem:[%s187 + $0x15] sm:$0x1] %vm281, %v453
        %476 = vst.msk [vmem:[%s187 + $0x25] sm:$0x1] %vm281, %v455
        %477 = vst.msk [vmem:[%s187 + $0x35] sm:$0x1] %vm281, %v457
        %478 = vst.msk [vmem:[%s187 + $0x45] sm:$0x1] %vm281, %v459
        %479 = vst.msk [vmem:[%s187 + $0x55] sm:$0x1] %vm281, %v461
        %480 = vst.msk [vmem:[%s187 + $0x65] sm:$0x1] %vm281, %v463
        %481 = vst.msk [vmem:[%s187 + $0x75] sm:$0x1] %vm281, %v465
        %482 = vrot.lane.b32.xlu0 %v293, 32
        %v483 = vpop.permute.xlu0 %482
        %484 = vrot.lane.b32.xlu0 %v297, 32
        %v485 = vpop.permute.xlu0 %484
        %486 = vrot.lane.b32.xlu0 %v301, 32
        %v487 = vpop.permute.xlu0 %486
        %488 = vrot.lane.b32.xlu0 %v305, 32
        %v489 = vpop.permute.xlu0 %488
        %490 = vrot.lane.b32.xlu0 %v309, 32
        %v491 = vpop.permute.xlu0 %490
        %492 = vrot.lane.b32.xlu0 %v313, 32
        %v493 = vpop.permute.xlu0 %492
        %494 = vrot.lane.b32.xlu0 %v317, 32
        %v495 = vpop.permute.xlu0 %494
        %496 = vrot.lane.b32.xlu0 %v321, 32
        %v497 = vpop.permute.xlu0 %496
        %506 = vst.msk [vmem:[%s187 + $0x6] sm:$0x1] %vm281, %v483
        %507 = vst.msk [vmem:[%s187 + $0x16] sm:$0x1] %vm281, %v485
        %508 = vst.msk [vmem:[%s187 + $0x26] sm:$0x1] %vm281, %v487
        %509 = vst.msk [vmem:[%s187 + $0x36] sm:$0x1] %vm281, %v489
        %510 = vst.msk [vmem:[%s187 + $0x46] sm:$0x1] %vm281, %v491
        %511 = vst.msk [vmem:[%s187 + $0x56] sm:$0x1] %vm281, %v493
        %512 = vst.msk [vmem:[%s187 + $0x66] sm:$0x1] %vm281, %v495
        %513 = vst.msk [vmem:[%s187 + $0x76] sm:$0x1] %vm281, %v497
        %514 = vrot.lane.b32.xlu0 %v293, 16
        %v515 = vpop.permute.xlu0 %514
        %516 = vrot.lane.b32.xlu0 %v297, 16
        %v517 = vpop.permute.xlu0 %516
        %518 = vrot.lane.b32.xlu0 %v301, 16
        %v519 = vpop.permute.xlu0 %518
        %520 = vrot.lane.b32.xlu0 %v305, 16
        %v521 = vpop.permute.xlu0 %520
        %522 = vrot.lane.b32.xlu0 %v309, 16
        %v523 = vpop.permute.xlu0 %522
        %524 = vrot.lane.b32.xlu0 %v313, 16
        %v525 = vpop.permute.xlu0 %524
        %526 = vrot.lane.b32.xlu0 %v317, 16
        %v527 = vpop.permute.xlu0 %526
        %528 = vrot.lane.b32.xlu0 %v321, 16
        %v529 = vpop.permute.xlu0 %528
        %538 = vst.msk [vmem:[%s187 + $0x7] sm:$0x1] %vm281, %v515
        %539 = vst.msk [vmem:[%s187 + $0x17] sm:$0x1] %vm281, %v517
        %540 = vst.msk [vmem:[%s187 + $0x27] sm:$0x1] %vm281, %v519
        %541 = vst.msk [vmem:[%s187 + $0x37] sm:$0x1] %vm281, %v521
        %542 = vst.msk [vmem:[%s187 + $0x47] sm:$0x1] %vm281, %v523
        %543 = vst.msk [vmem:[%s187 + $0x57] sm:$0x1] %vm281, %v525
        %544 = vst.msk [vmem:[%s187 + $0x67] sm:$0x1] %vm281, %v527
        %545 = vst.msk [vmem:[%s187 + $0x77] sm:$0x1] %vm281, %v529
        %v547 = vcombine.high %v222, %v222
        %v549 = vunpack.c.l.s4 1966171168
        %v550 = vunpack.c.0.s8 %v549
        %v551 = vlaneseq
        %v552 = vshrl.u32 %v551, 7
        %v553 = vsub.s32 %v550, %v552
        %v554 = vrot.slane %v222, %v553
        %v556 = vunpack.c.l.s4 1966171168
        %v557 = vunpack.c.0.s8 %v556
        %v558 = vlaneseq
        %v559 = vshrl.u32 %v558, 7
        %v560 = vsub.s32 %v557, %v559
        %v561 = vrot.slane %v547, %v560
        %v562 = vcombine.high %v554, %v554
        %v563 = vcombine.high %v561, %v561
        %v565 = vunpack.c.l.s4 1966171168
        %v566 = vunpack.c.0.s8 %v565
        %v567 = vlaneseq
        %v568 = vshrl.u32 %v567, 7
        %v569 = vsub.s32 %v566, %v568
        %v570 = vrot.slane %v554, %v569
        %v572 = vunpack.c.l.s4 1966171168
        %v573 = vunpack.c.0.s8 %v572
        %v574 = vlaneseq
        %v575 = vshrl.u32 %v574, 7
        %v576 = vsub.s32 %v573, %v575
        %v577 = vrot.slane %v561, %v576
        %v579 = vunpack.c.l.s4 1966171168
        %v580 = vunpack.c.0.s8 %v579
        %v581 = vlaneseq
        %v582 = vshrl.u32 %v581, 7
        %v583 = vsub.s32 %v580, %v582
        %v584 = vrot.slane %v562, %v583
        %v586 = vunpack.c.l.s4 1966171168
        %v587 = vunpack.c.0.s8 %v586
        %v588 = vlaneseq
        %v589 = vshrl.u32 %v588, 7
        %v590 = vsub.s32 %v587, %v589
        %v591 = vrot.slane %v563, %v590
        %v592 = vcombine.high %v570, %v570
        %v593 = vcombine.high %v577, %v577
        %v594 = vcombine.high %v584, %v584
        %v595 = vcombine.high %v591, %v591
        %604 = vst.msk [vmem:[%s187 + $0x8] sm:$0x1] %vm281, %v570
        %605 = vst.msk [vmem:[%s187 + $0x18] sm:$0x1] %vm281, %v584
        %606 = vst.msk [vmem:[%s187 + $0x28] sm:$0x1] %vm281, %v592
        %607 = vst.msk [vmem:[%s187 + $0x38] sm:$0x1] %vm281, %v594
        %608 = vst.msk [vmem:[%s187 + $0x48] sm:$0x1] %vm281, %v577
        %609 = vst.msk [vmem:[%s187 + $0x58] sm:$0x1] %vm281, %v591
        %610 = vst.msk [vmem:[%s187 + $0x68] sm:$0x1] %vm281, %v593
        %611 = vst.msk [vmem:[%s187 + $0x78] sm:$0x1] %vm281, %v595
        %v612 = vlaneseq
        %v613 = vshrl.u32 %v612, 7
        %v614 = vsub.s32 0, %v613
        %v615 = vrot.slane %v570, %v614
        %v616 = vlaneseq
        %v617 = vshrl.u32 %v616, 7
        %v618 = vsub.s32 0, %v617
        %v619 = vrot.slane %v584, %v618
        %v620 = vlaneseq
        %v621 = vshrl.u32 %v620, 7
        %v622 = vsub.s32 0, %v621
        %v623 = vrot.slane %v592, %v622
        %v624 = vlaneseq
        %v625 = vshrl.u32 %v624, 7
        %v626 = vsub.s32 0, %v625
        %v627 = vrot.slane %v594, %v626
        %v628 = vlaneseq
        %v629 = vshrl.u32 %v628, 7
        %v630 = vsub.s32 0, %v629
        %v631 = vrot.slane %v577, %v630
        %v632 = vlaneseq
        %v633 = vshrl.u32 %v632, 7
        %v634 = vsub.s32 0, %v633
        %v635 = vrot.slane %v591, %v634
        %v636 = vlaneseq
        %v637 = vshrl.u32 %v636, 7
        %v638 = vsub.s32 0, %v637
        %v639 = vrot.slane %v593, %v638
        %v640 = vlaneseq
        %v641 = vshrl.u32 %v640, 7
        %v642 = vsub.s32 0, %v641
        %v643 = vrot.slane %v595, %v642
        %644 = vrot.lane.b32.xlu0 %v615, 112
        %v645 = vpop.permute.xlu0 %644
        %646 = vrot.lane.b32.xlu0 %v619, 112
        %v647 = vpop.permute.xlu0 %646
        %648 = vrot.lane.b32.xlu0 %v623, 112
        %v649 = vpop.permute.xlu0 %648
        %650 = vrot.lane.b32.xlu0 %v627, 112
        %v651 = vpop.permute.xlu0 %650
        %652 = vrot.lane.b32.xlu0 %v631, 112
        %v653 = vpop.permute.xlu0 %652
        %654 = vrot.lane.b32.xlu0 %v635, 112
        %v655 = vpop.permute.xlu0 %654
        %656 = vrot.lane.b32.xlu0 %v639, 112
        %v657 = vpop.permute.xlu0 %656
        %658 = vrot.lane.b32.xlu0 %v643, 112
        %v659 = vpop.permute.xlu0 %658
        %668 = vst.msk [vmem:[%s187 + $0x9] sm:$0x1] %vm281, %v645
        %669 = vst.msk [vmem:[%s187 + $0x19] sm:$0x1] %vm281, %v647
        %670 = vst.msk [vmem:[%s187 + $0x29] sm:$0x1] %vm281, %v649
        %671 = vst.msk [vmem:[%s187 + $0x39] sm:$0x1] %vm281, %v651
        %672 = vst.msk [vmem:[%s187 + $0x49] sm:$0x1] %vm281, %v653
        %673 = vst.msk [vmem:[%s187 + $0x59] sm:$0x1] %vm281, %v655
        %674 = vst.msk [vmem:[%s187 + $0x69] sm:$0x1] %vm281, %v657
        %675 = vst.msk [vmem:[%s187 + $0x79] sm:$0x1] %vm281, %v659
        %676 = vrot.lane.b32.xlu0 %v615, 96
        %v677 = vpop.permute.xlu0 %676
        %678 = vrot.lane.b32.xlu0 %v619, 96
        %v679 = vpop.permute.xlu0 %678
        %680 = vrot.lane.b32.xlu0 %v623, 96
        %v681 = vpop.permute.xlu0 %680
        %682 = vrot.lane.b32.xlu0 %v627, 96
        %v683 = vpop.permute.xlu0 %682
        %684 = vrot.lane.b32.xlu0 %v631, 96
        %v685 = vpop.permute.xlu0 %684
        %686 = vrot.lane.b32.xlu0 %v635, 96
        %v687 = vpop.permute.xlu0 %686
        %688 = vrot.lane.b32.xlu0 %v639, 96
        %v689 = vpop.permute.xlu0 %688
        %690 = vrot.lane.b32.xlu0 %v643, 96
        %v691 = vpop.permute.xlu0 %690
        %700 = vst.msk [vmem:[%s187 + $0xa] sm:$0x1] %vm281, %v677
        %701 = vst.msk [vmem:[%s187 + $0x1a] sm:$0x1] %vm281, %v679
        %702 = vst.msk [vmem:[%s187 + $0x2a] sm:$0x1] %vm281, %v681
        %703 = vst.msk [vmem:[%s187 + $0x3a] sm:$0x1] %vm281, %v683
        %704 = vst.msk [vmem:[%s187 + $0x4a] sm:$0x1] %vm281, %v685
        %705 = vst.msk [vmem:[%s187 + $0x5a] sm:$0x1] %vm281, %v687
        %706 = vst.msk [vmem:[%s187 + $0x6a] sm:$0x1] %vm281, %v689
        %707 = vst.msk [vmem:[%s187 + $0x7a] sm:$0x1] %vm281, %v691
        %708 = vrot.lane.b32.xlu0 %v615, 80
        %v709 = vpop.permute.xlu0 %708
        %710 = vrot.lane.b32.xlu0 %v619, 80
        %v711 = vpop.permute.xlu0 %710
        %712 = vrot.lane.b32.xlu0 %v623, 80
        %v713 = vpop.permute.xlu0 %712
        %714 = vrot.lane.b32.xlu0 %v627, 80
        %v715 = vpop.permute.xlu0 %714
        %716 = vrot.lane.b32.xlu0 %v631, 80
        %v717 = vpop.permute.xlu0 %716
        %718 = vrot.lane.b32.xlu0 %v635, 80
        %v719 = vpop.permute.xlu0 %718
        %720 = vrot.lane.b32.xlu0 %v639, 80
        %v721 = vpop.permute.xlu0 %720
        %722 = vrot.lane.b32.xlu0 %v643, 80
        %v723 = vpop.permute.xlu0 %722
        %732 = vst.msk [vmem:[%s187 + $0xb] sm:$0x1] %vm281, %v709
        %733 = vst.msk [vmem:[%s187 + $0x1b] sm:$0x1] %vm281, %v711
        %734 = vst.msk [vmem:[%s187 + $0x2b] sm:$0x1] %vm281, %v713
        %735 = vst.msk [vmem:[%s187 + $0x3b] sm:$0x1] %vm281, %v715
        %736 = vst.msk [vmem:[%s187 + $0x4b] sm:$0x1] %vm281, %v717
        %737 = vst.msk [vmem:[%s187 + $0x5b] sm:$0x1] %vm281, %v719
        %738 = vst.msk [vmem:[%s187 + $0x6b] sm:$0x1] %vm281, %v721
        %739 = vst.msk [vmem:[%s187 + $0x7b] sm:$0x1] %vm281, %v723
        %740 = vrot.lane.b32.xlu0 %v615, 64
        %v741 = vpop.permute.xlu0 %740
        %742 = vrot.lane.b32.xlu0 %v619, 64
        %v743 = vpop.permute.xlu0 %742
        %744 = vrot.lane.b32.xlu0 %v623, 64
        %v745 = vpop.permute.xlu0 %744
        %746 = vrot.lane.b32.xlu0 %v627, 64
        %v747 = vpop.permute.xlu0 %746
        %748 = vrot.lane.b32.xlu0 %v631, 64
        %v749 = vpop.permute.xlu0 %748
        %750 = vrot.lane.b32.xlu0 %v635, 64
        %v751 = vpop.permute.xlu0 %750
        %752 = vrot.lane.b32.xlu0 %v639, 64
        %v753 = vpop.permute.xlu0 %752
        %754 = vrot.lane.b32.xlu0 %v643, 64
        %v755 = vpop.permute.xlu0 %754
        %764 = vst.msk [vmem:[%s187 + $0xc] sm:$0x1] %vm281, %v741
        %765 = vst.msk [vmem:[%s187 + $0x1c] sm:$0x1] %vm281, %v743
        %766 = vst.msk [vmem:[%s187 + $0x2c] sm:$0x1] %vm281, %v745
        %767 = vst.msk [vmem:[%s187 + $0x3c] sm:$0x1] %vm281, %v747
        %768 = vst.msk [vmem:[%s187 + $0x4c] sm:$0x1] %vm281, %v749
        %769 = vst.msk [vmem:[%s187 + $0x5c] sm:$0x1] %vm281, %v751
        %770 = vst.msk [vmem:[%s187 + $0x6c] sm:$0x1] %vm281, %v753
        %771 = vst.msk [vmem:[%s187 + $0x7c] sm:$0x1] %vm281, %v755
        %772 = vrot.lane.b32.xlu0 %v615, 48
        %v773 = vpop.permute.xlu0 %772
        %774 = vrot.lane.b32.xlu0 %v619, 48
        %v775 = vpop.permute.xlu0 %774
        %776 = vrot.lane.b32.xlu0 %v623, 48
        %v777 = vpop.permute.xlu0 %776
        %778 = vrot.lane.b32.xlu0 %v627, 48
        %v779 = vpop.permute.xlu0 %778
        %780 = vrot.lane.b32.xlu0 %v631, 48
        %v781 = vpop.permute.xlu0 %780
        %782 = vrot.lane.b32.xlu0 %v635, 48
        %v783 = vpop.permute.xlu0 %782
        %784 = vrot.lane.b32.xlu0 %v639, 48
        %v785 = vpop.permute.xlu0 %784
        %786 = vrot.lane.b32.xlu0 %v643, 48
        %v787 = vpop.permute.xlu0 %786
        %796 = vst.msk [vmem:[%s187 + $0xd] sm:$0x1] %vm281, %v773
        %797 = vst.msk [vmem:[%s187 + $0x1d] sm:$0x1] %vm281, %v775
        %798 = vst.msk [vmem:[%s187 + $0x2d] sm:$0x1] %vm281, %v777
        %799 = vst.msk [vmem:[%s187 + $0x3d] sm:$0x1] %vm281, %v779
        %800 = vst.msk [vmem:[%s187 + $0x4d] sm:$0x1] %vm281, %v781
        %801 = vst.msk [vmem:[%s187 + $0x5d] sm:$0x1] %vm281, %v783
        %802 = vst.msk [vmem:[%s187 + $0x6d] sm:$0x1] %vm281, %v785
        %803 = vst.msk [vmem:[%s187 + $0x7d] sm:$0x1] %vm281, %v787
        %804 = vrot.lane.b32.xlu0 %v615, 32
        %v805 = vpop.permute.xlu0 %804
        %806 = vrot.lane.b32.xlu0 %v619, 32
        %v807 = vpop.permute.xlu0 %806
        %808 = vrot.lane.b32.xlu0 %v623, 32
        %v809 = vpop.permute.xlu0 %808
        %810 = vrot.lane.b32.xlu0 %v627, 32
        %v811 = vpop.permute.xlu0 %810
        %812 = vrot.lane.b32.xlu0 %v631, 32
        %v813 = vpop.permute.xlu0 %812
        %814 = vrot.lane.b32.xlu0 %v635, 32
        %v815 = vpop.permute.xlu0 %814
        %816 = vrot.lane.b32.xlu0 %v639, 32
        %v817 = vpop.permute.xlu0 %816
        %818 = vrot.lane.b32.xlu0 %v643, 32
        %v819 = vpop.permute.xlu0 %818
        %828 = vst.msk [vmem:[%s187 + $0xe] sm:$0x1] %vm281, %v805
        %829 = vst.msk [vmem:[%s187 + $0x1e] sm:$0x1] %vm281, %v807
        %830 = vst.msk [vmem:[%s187 + $0x2e] sm:$0x1] %vm281, %v809
        %831 = vst.msk [vmem:[%s187 + $0x3e] sm:$0x1] %vm281, %v811
        %832 = vst.msk [vmem:[%s187 + $0x4e] sm:$0x1] %vm281, %v813
        %833 = vst.msk [vmem:[%s187 + $0x5e] sm:$0x1] %vm281, %v815
        %834 = vst.msk [vmem:[%s187 + $0x6e] sm:$0x1] %vm281, %v817
        %835 = vst.msk [vmem:[%s187 + $0x7e] sm:$0x1] %vm281, %v819
        %836 = vrot.lane.b32.xlu0 %v615, 16
        %v837 = vpop.permute.xlu0 %836
        %838 = vrot.lane.b32.xlu0 %v619, 16
        %v839 = vpop.permute.xlu0 %838
        %840 = vrot.lane.b32.xlu0 %v623, 16
        %v841 = vpop.permute.xlu0 %840
        %842 = vrot.lane.b32.xlu0 %v627, 16
        %v843 = vpop.permute.xlu0 %842
        %844 = vrot.lane.b32.xlu0 %v631, 16
        %v845 = vpop.permute.xlu0 %844
        %846 = vrot.lane.b32.xlu0 %v635, 16
        %v847 = vpop.permute.xlu0 %846
        %848 = vrot.lane.b32.xlu0 %v639, 16
        %v849 = vpop.permute.xlu0 %848
        %850 = vrot.lane.b32.xlu0 %v643, 16
        %v851 = vpop.permute.xlu0 %850
        %860 = vst.msk [vmem:[%s187 + $0xf] sm:$0x1] %vm281, %v837
        %861 = vst.msk [vmem:[%s187 + $0x1f] sm:$0x1] %vm281, %v839
        %862 = vst.msk [vmem:[%s187 + $0x2f] sm:$0x1] %vm281, %v841
        %863 = vst.msk [vmem:[%s187 + $0x3f] sm:$0x1] %vm281, %v843
        %864 = vst.msk [vmem:[%s187 + $0x4f] sm:$0x1] %vm281, %v845
        %865 = vst.msk [vmem:[%s187 + $0x5f] sm:$0x1] %vm281, %v847
        %866 = vst.msk [vmem:[%s187 + $0x6f] sm:$0x1] %vm281, %v849
        %867 = vst.msk [vmem:[%s187 + $0x7f] sm:$0x1] %vm281, %v851
        %s868 = sand.u32 %s109, 1
        %s869 = scalar_lea.sflag [#allocation3], %s868
        %s870 = sand.u32 %s109, 1
        %s871 = smul.addr %s870, 128
        %s872 = scalar_lea.vmem [#allocation2], %s871
        // Predicated region
        $region33: #{cnn_block_forward.3} parent=31 // pred_check
          %p873 = pneg %p119
        $region34: #{cnn_block_forward.3} parent=31 // pred_check_branch
          %875 = sbr.rel (%p873) target = $region36
        $region35: #{cnn_block_forward.3} parent=31 // pred_region
          %s876 = smul.u32 2, %s22
          %s878 = ssub.s32 2048, 2048
          %879 = vsyncadd %s869, %s878
          %s880 = smul.addr %s21, 16
          %s881 = sadd.s32 %s876, %s880
          %s882 = smul.addr %s881, 128
          %s883 = scalar_lea.hbm %s3, %s882
          %s884 = sshll.u32 %s872, 4
          %s885 = int_to_ptr.vmem [resolvable:$true] %s884
          %890 = dma.vmem_to_hbm [thread:$0]  %s885, 2048, %s883, %s869, 128, 128, 8
        $region36: #{cnn_block_forward.3} parent=31 // pred_fallthru
          _
      $region32: #{cnn_block_forward.3} parent=5 // pred_fallthru
        _
      %p891 = scmp.le.s32.totalorder 2, %s12
      // Predicated region
      $region37: #{cnn_block_forward.3} parent=5 // pred_check
        %p892 = pneg %p891
      $region38: #{cnn_block_forward.3} parent=5 // pred_check_branch
        %894 = sbr.rel (%p892) target = $region40
      $region39: #{cnn_block_forward.3} parent=5 // pred_region
        %s895 = ssub.s32 %s12, 2
        // Predicated region
        $region41: #{cnn_block_forward.3} parent=39 // pred_check
          %p896 = pneg %p125
        $region42: #{cnn_block_forward.3} parent=39 // pred_check_branch
          %898 = sbr.rel (%p896) target = $region44
        $region43: #{cnn_block_forward.3} parent=39 // pred_region
          %s899 = sand.u32 %s110, 1
          %s900 = scalar_lea.sflag [#allocation3], %s899
          %s901 = sand.u32 %s110, 1
          %s902 = smul.addr %s901, 128
          %s903 = scalar_lea.vmem [#allocation2], %s902
          %904 = dma.done %s900, 2048
        $region44: #{cnn_block_forward.3} parent=39 // pred_fallthru
          _
      $region40: #{cnn_block_forward.3} parent=5 // pred_fallthru
        _
    $region6: #{cnn_block_forward.3} parent=1 // loop_footer
      %s16 = sadd.s32 1, %s12
    $region7: #{cnn_block_forward.3} parent=1 // loop_footer_branch
      %11 = sbr.rel target = $region3
    $region8: #{cnn_block_forward.3} parent=1 // loop_exit
      _
    %905 = vsyncpa [#allocation3], 1
    %s906 = scalar_lea.sflag [#allocation3], 1
    %907 = vsyncpa %s906, 1

// kernel: cnn_block_forward.2
$region0: #{cnn_block_forward.2}
  #allocation0 [shape = 'u32[]', space=smem, size = 0x4, offset = 0x4, fixed_abs, tag = 'smem constant byte address 0x4 - core index']
  #allocation1 [shape = 'u32[144,128]{1,0:T(1,128)}', space=vmem, size = 0x12000, scoped, tag = 'internal scratch']
  %s0 = inlined_call_operand.vmem [shape: bf16[2,18,18,4], index: 0, kind: input, shape index: {}]
  %s1 = inlined_call_operand.vmem [shape: bf16[9,4,128], index: 1, kind: input, shape index: {}]
  %s2 = inlined_call_operand.vmem [shape: bf16[2,1,128,256], index: 2, kind: output, shape index: {0}]
  %s3 = inlined_call_operand.vmem [shape: f32[2,1,8,128], index: 3, kind: output, shape index: {1}]
  %s4 = inlined_call_operand.vmem [shape: f32[2,1,8,128], index: 4, kind: output, shape index: {2}]
  %5 = xla_tuple %s2, %s3, %s4
  %s6 = sld [smem:[#allocation0]]
  $region57: #{cnn_block_forward.2} parent=0
    _
  %s8 = ssub.s32 1, %s6
  %s9 = scalar_select 0, %s8, %s6
  loop: start=0, step=1, limit=4
  $region2: #{cnn_block_forward.2} parent=0 // loop_pre_header
    _
  $region3: #{cnn_block_forward.2} parent=0 // loop_header
    %s11 = sphi 0, %s15
    %p12 = scmp.ge.s32.totalorder %s11, 4
    %s18 = sphi 0, %s30
    %s19 = sphi 0, %s26
    %s20 = sphi 0, %s18
    %s21 = sphi 0, %s19
    %s22 = sphi 0, %s20
    %s23 = sphi 0, %s21
    %s33 = sphi 0, %s35
    %s36 = sphi 0, %s33
    %s37 = sphi 0, %s36
    %s53 = sphi 0, %s37
    %s57 = sphi 0, %s57
    %s59 = sphi 0, %s57
    %s60 = sphi 0, %s59
    %s74 = sphi 0, %s60
    %s82 = sphi 0, %s84
    %s85 = sphi 0, %s82
    %s86 = sphi 0, %s85
    %s102 = sphi 0, %s86
    %s110 = sphi 0, %s112
    %s113 = sphi 0, %s110
    %s114 = sphi 0, %s113
    %s130 = sphi 0, %s114
    %s138 = sphi 0, %s140
    %s141 = sphi 0, %s138
    %s142 = sphi 0, %s141
    %s158 = sphi 0, %s142
  $region4: #{cnn_block_forward.2} parent=0 // loop_header_branch
    %14 = sbr.rel (%p12) target = $region8
  $region5: #{cnn_block_forward.2} parent=0 // loop_body
    %s16 = ssub.s32 %s11, 1
    %s17 = ssub.s32 %s11, 2
    %s24 = sadd.s32 1, %s19
    %p25 = scmp.ge.s32.totalorder %s24, 1
    %s26 = scalar_select %p25, 0, %s24
    %s27 = sadd.s32 1, %s18
    %s28 = scalar_select %p25, %s27, %s18
    %p29 = scmp.ge.s32.totalorder %s28, 2
    %s30 = scalar_select %p29, 0, %s28
    %s31 = ssub.s32 %s18, %s30
    %p32 = scmp.eq.s32.totalorder %s31, 0
    %s34 = sadd.s32 %s33, 1
    %s35 = scalar_select %p32, %s33, %s34
    %p38 = pneg %p32
    %p39 = scmp.eq.s32.totalorder %s11, 1
    %p40 = por %p38, %p39
    %p41 = scmp.ne.s32.totalorder %s33, %s36
    %p42 = scmp.eq.s32.totalorder %s11, 0
    %p43 = por %p41, %p42
    %p44 = scmp.ne.s32.totalorder %s33, %s36
    %p45 = scmp.eq.s32.totalorder %s16, 1
    %p46 = por %p44, %p45
    %p47 = scmp.ne.s32.totalorder %s36, %s37
    %p48 = scmp.eq.s32.totalorder %s16, 0
    %p49 = por %p47, %p48
    %p50 = scmp.ne.s32.totalorder %s36, %s37
    %p51 = scmp.eq.s32.totalorder %s17, 1
    %p52 = por %p50, %p51
    %p54 = scmp.ne.s32.totalorder %s37, %s53
    %p55 = scmp.eq.s32.totalorder %s17, 0
    %p56 = por %p54, %p55
    %s58 = sadd.s32 %s57, 1
    %p61 = scmp.eq.s32.totalorder %s11, 1
    %p62 = scmp.ne.s32.totalorder %s57, %s59
    %p63 = scmp.eq.s32.totalorder %s11, 0
    %p64 = por %p62, %p63
    %p65 = scmp.ne.s32.totalorder %s57, %s59
    %p66 = scmp.eq.s32.totalorder %s16, 1
    %p67 = por %p65, %p66
    %p68 = scmp.ne.s32.totalorder %s59, %s60
    %p69 = scmp.eq.s32.totalorder %s16, 0
    %p70 = por %p68, %p69
    %p71 = scmp.ne.s32.totalorder %s59, %s60
    %p72 = scmp.eq.s32.totalorder %s17, 1
    %p73 = por %p71, %p72
    %p75 = scmp.ne.s32.totalorder %s60, %s74
    %p76 = scmp.eq.s32.totalorder %s17, 0
    %p77 = por %p75, %p76
    %s78 = ssub.s32 %s18, %s30
    %s79 = ssub.s32 %s19, %s26
    %s80 = sor.u32 %s78, %s79
    %p81 = scmp.eq.s32.totalorder %s80, 0
    %s83 = sadd.s32 %s82, 1
    %s84 = scalar_select %p81, %s82, %s83
    %p87 = pneg %p81
    %p88 = scmp.eq.s32.totalorder %s11, 1
    %p89 = por %p87, %p88
    %p90 = scmp.ne.s32.totalorder %s82, %s85
    %p91 = scmp.eq.s32.totalorder %s11, 0
    %p92 = por %p90, %p91
    %p93 = scmp.ne.s32.totalorder %s82, %s85
    %p94 = scmp.eq.s32.totalorder %s16, 1
    %p95 = por %p93, %p94
    %p96 = scmp.ne.s32.totalorder %s85, %s86
    %p97 = scmp.eq.s32.totalorder %s16, 0
    %p98 = por %p96, %p97
    %p99 = scmp.ne.s32.totalorder %s85, %s86
    %p100 = scmp.eq.s32.totalorder %s17, 1
    %p101 = por %p99, %p100
    %p103 = scmp.ne.s32.totalorder %s86, %s102
    %p104 = scmp.eq.s32.totalorder %s17, 0
    %p105 = por %p103, %p104
    %s106 = ssub.s32 %s18, %s30
    %s107 = ssub.s32 %s19, %s26
    %s108 = sor.u32 %s106, %s107
    %p109 = scmp.eq.s32.totalorder %s108, 0
    %s111 = sadd.s32 %s110, 1
    %s112 = scalar_select %p109, %s110, %s111
    %p115 = pneg %p109
    %p116 = scmp.eq.s32.totalorder %s11, 1
    %p117 = por %p115, %p116
    %p118 = scmp.ne.s32.totalorder %s110, %s113
    %p119 = scmp.eq.s32.totalorder %s11, 0
    %p120 = por %p118, %p119
    %p121 = scmp.ne.s32.totalorder %s110, %s113
    %p122 = scmp.eq.s32.totalorder %s16, 1
    %p123 = por %p121, %p122
    %p124 = scmp.ne.s32.totalorder %s113, %s114
    %p125 = scmp.eq.s32.totalorder %s16, 0
    %p126 = por %p124, %p125
    %p127 = scmp.ne.s32.totalorder %s113, %s114
    %p128 = scmp.eq.s32.totalorder %s17, 1
    %p129 = por %p127, %p128
    %p131 = scmp.ne.s32.totalorder %s114, %s130
    %p132 = scmp.eq.s32.totalorder %s17, 0
    %p133 = por %p131, %p132
    %s134 = ssub.s32 %s18, %s30
    %s135 = ssub.s32 %s19, %s26
    %s136 = sor.u32 %s134, %s135
    %p137 = scmp.eq.s32.totalorder %s136, 0
    %s139 = sadd.s32 %s138, 1
    %s140 = scalar_select %p137, %s138, %s139
    %p143 = pneg %p137
    %p144 = scmp.eq.s32.totalorder %s11, 1
    %p145 = por %p143, %p144
    %p146 = scmp.ne.s32.totalorder %s138, %s141
    %p147 = scmp.eq.s32.totalorder %s11, 0
    %p148 = por %p146, %p147
    %p149 = scmp.ne.s32.totalorder %s138, %s141
    %p150 = scmp.eq.s32.totalorder %s16, 1
    %p151 = por %p149, %p150
    %p152 = scmp.ne.s32.totalorder %s141, %s142
    %p153 = scmp.eq.s32.totalorder %s16, 0
    %p154 = por %p152, %p153
    %p155 = scmp.ne.s32.totalorder %s141, %s142
    %p156 = scmp.eq.s32.totalorder %s17, 1
    %p157 = por %p155, %p156
    %p159 = scmp.ne.s32.totalorder %s142, %s158
    %p160 = scmp.eq.s32.totalorder %s17, 0
    %p161 = por %p159, %p160
    %p162 = scmp.le.s32.totalorder 1, %s11
    %p163 = scmp.lt.s32.totalorder %s11, 3
    %p164 = pnand %p162, %p163
    %p165 = pneg %p164
    // Predicated region
    $region9: #{cnn_block_forward.2} parent=5 // pred_check
      _
    $region10: #{cnn_block_forward.2} parent=5 // pred_check_branch
      %167 = sbr.rel (%p164) target = $region12
    $region11: #{cnn_block_forward.2} parent=5 // pred_region
      %s168 = ssub.s32 %s11, 1
      // Predicated region
      $region13: #{cnn_block_forward.2} parent=11 // pred_check
        %p169 = pneg %p70
      $region14: #{cnn_block_forward.2} parent=11 // pred_check_branch
        %171 = sbr.rel (%p169) target = $region16
      $region15: #{cnn_block_forward.2} parent=11 // pred_region
        _
      $region16: #{cnn_block_forward.2} parent=11 // pred_fallthru
        _
    $region12: #{cnn_block_forward.2} parent=5 // pred_fallthru
      _
    %p172 = scmp.lt.s32.totalorder %s11, 2
    // Predicated region
    $region17: #{cnn_block_forward.2} parent=5 // pred_check
      %p173 = pneg %p172
    $region18: #{cnn_block_forward.2} parent=5 // pred_check_branch
      %175 = sbr.rel (%p173) target = $region20
    $region19: #{cnn_block_forward.2} parent=5 // pred_region
      // Predicated region
      $region21: #{cnn_block_forward.2} parent=19 // pred_check
        %p176 = pneg %p43
      $region22: #{cnn_block_forward.2} parent=19 // pred_check_branch
        %178 = sbr.rel (%p176) target = $region24
      $region23: #{cnn_block_forward.2} parent=19 // pred_region
        %p179 = scmp.lt.s32.totalorder %s18, 1
        %s180 = scalar_select %p179, %s18, 1
        %s181 = smul.addr %s180, 54
        %s182 = smul.addr %s181, 4
        %s183 = scalar_lea.vmem %s0, %s182
      $region24: #{cnn_block_forward.2} parent=19 // pred_fallthru
        _
    $region20: #{cnn_block_forward.2} parent=5 // pred_fallthru
      _
    %p184 = scmp.le.s32.totalorder 1, %s11
    %p185 = scmp.lt.s32.totalorder %s11, 3
    %p186 = pnand %p184, %p185
    %p187 = pneg %p186
    // Predicated region
    $region25: #{cnn_block_forward.2} parent=5 // pred_check
      _
    $region26: #{cnn_block_forward.2} parent=5 // pred_check_branch
      %189 = sbr.rel (%p186) target = $region28
    $region27: #{cnn_block_forward.2} parent=5 // pred_region
      %s190 = ssub.s32 %s11, 1
      %p191 = scmp.lt.s32.totalorder %s20, 1
      %s192 = scalar_select %p191, %s20, 1
      %s193 = smul.addr %s192, 54
      %s194 = smul.addr %s193, 4
      %s195 = scalar_lea.vmem %s0, %s194
      %p196 = pneg %p49
      %p197 = pneg %p46
      %p198 = pneg %p70
      %p199 = pneg %p67
      %p200 = pneg %p98
      %p201 = pneg %p95
      %p202 = scmp.lt.s32.totalorder %s20, 1
      %s203 = scalar_select %p202, %s20, 1
      %p204 = scmp.lt.s32.totalorder %s21, 0
      %s205 = scalar_select %p204, %s21, 0
      %s206 = smul.addr %s205, 32
      %s207 = smul.addr %s203, 32
      %s208 = sadd.s32 %s206, %s207
      %s209 = smul.addr %s208, 4
      %s210 = scalar_lea.vmem %s2, %s209
      %p211 = pneg %p126
      %p212 = pneg %p123
      %p213 = scmp.lt.s32.totalorder %s20, 1
      %s214 = scalar_select %p213, %s20, 1
      %p215 = scmp.lt.s32.totalorder %s21, 0
      %s216 = scalar_select %p215, %s21, 0
      %s217 = sadd.s32 %s216, %s214
      %s218 = smul.addr %s217, 8
      %s219 = scalar_lea.vmem %s3, %s218
      %p220 = pneg %p154
      %p221 = pneg %p151
      %p222 = scmp.lt.s32.totalorder %s20, 1
      %s223 = scalar_select %p222, %s20, 1
      %p224 = scmp.lt.s32.totalorder %s21, 0
      %s225 = scalar_select %p224, %s21, 0
      %s226 = sadd.s32 %s225, %s223
      %s227 = smul.addr %s226, 8
      %s228 = scalar_lea.vmem %s4, %s227
      %p229 = scmp.lt.s32.totalorder %s20, 1
      %s230 = scalar_select %p229, %s20, 1
      %s231 = smul.addr %s230, 54
      %s232 = smul.addr %s231, 4
      %s233 = scalar_lea.vmem %s0, %s232
      %p234 = scmp.lt.s32.totalorder %s20, 1
      %s235 = scalar_select %p234, %s20, 1
      %p236 = scmp.lt.s32.totalorder %s21, 0
      %s237 = scalar_select %p236, %s21, 0
      %s238 = smul.addr %s237, 32
      %s239 = smul.addr %s235, 32
      %s240 = sadd.s32 %s238, %s239
      %s241 = smul.addr %s240, 4
      %s242 = scalar_lea.vmem %s2, %s241
      %p243 = scmp.lt.s32.totalorder %s20, 1
      %s244 = scalar_select %p243, %s20, 1
      %p245 = scmp.lt.s32.totalorder %s21, 0
      %s246 = scalar_select %p245, %s21, 0
      %s247 = sadd.s32 %s246, %s244
      %s248 = smul.addr %s247, 8
      %s249 = scalar_lea.vmem %s3, %s248
      %p250 = scmp.lt.s32.totalorder %s20, 1
      %s251 = scalar_select %p250, %s20, 1
      %p252 = scmp.lt.s32.totalorder %s21, 0
      %s253 = scalar_select %p252, %s21, 0
      %s254 = sadd.s32 %s253, %s251
      %s255 = smul.addr %s254, 8
      %s256 = scalar_lea.vmem %s4, %s255
      %s258 = smul.u32 %s21, 16
      %s259 = smul.u32 %s258, 3
      %s260 = smul.addr %s259, 4
      %s261 = scalar_lea.vmem %s233, %s260
      %v262 = vld [vmem:[%s261] sm:$0xf]
      %v263 = vld [vmem:[%s261 + $0x4] sm:$0xf]
      %v264 = vld [vmem:[%s261 + $0x8] sm:$0x1]
      %v265 = vld [vmem:[%s261 + $0xc] sm:$0xf]
      %v266 = vld [vmem:[%s261 + $0x10] sm:$0xf]
      %v267 = vld [vmem:[%s261 + $0x14] sm:$0x1]
      %v268 = vld [vmem:[%s261 + $0x18] sm:$0xf]
      %v269 = vld [vmem:[%s261 + $0x1c] sm:$0xf]
      %v270 = vld [vmem:[%s261 + $0x20] sm:$0x1]
      %v271 = vld [vmem:[%s261 + $0x24] sm:$0xf]
      %v272 = vld [vmem:[%s261 + $0x28] sm:$0xf]
      %v273 = vld [vmem:[%s261 + $0x2c] sm:$0x1]
      %v274 = vld [vmem:[%s261 + $0x30] sm:$0xf]
      %v275 = vld [vmem:[%s261 + $0x34] sm:$0xf]
      %v276 = vld [vmem:[%s261 + $0x38] sm:$0x1]
      %v277 = vld [vmem:[%s261 + $0x3c] sm:$0xf]
      %v278 = vld [vmem:[%s261 + $0x40] sm:$0xf]
      %v279 = vld [vmem:[%s261 + $0x44] sm:$0x1]
      %v280 = vld [vmem:[%s261 + $0x48] sm:$0xf]
      %v281 = vld [vmem:[%s261 + $0x4c] sm:$0xf]
      %v282 = vld [vmem:[%s261 + $0x50] sm:$0x1]
      %v283 = vld [vmem:[%s261 + $0x54] sm:$0xf]
      %v284 = vld [vmem:[%s261 + $0x58] sm:$0xf]
      %v285 = vld [vmem:[%s261 + $0x5c] sm:$0x1]
      %v286 = vld [vmem:[%s261 + $0x60] sm:$0xf]
      %v287 = vld [vmem:[%s261 + $0x64] sm:$0xf]
      %v288 = vld [vmem:[%s261 + $0x68] sm:$0x1]
      %v289 = vld [vmem:[%s261 + $0x6c] sm:$0xf]
      %v290 = vld [vmem:[%s261 + $0x70] sm:$0xf]
      %v291 = vld [vmem:[%s261 + $0x74] sm:$0x1]
      %v292 = vld [vmem:[%s261 + $0x78] sm:$0xf]
      %v293 = vld [vmem:[%s261 + $0x7c] sm:$0xf]
      %v294 = vld [vmem:[%s261 + $0x80] sm:$0x1]
      %v295 = vld [vmem:[%s261 + $0x84] sm:$0xf]
      %v296 = vld [vmem:[%s261 + $0x88] sm:$0xf]
      %v297 = vld [vmem:[%s261 + $0x8c] sm:$0x1]
      %v298 = vld [vmem:[%s261 + $0x90] sm:$0xf]
      %v299 = vld [vmem:[%s261 + $0x94] sm:$0xf]
      %v300 = vld [vmem:[%s261 + $0x98] sm:$0x1]
      %v301 = vld [vmem:[%s261 + $0x9c] sm:$0xf]
      %v302 = vld [vmem:[%s261 + $0xa0] sm:$0xf]
      %v303 = vld [vmem:[%s261 + $0xa4] sm:$0x1]
      %v304 = vld [vmem:[%s261 + $0xa8] sm:$0xf]
      %v305 = vld [vmem:[%s261 + $0xac] sm:$0xf]
      %v306 = vld [vmem:[%s261 + $0xb0] sm:$0x1]
      %v307 = vld [vmem:[%s261 + $0xb4] sm:$0xf]
      %v308 = vld [vmem:[%s261 + $0xb8] sm:$0xf]
      %v309 = vld [vmem:[%s261 + $0xbc] sm:$0x1]
      %v310 = vld [vmem:[%s261 + $0xc0] sm:$0xf]
      %v311 = vld [vmem:[%s261 + $0xc4] sm:$0xf]
      %v312 = vld [vmem:[%s261 + $0xc8] sm:$0x1]
      %v313 = vld [vmem:[%s261 + $0xcc] sm:$0xf]
      %v314 = vld [vmem:[%s261 + $0xd0] sm:$0xf]
      %v315 = vld [vmem:[%s261 + $0xd4] sm:$0x1]
      %v316 = vld [vmem:[%s1] sm:$0x3]
      %vm317 = vsmask.f32 3328
      %vm318 = vsmask.f32 7440
      %vm319 = vmor %vm317, %vm318
      %v321 = vshrl.u32 %v262, 16
      %v323 = vrot.slane %v321, 4
      %v324 = vshll.u32 %v262, 16
      %v326 = vrot.slane %v324, 5
      %v327 = vor.u32 %v323, %v326
      %v328 = vrot.slane %v327, 4
      %v330 = vshll.u32 %v263, 16
      %v332 = vrot.slane %v330, 5
      %v333 = vsel %vm319, %v328, %v332
      %v334 = vshrl.u32 %v263, 16
      %v336 = vrot.slane %v334, 4
      %v337 = vor.u32 %v336, %v332
      %v338 = vrot.slane %v337, 4
      %v340 = vshll.u32 %v264, 16
      %v342 = vrot.slane %v340, 5
      %v343 = vsel %vm319, %v338, %v342
      %v345 = vshrl.u32 %v265, 16
      %v347 = vrot.slane %v345, 4
      %v348 = vshll.u32 %v265, 16
      %v350 = vrot.slane %v348, 5
      %v351 = vor.u32 %v347, %v350
      %v352 = vrot.slane %v351, 4
      %v354 = vshll.u32 %v266, 16
      %v356 = vrot.slane %v354, 5
      %v357 = vsel %vm319, %v352, %v356
      %v358 = vshrl.u32 %v266, 16
      %v360 = vrot.slane %v358, 4
      %v361 = vor.u32 %v360, %v356
      %v362 = vrot.slane %v361, 4
      %v364 = vshll.u32 %v267, 16
      %v366 = vrot.slane %v364, 5
      %v367 = vsel %vm319, %v362, %v366
      %v369 = vshrl.u32 %v268, 16
      %v371 = vrot.slane %v369, 4
      %v372 = vshll.u32 %v268, 16
      %v374 = vrot.slane %v372, 5
      %v375 = vor.u32 %v371, %v374
      %v376 = vrot.slane %v375, 4
      %v378 = vshll.u32 %v269, 16
      %v380 = vrot.slane %v378, 5
      %v381 = vsel %vm319, %v376, %v380
      %v382 = vshrl.u32 %v269, 16
      %v384 = vrot.slane %v382, 4
      %v385 = vor.u32 %v384, %v380
      %v386 = vrot.slane %v385, 4
      %v388 = vshll.u32 %v270, 16
      %v390 = vrot.slane %v388, 5
      %v391 = vsel %vm319, %v386, %v390
      %v393 = vshrl.u32 %v271, 16
      %v395 = vrot.slane %v393, 4
      %v396 = vshll.u32 %v271, 16
      %v398 = vrot.slane %v396, 5
      %v399 = vor.u32 %v395, %v398
      %v400 = vrot.slane %v399, 4
      %v402 = vshll.u32 %v272, 16
      %v404 = vrot.slane %v402, 5
      %v405 = vsel %vm319, %v400, %v404
      %v406 = vshrl.u32 %v272, 16
      %v408 = vrot.slane %v406, 4
      %v409 = vor.u32 %v408, %v404
      %v410 = vrot.slane %v409, 4
      %v412 = vshll.u32 %v273, 16
      %v414 = vrot.slane %v412, 5
      %v415 = vsel %vm319, %v410, %v414
      %v417 = vshrl.u32 %v274, 16
      %v419 = vrot.slane %v417, 4
      %v420 = vshll.u32 %v274, 16
      %v422 = vrot.slane %v420, 5
      %v423 = vor.u32 %v419, %v422
      %v424 = vrot.slane %v423, 4
      %v426 = vshll.u32 %v275, 16
      %v428 = vrot.slane %v426, 5
      %v429 = vsel %vm319, %v424, %v428
      %v430 = vshrl.u32 %v275, 16
      %v432 = vrot.slane %v430, 4
      %v433 = vor.u32 %v432, %v428
      %v434 = vrot.slane %v433, 4
      %v436 = vshll.u32 %v276, 16
      %v438 = vrot.slane %v436, 5
      %v439 = vsel %vm319, %v434, %v438
      %v441 = vshrl.u32 %v277, 16
      %v443 = vrot.slane %v441, 4
      %v444 = vshll.u32 %v277, 16
      %v446 = vrot.slane %v444, 5
      %v447 = vor.u32 %v443, %v446
      %v448 = vrot.slane %v447, 4
      %v450 = vshll.u32 %v278, 16
      %v452 = vrot.slane %v450, 5
      %v453 = vsel %vm319, %v448, %v452
      %v454 = vshrl.u32 %v278, 16
      %v456 = vrot.slane %v454, 4
      %v457 = vor.u32 %v456, %v452
      %v458 = vrot.slane %v457, 4
      %v460 = vshll.u32 %v279, 16
      %v462 = vrot.slane %v460, 5
      %v463 = vsel %vm319, %v458, %v462
      %v465 = vshrl.u32 %v280, 16
      %v467 = vrot.slane %v465, 4
      %v468 = vshll.u32 %v280, 16
      %v470 = vrot.slane %v468, 5
      %v471 = vor.u32 %v467, %v470
      %v472 = vrot.slane %v471, 4
      %v474 = vshll.u32 %v281, 16
      %v476 = vrot.slane %v474, 5
      %v477 = vsel %vm319, %v472, %v476
      %v478 = vshrl.u32 %v281, 16
      %v480 = vrot.slane %v478, 4
      %v481 = vor.u32 %v480, %v476
      %v482 = vrot.slane %v481, 4
      %v484 = vshll.u32 %v282, 16
      %v486 = vrot.slane %v484, 5
      %v487 = vsel %vm319, %v482, %v486
      %v489 = vshrl.u32 %v283, 16
      %v491 = vrot.slane %v489, 4
      %v492 = vshll.u32 %v283, 16
      %v494 = vrot.slane %v492, 5
      %v495 = vor.u32 %v491, %v494
      %v496 = vrot.slane %v495, 4
      %v498 = vshll.u32 %v284, 16
      %v500 = vrot.slane %v498, 5
      %v501 = vsel %vm319, %v496, %v500
      %v502 = vshrl.u32 %v284, 16
      %v504 = vrot.slane %v502, 4
      %v505 = vor.u32 %v504, %v500
      %v506 = vrot.slane %v505, 4
      %v508 = vshll.u32 %v285, 16
      %v510 = vrot.slane %v508, 5
      %v511 = vsel %vm319, %v506, %v510
      %v513 = vshrl.u32 %v286, 16
      %v515 = vrot.slane %v513, 4
      %v516 = vshll.u32 %v286, 16
      %v518 = vrot.slane %v516, 5
      %v519 = vor.u32 %v515, %v518
      %v520 = vrot.slane %v519, 4
      %v522 = vshll.u32 %v287, 16
      %v524 = vrot.slane %v522, 5
      %v525 = vsel %vm319, %v520, %v524
      %v526 = vshrl.u32 %v287, 16
      %v528 = vrot.slane %v526, 4
      %v529 = vor.u32 %v528, %v524
      %v530 = vrot.slane %v529, 4
      %v532 = vshll.u32 %v288, 16
      %v534 = vrot.slane %v532, 5
      %v535 = vsel %vm319, %v530, %v534
      %v537 = vshrl.u32 %v289, 16
      %v539 = vrot.slane %v537, 4
      %v540 = vshll.u32 %v289, 16
      %v542 = vrot.slane %v540, 5
      %v543 = vor.u32 %v539, %v542
      %v544 = vrot.slane %v543, 4
      %v546 = vshll.u32 %v290, 16
      %v548 = vrot.slane %v546, 5
      %v549 = vsel %vm319, %v544, %v548
      %v550 = vshrl.u32 %v290, 16
      %v552 = vrot.slane %v550, 4
      %v553 = vor.u32 %v552, %v548
      %v554 = vrot.slane %v553, 4
      %v556 = vshll.u32 %v291, 16
      %v558 = vrot.slane %v556, 5
      %v559 = vsel %vm319, %v554, %v558
      %v561 = vshrl.u32 %v292, 16
      %v563 = vrot.slane %v561, 4
      %v564 = vshll.u32 %v292, 16
      %v566 = vrot.slane %v564, 5
      %v567 = vor.u32 %v563, %v566
      %v568 = vrot.slane %v567, 4
      %v570 = vshll.u32 %v293, 16
      %v572 = vrot.slane %v570, 5
      %v573 = vsel %vm319, %v568, %v572
      %v574 = vshrl.u32 %v293, 16
      %v576 = vrot.slane %v574, 4
      %v577 = vor.u32 %v576, %v572
      %v578 = vrot.slane %v577, 4
      %v580 = vshll.u32 %v294, 16
      %v582 = vrot.slane %v580, 5
      %v583 = vsel %vm319, %v578, %v582
      %v585 = vshrl.u32 %v295, 16
      %v587 = vrot.slane %v585, 4
      %v588 = vshll.u32 %v295, 16
      %v590 = vrot.slane %v588, 5
      %v591 = vor.u32 %v587, %v590
      %v592 = vrot.slane %v591, 4
      %v594 = vshll.u32 %v296, 16
      %v596 = vrot.slane %v594, 5
      %v597 = vsel %vm319, %v592, %v596
      %v598 = vshrl.u32 %v296, 16
      %v600 = vrot.slane %v598, 4
      %v601 = vor.u32 %v600, %v596
      %v602 = vrot.slane %v601, 4
      %v604 = vshll.u32 %v297, 16
      %v606 = vrot.slane %v604, 5
      %v607 = vsel %vm319, %v602, %v606
      %v609 = vshrl.u32 %v298, 16
      %v611 = vrot.slane %v609, 4
      %v612 = vshll.u32 %v298, 16
      %v614 = vrot.slane %v612, 5
      %v615 = vor.u32 %v611, %v614
      %v616 = vrot.slane %v615, 4
      %v618 = vshll.u32 %v299, 16
      %v620 = vrot.slane %v618, 5
      %v621 = vsel %vm319, %v616, %v620
      %v622 = vshrl.u32 %v299, 16
      %v624 = vrot.slane %v622, 4
      %v625 = vor.u32 %v624, %v620
      %v626 = vrot.slane %v625, 4
      %v628 = vshll.u32 %v300, 16
      %v630 = vrot.slane %v628, 5
      %v631 = vsel %vm319, %v626, %v630
      %v633 = vshrl.u32 %v301, 16
      %v635 = vrot.slane %v633, 4
      %v636 = vshll.u32 %v301, 16
      %v638 = vrot.slane %v636, 5
      %v639 = vor.u32 %v635, %v638
      %v640 = vrot.slane %v639, 4
      %v642 = vshll.u32 %v302, 16
      %v644 = vrot.slane %v642, 5
      %v645 = vsel %vm319, %v640, %v644
      %v646 = vshrl.u32 %v302, 16
      %v648 = vrot.slane %v646, 4
      %v649 = vor.u32 %v648, %v644
      %v650 = vrot.slane %v649, 4
      %v652 = vshll.u32 %v303, 16
      %v654 = vrot.slane %v652, 5
      %v655 = vsel %vm319, %v650, %v654
      %v657 = vshrl.u32 %v304, 16
      %v659 = vrot.slane %v657, 4
      %v660 = vshll.u32 %v304, 16
      %v662 = vrot.slane %v660, 5
      %v663 = vor.u32 %v659, %v662
      %v664 = vrot.slane %v663, 4
      %v666 = vshll.u32 %v305, 16
      %v668 = vrot.slane %v666, 5
      %v669 = vsel %vm319, %v664, %v668
      %v670 = vshrl.u32 %v305, 16
      %v672 = vrot.slane %v670, 4
      %v673 = vor.u32 %v672, %v668
      %v674 = vrot.slane %v673, 4
      %v676 = vshll.u32 %v306, 16
      %v678 = vrot.slane %v676, 5
      %v679 = vsel %vm319, %v674, %v678
      %v681 = vshrl.u32 %v307, 16
      %v683 = vrot.slane %v681, 4
      %v684 = vshll.u32 %v307, 16
      %v686 = vrot.slane %v684, 5
      %v687 = vor.u32 %v683, %v686
      %v688 = vrot.slane %v687, 4
      %v690 = vshll.u32 %v308, 16
      %v692 = vrot.slane %v690, 5
      %v693 = vsel %vm319, %v688, %v692
      %v694 = vshrl.u32 %v308, 16
      %v696 = vrot.slane %v694, 4
      %v697 = vor.u32 %v696, %v692
      %v698 = vrot.slane %v697, 4
      %v700 = vshll.u32 %v309, 16
      %v702 = vrot.slane %v700, 5
      %v703 = vsel %vm319, %v698, %v702
      %s704 = scalar_lea.vmem %s1, 2
      %v705 = vld [vmem:[%s704] sm:$0x3]
      %v706 = vunpack.c.l.b16 %v333
      %v707 = vunpack.c.l.b16 %v343
      %v708 = vunpack.c.l.b16 %v357
      %v709 = vunpack.c.l.b16 %v367
      %v710 = vunpack.c.l.b16 %v381
      %v711 = vunpack.c.l.b16 %v391
      %v712 = vunpack.c.l.b16 %v405
      %v713 = vunpack.c.l.b16 %v415
      %v714 = vunpack.c.l.b16 %v429
      %v715 = vunpack.c.l.b16 %v439
      %v716 = vunpack.c.l.b16 %v453
      %v717 = vunpack.c.l.b16 %v463
      %v718 = vunpack.c.l.b16 %v477
      %v719 = vunpack.c.l.b16 %v487
      %v720 = vunpack.c.l.b16 %v501
      %v721 = vunpack.c.l.b16 %v511
      %v722 = vunpack.c.l.b16 %v525
      %v723 = vunpack.c.l.b16 %v535
      %v724 = vunpack.c.l.b16 %v549
      %v725 = vunpack.c.l.b16 %v559
      %v726 = vunpack.c.l.b16 %v573
      %v727 = vunpack.c.l.b16 %v583
      %v728 = vunpack.c.l.b16 %v597
      %v729 = vunpack.c.l.b16 %v607
      %v730 = vunpack.c.l.b16 %v621
      %v731 = vunpack.c.l.b16 %v631
      %v732 = vunpack.c.l.b16 %v645
      %v733 = vunpack.c.l.b16 %v655
      %v734 = vunpack.c.l.b16 %v669
      %v735 = vunpack.c.l.b16 %v679
      %v736 = vunpack.c.l.b16 %v693
      %v737 = vunpack.c.l.b16 %v703
      %v738 = vpack.c.b16 %v707, %v706
      %v739 = vpack.c.b16 %v709, %v708
      %v740 = vpack.c.b16 %v711, %v710
      %v741 = vpack.c.b16 %v713, %v712
      %v742 = vpack.c.b16 %v715, %v714
      %v743 = vpack.c.b16 %v717, %v716
      %v744 = vpack.c.b16 %v719, %v718
      %v745 = vpack.c.b16 %v721, %v720
      %v746 = vpack.c.b16 %v723, %v722
      %v747 = vpack.c.b16 %v725, %v724
      %v748 = vpack.c.b16 %v727, %v726
      %v749 = vpack.c.b16 %v729, %v728
      %v750 = vpack.c.b16 %v731, %v730
      %v751 = vpack.c.b16 %v733, %v732
      %v752 = vpack.c.b16 %v735, %v734
      %v753 = vpack.c.b16 %v737, %v736
      %vm754 = vcmask 31744
      %v756 = vsel %vm754, %v738, 0
      %v759 = vsel %vm754, %v739, 0
      %v762 = vsel %vm754, %v740, 0
      %v765 = vsel %vm754, %v741, 0
      %v768 = vsel %vm754, %v742, 0
      %v771 = vsel %vm754, %v743, 0
      %v774 = vsel %vm754, %v744, 0
      %v777 = vsel %vm754, %v745, 0
      %v780 = vsel %vm754, %v746, 0
      %v783 = vsel %vm754, %v747, 0
      %v786 = vsel %vm754, %v748, 0
      %v789 = vsel %vm754, %v749, 0
      %v792 = vsel %vm754, %v750, 0
      %v795 = vsel %vm754, %v751, 0
      %v798 = vsel %vm754, %v752, 0
      %v801 = vsel %vm754, %v753, 0
      %vm803 = vcmask 1041408
      %v805 = vsel %vm803, %v705, 0
      %807 = vmatprep.subr.bf16.mxu0 0
      %808 = vmatpush1.bf16.msra.mxu0 %v805
      %809 = vmatprep.subr.bf16.mxu0 0
      %810 = vmatpush1.bf16.msra.mxu0 0
      %811 = vmatprep.subr.bf16.mxu0 0
      %812 = vmatpush1.bf16.msra.mxu0 0
      %813 = vmatprep.subr.bf16.mxu0 0
      %814 = vmatpush1.bf16.msra.mxu0 0
      %815 = vmatprep.subr.bf16.mxu0 0
      %816 = vmatpush1.bf16.msra.mxu0 0
      %817 = vmatprep.subr.bf16.mxu0 0
      %818 = vmatpush1.bf16.msra.mxu0 0
      %819 = vmatprep.subr.bf16.mxu0 0
      %820 = vmatpush1.bf16.msra.mxu0 0
      %821 = vmatprep.subr.bf16.mxu0 0
      %822 = vmatpush1.bf16.msra.mxu0 0
      %823 = vmatprep.subr.bf16.mxu0 0
      %824 = vmatpush1.bf16.msra.mxu0 0
      %825 = vmatprep.subr.bf16.mxu0 0
      %826 = vmatpush1.bf16.msra.mxu0 0
      %827 = vmatprep.subr.bf16.mxu0 0
      %828 = vmatpush1.bf16.msra.mxu0 0
      %829 = vmatprep.subr.bf16.mxu0 0
      %830 = vmatpush1.bf16.msra.mxu0 0
      %831 = vmatprep.subr.bf16.mxu0 0
      %832 = vmatpush1.bf16.msra.mxu0 0
      %833 = vmatprep.subr.bf16.mxu0 0
      %834 = vmatpush1.bf16.msra.mxu0 0
      %835 = vmatprep.subr.bf16.mxu0 0
      %836 = vmatpush1.bf16.msra.mxu0 0
      %837 = vmatprep.subr.bf16.mxu0 0
      %838 = vmatpush1.bf16.msra.mxu0 0
      %839 = vmatprep.mubr.bf16.mxu0 0
      %840 = vmatmul.mubr.bf16.gmra.mrb[0].mxu0 %v756
      %v841 = vpop.f32.mrb[0].mxu0
      %v842 = vadd.f32 0.0, %v841
      %v843 = vpop.f32.mrb[0].mxu0
      %v844 = vpop.f32.mrb[0].mxu0
      %v845 = vadd.f32 0.0, %v844
      %v846 = vpop.f32.mrb[0].mxu0
      %847 = vmatprep.mubr.bf16.mxu0 0
      %848 = vmatmul.mubr.bf16.gmra.mrb[0].mxu0 %v759
      %v849 = vpop.f32.mrb[0].mxu0
      %v850 = vadd.f32 0.0, %v849
      %v851 = vpop.f32.mrb[0].mxu0
      %v852 = vpop.f32.mrb[0].mxu0
      %v853 = vadd.f32 0.0, %v852
      %v854 = vpop.f32.mrb[0].mxu0
      %855 = vmatprep.mubr.bf16.mxu0 0
      %856 = vmatmul.mubr.bf16.gmra.mrb[0].mxu0 %v762
      %v857 = vpop.f32.mrb[0].mxu0
      %v858 = vadd.f32 0.0, %v857
      %v859 = vpop.f32.mrb[0].mxu0
      %v860 = vpop.f32.mrb[0].mxu0
      %v861 = vadd.f32 0.0, %v860
      %v862 = vpop.f32.mrb[0].mxu0
      %863 = vmatprep.mubr.bf16.mxu0 0
      %864 = vmatmul.mubr.bf16.gmra.mrb[0].mxu0 %v765
      %v865 = vpop.f32.mrb[0].mxu0
      %v866 = vadd.f32 0.0, %v865
      %v867 = vpop.f32.mrb[0].mxu0
      %v868 = vpop.f32.mrb[0].mxu0
      %v869 = vadd.f32 0.0, %v868
      %v870 = vpop.f32.mrb[0].mxu0
      %871 = vmatprep.mubr.bf16.mxu0 0
      %872 = vmatmul.mubr.bf16.gmra.mrb[0].mxu0 %v768
      %v873 = vpop.f32.mrb[0].mxu0
      %v874 = vadd.f32 0.0, %v873
      %v875 = vpop.f32.mrb[0].mxu0
      %v876 = vpop.f32.mrb[0].mxu0
      %v877 = vadd.f32 0.0, %v876
      %v878 = vpop.f32.mrb[0].mxu0
      %879 = vmatprep.mubr.bf16.mxu0 0
      %880 = vmatmul.mubr.bf16.gmra.mrb[0].mxu0 %v771
      %v881 = vpop.f32.mrb[0].mxu0
      %v882 = vadd.f32 0.0, %v881
      %v883 = vpop.f32.mrb[0].mxu0
      %v884 = vpop.f32.mrb[0].mxu0
      %v885 = vadd.f32 0.0, %v884
      %v886 = vpop.f32.mrb[0].mxu0
      %887 = vmatprep.mubr.bf16.mxu0 0
      %888 = vmatmul.mubr.bf16.gmra.mrb[0].mxu0 %v774
      %v889 = vpop.f32.mrb[0].mxu0
      %v890 = vadd.f32 0.0, %v889
      %v891 = vpop.f32.mrb[0].mxu0
      %v892 = vpop.f32.mrb[0].mxu0
      %v893 = vadd.f32 0.0, %v892
      %v894 = vpop.f32.mrb[0].mxu0
      %895 = vmatprep.mubr.bf16.mxu0 0
      %896 = vmatmul.mubr.bf16.gmra.mrb[0].mxu0 %v777
      %v897 = vpop.f32.mrb[0].mxu0
      %v898 = vadd.f32 0.0, %v897
      %v899 = vpop.f32.mrb[0].mxu0
      %v900 = vpop.f32.mrb[0].mxu0
      %v901 = vadd.f32 0.0, %v900
      %v902 = vpop.f32.mrb[0].mxu0
      %903 = vmatprep.mubr.bf16.mxu0 0
      %904 = vmatmul.mubr.bf16.gmra.mrb[0].mxu0 %v780
      %v905 = vpop.f32.mrb[0].mxu0
      %v906 = vadd.f32 0.0, %v905
      %v907 = vpop.f32.mrb[0].mxu0
      %v908 = vpop.f32.mrb[0].mxu0
      %v909 = vadd.f32 0.0, %v908
      %v910 = vpop.f32.mrb[0].mxu0
      %911 = vmatprep.mubr.bf16.mxu0 0
      %912 = vmatmul.mubr.bf16.gmra.mrb[0].mxu0 %v783
      %v913 = vpop.f32.mrb[0].mxu0
      %v914 = vadd.f32 0.0, %v913
      %v915 = vpop.f32.mrb[0].mxu0
      %v916 = vpop.f32.mrb[0].mxu0
      %v917 = vadd.f32 0.0, %v916
      %v918 = vpop.f32.mrb[0].mxu0
      %919 = vmatprep.mubr.bf16.mxu0 0
      %920 = vmatmul.mubr.bf16.gmra.mrb[0].mxu0 %v786
      %v921 = vpop.f32.mrb[0].mxu0
      %v922 = vadd.f32 0.0, %v921
      %v923 = vpop.f32.mrb[0].mxu0
      %v924 = vpop.f32.mrb[0].mxu0
      %v925 = vadd.f32 0.0, %v924
      %v926 = vpop.f32.mrb[0].mxu0
      %927 = vmatprep.mubr.bf16.mxu0 0
      %928 = vmatmul.mubr.bf16.gmra.mrb[0].mxu0 %v789
      %v929 = vpop.f32.mrb[0].mxu0
      %v930 = vadd.f32 0.0, %v929
      %v931 = vpop.f32.mrb[0].mxu0
      %v932 = vpop.f32.mrb[0].mxu0
      %v933 = vadd.f32 0.0, %v932
      %v934 = vpop.f32.mrb[0].mxu0
      %935 = vmatprep.mubr.bf16.mxu0 0
      %936 = vmatmul.mubr.bf16.gmra.mrb[0].mxu0 %v792
      %v937 = vpop.f32.mrb[0].mxu0
      %v938 = vadd.f32 0.0, %v937
      %v939 = vpop.f32.mrb[0].mxu0
      %v940 = vpop.f32.mrb[0].mxu0
      %v941 = vadd.f32 0.0, %v940
      %v942 = vpop.f32.mrb[0].mxu0
      %943 = vmatprep.mubr.bf16.mxu0 0
      %944 = vmatmul.mubr.bf16.gmra.mrb[0].mxu0 %v795
      %v945 = vpop.f32.mrb[0].mxu0
      %v946 = vadd.f32 0.0, %v945
      %v947 = vpop.f32.mrb[0].mxu0
      %v948 = vpop.f32.mrb[0].mxu0
      %v949 = vadd.f32 0.0, %v948
      %v950 = vpop.f32.mrb[0].mxu0
      %951 = vmatprep.mubr.bf16.mxu0 0
      %952 = vmatmul.mubr.bf16.gmra.mrb[0].mxu0 %v798
      %v953 = vpop.f32.mrb[0].mxu0
      %v954 = vadd.f32 0.0, %v953
      %v955 = vpop.f32.mrb[0].mxu0
      %v956 = vpop.f32.mrb[0].mxu0
      %v957 = vadd.f32 0.0, %v956
      %v958 = vpop.f32.mrb[0].mxu0
      %959 = vmatprep.mubr.bf16.mxu0 0
      %960 = vmatmul.mubr.bf16.gmra.mrb[0].mxu0 %v801
      %v961 = vpop.f32.mrb[0].mxu0
      %v962 = vadd.f32 0.0, %v961
      %v963 = vpop.f32.mrb[0].mxu0
      %v964 = vpop.f32.mrb[0].mxu0
      %v965 = vadd.f32 0.0, %v964
      %v966 = vpop.f32.mrb[0].mxu0
      %967 = vdwg.mxu0
      %v1000 = vunpack.c.l.b16 %v262
      %v1001 = vunpack.c.l.b16 %v263
      %v1002 = vunpack.c.l.b16 %v265
      %v1003 = vunpack.c.l.b16 %v266
      %v1004 = vunpack.c.l.b16 %v268
      %v1005 = vunpack.c.l.b16 %v269
      %v1006 = vunpack.c.l.b16 %v271
      %v1007 = vunpack.c.l.b16 %v272
      %v1008 = vunpack.c.l.b16 %v274
      %v1009 = vunpack.c.l.b16 %v275
      %v1010 = vunpack.c.l.b16 %v277
      %v1011 = vunpack.c.l.b16 %v278
      %v1012 = vunpack.c.l.b16 %v280
      %v1013 = vunpack.c.l.b16 %v281
      %v1014 = vunpack.c.l.b16 %v283
      %v1015 = vunpack.c.l.b16 %v284
      %v1016 = vunpack.c.l.b16 %v286
      %v1017 = vunpack.c.l.b16 %v287
      %v1018 = vunpack.c.l.b16 %v289
      %v1019 = vunpack.c.l.b16 %v290
      %v1020 = vunpack.c.l.b16 %v292
      %v1021 = vunpack.c.l.b16 %v293
      %v1022 = vunpack.c.l.b16 %v295
      %v1023 = vunpack.c.l.b16 %v296
      %v1024 = vunpack.c.l.b16 %v298
      %v1025 = vunpack.c.l.b16 %v299
      %v1026 = vunpack.c.l.b16 %v301
      %v1027 = vunpack.c.l.b16 %v302
      %v1028 = vunpack.c.l.b16 %v304
      %v1029 = vunpack.c.l.b16 %v305
      %v1030 = vunpack.c.l.b16 %v307
      %v1031 = vunpack.c.l.b16 %v308
      %v1032 = vpack.c.b16 %v1001, %v1000
      %v1033 = vpack.c.b16 %v1003, %v1002
      %v1034 = vpack.c.b16 %v1005, %v1004
      %v1035 = vpack.c.b16 %v1007, %v1006
      %v1036 = vpack.c.b16 %v1009, %v1008
      %v1037 = vpack.c.b16 %v1011, %v1010
      %v1038 = vpack.c.b16 %v1013, %v1012
      %v1039 = vpack.c.b16 %v1015, %v1014
      %v1040 = vpack.c.b16 %v1017, %v1016
      %v1041 = vpack.c.b16 %v1019, %v1018
      %v1042 = vpack.c.b16 %v1021, %v1020
      %v1043 = vpack.c.b16 %v1023, %v1022
      %v1044 = vpack.c.b16 %v1025, %v1024
      %v1045 = vpack.c.b16 %v1027, %v1026
      %v1046 = vpack.c.b16 %v1029, %v1028
      %v1047 = vpack.c.b16 %v1031, %v1030
      %v1049 = vsel %vm754, %v1032, 0
      %v1052 = vsel %vm754, %v1033, 0
      %v1055 = vsel %vm754, %v1034, 0
      %v1058 = vsel %vm754, %v1035, 0
      %v1061 = vsel %vm754, %v1036, 0
      %v1064 = vsel %vm754, %v1037, 0
      %v1067 = vsel %vm754, %v1038, 0
      %v1070 = vsel %vm754, %v1039, 0
      %v1073 = vsel %vm754, %v1040, 0
      %v1076 = vsel %vm754, %v1041, 0
      %v1079 = vsel %vm754, %v1042, 0
      %v1082 = vsel %vm754, %v1043, 0
      %v1085 = vsel %vm754, %v1044, 0
      %v1088 = vsel %vm754, %v1045, 0
      %v1091 = vsel %vm754, %v1046, 0
      %v1094 = vsel %vm754, %v1047, 0
      %v1097 = vsel %vm803, %v316, 0
      %1099 = vmatprep.subr.bf16.mxu0 0
      %1100 = vmatpush1.bf16.msra.mxu0 %v1097
      %1101 = vmatprep.subr.bf16.mxu0 0
      %1102 = vmatpush1.bf16.msra.mxu0 0
      %1103 = vmatprep.subr.bf16.mxu0 0
      %1104 = vmatpush1.bf16.msra.mxu0 0
      %1105 = vmatprep.subr.bf16.mxu0 0
      %1106 = vmatpush1.bf16.msra.mxu0 0
      %1107 = vmatprep.subr.bf16.mxu0 0
      %1108 = vmatpush1.bf16.msra.mxu0 0
      %1109 = vmatprep.subr.bf16.mxu0 0
      %1110 = vmatpush1.bf16.msra.mxu0 0
      %1111 = vmatprep.subr.bf16.mxu0 0
      %1112 = vmatpush1.bf16.msra.mxu0 0
      %1113 = vmatprep.subr.bf16.mxu0 0
      %1114 = vmatpush1.bf16.msra.mxu0 0
      %1115 = vmatprep.subr.bf16.mxu0 0
      %1116 = vmatpush1.bf16.msra.mxu0 0
      %1117 = vmatprep.subr.bf16.mxu0 0
      %1118 = vmatpush1.bf16.msra.mxu0 0
      %1119 = vmatprep.subr.bf16.mxu0 0
      %1120 = vmatpush1.bf16.msra.mxu0 0
      %1121 = vmatprep.subr.bf16.mxu0 0
      %1122 = vmatpush1.bf16.msra.mxu0 0
      %1123 = vmatprep.subr.bf16.mxu0 0
      %1124 = vmatpush1.bf16.msra.mxu0 0
      %1125 = vmatprep.subr.bf16.mxu0 0
      %1126 = vmatpush1.bf16.msra.mxu0 0
      %1127 = vmatprep.subr.bf16.mxu0 0
      %1128 = vmatpush1.bf16.msra.mxu0 0
      %1129 = vmatprep.subr.bf16.mxu0 0
      %1130 = vmatpush1.bf16.msra.mxu0 0
      %1131 = vmatprep.mubr.bf16.mxu0 0
      %1132 = vmatmul.mubr.bf16.gmra.mrb[0].mxu0 %v1049
      %v1133 = vpop.f32.mrb[0].mxu0
      %v1134 = vadd.f32 %v842, %v1133
      %v1135 = vpop.f32.mrb[0].mxu0
      %v1136 = vpop.f32.mrb[0].mxu0
      %v1137 = vadd.f32 %v845, %v1136
      %v1138 = vpop.f32.mrb[0].mxu0
      %1139 = vmatprep.mubr.bf16.mxu0 0
      %1140 = vmatmul.mubr.bf16.gmra.mrb[0].mxu0 %v1052
      %v1141 = vpop.f32.mrb[0].mxu0
      %v1142 = vadd.f32 %v850, %v1141
      %v1143 = vpop.f32.mrb[0].mxu0
      %v1144 = vpop.f32.mrb[0].mxu0
      %v1145 = vadd.f32 %v853, %v1144
      %v1146 = vpop.f32.mrb[0].mxu0
      %1147 = vmatprep.mubr.bf16.mxu0 0
      %1148 = vmatmul.mubr.bf16.gmra.mrb[0].mxu0 %v1055
      %v1149 = vpop.f32.mrb[0].mxu0
      %v1150 = vadd.f32 %v858, %v1149
      %v1151 = vpop.f32.mrb[0].mxu0
      %v1152 = vpop.f32.mrb[0].mxu0
      %v1153 = vadd.f32 %v861, %v1152
      %v1154 = vpop.f32.mrb[0].mxu0
      %1155 = vmatprep.mubr.bf16.mxu0 0
      %1156 = vmatmul.mubr.bf16.gmra.mrb[0].mxu0 %v1058
      %v1157 = vpop.f32.mrb[0].mxu0
      %v1158 = vadd.f32 %v866, %v1157
      %v1159 = vpop.f32.mrb[0].mxu0
      %v1160 = vpop.f32.mrb[0].mxu0
      %v1161 = vadd.f32 %v869, %v1160
      %v1162 = vpop.f32.mrb[0].mxu0
      %1163 = vmatprep.mubr.bf16.mxu0 0
      %1164 = vmatmul.mubr.bf16.gmra.mrb[0].mxu0 %v1061
      %v1165 = vpop.f32.mrb[0].mxu0
      %v1166 = vadd.f32 %v874, %v1165
      %v1167 = vpop.f32.mrb[0].mxu0
      %v1168 = vpop.f32.mrb[0].mxu0
      %v1169 = vadd.f32 %v877, %v1168
      %v1170 = vpop.f32.mrb[0].mxu0
      %1171 = vmatprep.mubr.bf16.mxu0 0
      %1172 = vmatmul.mubr.bf16.gmra.mrb[0].mxu0 %v1064
      %v1173 = vpop.f32.mrb[0].mxu0
      %v1174 = vadd.f32 %v882, %v1173
      %v1175 = vpop.f32.mrb[0].mxu0
      %v1176 = vpop.f32.mrb[0].mxu0
      %v1177 = vadd.f32 %v885, %v1176
      %v1178 = vpop.f32.mrb[0].mxu0
      %1179 = vmatprep.mubr.bf16.mxu0 0
      %1180 = vmatmul.mubr.bf16.gmra.mrb[0].mxu0 %v1067
      %v1181 = vpop.f32.mrb[0].mxu0
      %v1182 = vadd.f32 %v890, %v1181
      %v1183 = vpop.f32.mrb[0].mxu0
      %v1184 = vpop.f32.mrb[0].mxu0
      %v1185 = vadd.f32 %v893, %v1184
      %v1186 = vpop.f32.mrb[0].mxu0
      %1187 = vmatprep.mubr.bf16.mxu0 0
      %1188 = vmatmul.mubr.bf16.gmra.mrb[0].mxu0 %v1070
      %v1189 = vpop.f32.mrb[0].mxu0
      %v1190 = vadd.f32 %v898, %v1189
      %v1191 = vpop.f32.mrb[0].mxu0
      %v1192 = vpop.f32.mrb[0].mxu0
      %v1193 = vadd.f32 %v901, %v1192
      %v1194 = vpop.f32.mrb[0].mxu0
      %1195 = vmatprep.mubr.bf16.mxu0 0
      %1196 = vmatmul.mubr.bf16.gmra.mrb[0].mxu0 %v1073
      %v1197 = vpop.f32.mrb[0].mxu0
      %v1198 = vadd.f32 %v906, %v1197
      %v1199 = vpop.f32.mrb[0].mxu0
      %v1200 = vpop.f32.mrb[0].mxu0
      %v1201 = vadd.f32 %v909, %v1200
      %v1202 = vpop.f32.mrb[0].mxu0
      %1203 = vmatprep.mubr.bf16.mxu0 0
      %1204 = vmatmul.mubr.bf16.gmra.mrb[0].mxu0 %v1076
      %v1205 = vpop.f32.mrb[0].mxu0
      %v1206 = vadd.f32 %v914, %v1205
      %v1207 = vpop.f32.mrb[0].mxu0
      %v1208 = vpop.f32.mrb[0].mxu0
      %v1209 = vadd.f32 %v917, %v1208
      %v1210 = vpop.f32.mrb[0].mxu0
      %1211 = vmatprep.mubr.bf16.mxu0 0
      %1212 = vmatmul.mubr.bf16.gmra.mrb[0].mxu0 %v1079
      %v1213 = vpop.f32.mrb[0].mxu0
      %v1214 = vadd.f32 %v922, %v1213
      %v1215 = vpop.f32.mrb[0].mxu0
      %v1216 = vpop.f32.mrb[0].mxu0
      %v1217 = vadd.f32 %v925, %v1216
      %v1218 = vpop.f32.mrb[0].mxu0
      %1219 = vmatprep.mubr.bf16.mxu0 0
      %1220 = vmatmul.mubr.bf16.gmra.mrb[0].mxu0 %v1082
      %v1221 = vpop.f32.mrb[0].mxu0
      %v1222 = vadd.f32 %v930, %v1221
      %v1223 = vpop.f32.mrb[0].mxu0
      %v1224 = vpop.f32.mrb[0].mxu0
      %v1225 = vadd.f32 %v933, %v1224
      %v1226 = vpop.f32.mrb[0].mxu0
      %1227 = vmatprep.mubr.bf16.mxu0 0
      %1228 = vmatmul.mubr.bf16.gmra.mrb[0].mxu0 %v1085
      %v1229 = vpop.f32.mrb[0].mxu0
      %v1230 = vadd.f32 %v938, %v1229
      %v1231 = vpop.f32.mrb[0].mxu0
      %v1232 = vpop.f32.mrb[0].mxu0
      %v1233 = vadd.f32 %v941, %v1232
      %v1234 = vpop.f32.mrb[0].mxu0
      %1235 = vmatprep.mubr.bf16.mxu0 0
      %1236 = vmatmul.mubr.bf16.gmra.mrb[0].mxu0 %v1088
      %v1237 = vpop.f32.mrb[0].mxu0
      %v1238 = vadd.f32 %v946, %v1237
      %v1239 = vpop.f32.mrb[0].mxu0
      %v1240 = vpop.f32.mrb[0].mxu0
      %v1241 = vadd.f32 %v949, %v1240
      %v1242 = vpop.f32.mrb[0].mxu0
      %1243 = vmatprep.mubr.bf16.mxu0 0
      %1244 = vmatmul.mubr.bf16.gmra.mrb[0].mxu0 %v1091
      %v1245 = vpop.f32.mrb[0].mxu0
      %v1246 = vadd.f32 %v954, %v1245
      %v1247 = vpop.f32.mrb[0].mxu0
      %v1248 = vpop.f32.mrb[0].mxu0
      %v1249 = vadd.f32 %v957, %v1248
      %v1250 = vpop.f32.mrb[0].mxu0
      %1251 = vmatprep.mubr.bf16.mxu0 0
      %1252 = vmatmul.mubr.bf16.gmra.mrb[0].mxu0 %v1094
      %v1253 = vpop.f32.mrb[0].mxu0
      %v1254 = vadd.f32 %v962, %v1253
      %v1255 = vpop.f32.mrb[0].mxu0
      %v1256 = vpop.f32.mrb[0].mxu0
      %v1257 = vadd.f32 %v965, %v1256
      %v1258 = vpop.f32.mrb[0].mxu0
      %1259 = vdwg.mxu0
      %vm1276 = vcmask 1042432
      %vm1277 = vcmask 1046532
      %vm1278 = vmor %vm1276, %vm1277
      %v1279 = vrot.slane %v262, 5
      %v1280 = vrot.slane %v1279, 4
      %v1281 = vrot.slane %v263, 5
      %v1282 = vsel %vm1278, %v1280, %v1281
      %v1283 = vrot.slane %v1281, 4
      %v1284 = vrot.slane %v264, 5
      %v1285 = vsel %vm1278, %v1283, %v1284
      %v1286 = vrot.slane %v265, 5
      %v1287 = vrot.slane %v1286, 4
      %v1288 = vrot.slane %v266, 5
      %v1289 = vsel %vm1278, %v1287, %v1288
      %v1290 = vrot.slane %v1288, 4
      %v1291 = vrot.slane %v267, 5
      %v1292 = vsel %vm1278, %v1290, %v1291
      %v1293 = vrot.slane %v268, 5
      %v1294 = vrot.slane %v1293, 4
      %v1295 = vrot.slane %v269, 5
      %v1296 = vsel %vm1278, %v1294, %v1295
      %v1297 = vrot.slane %v1295, 4
      %v1298 = vrot.slane %v270, 5
      %v1299 = vsel %vm1278, %v1297, %v1298
      %v1300 = vrot.slane %v271, 5
      %v1301 = vrot.slane %v1300, 4
      %v1302 = vrot.slane %v272, 5
      %v1303 = vsel %vm1278, %v1301, %v1302
      %v1304 = vrot.slane %v1302, 4
      %v1305 = vrot.slane %v273, 5
      %v1306 = vsel %vm1278, %v1304, %v1305
      %v1307 = vrot.slane %v274, 5
      %v1308 = vrot.slane %v1307, 4
      %v1309 = vrot.slane %v275, 5
      %v1310 = vsel %vm1278, %v1308, %v1309
      %v1311 = vrot.slane %v1309, 4
      %v1312 = vrot.slane %v276, 5
      %v1313 = vsel %vm1278, %v1311, %v1312
      %v1314 = vrot.slane %v277, 5
      %v1315 = vrot.slane %v1314, 4
      %v1316 = vrot.slane %v278, 5
      %v1317 = vsel %vm1278, %v1315, %v1316
      %v1318 = vrot.slane %v1316, 4
      %v1319 = vrot.slane %v279, 5
      %v1320 = vsel %vm1278, %v1318, %v1319
      %v1321 = vrot.slane %v280, 5
      %v1322 = vrot.slane %v1321, 4
      %v1323 = vrot.slane %v281, 5
      %v1324 = vsel %vm1278, %v1322, %v1323
      %v1325 = vrot.slane %v1323, 4
      %v1326 = vrot.slane %v282, 5
      %v1327 = vsel %vm1278, %v1325, %v1326
      %v1328 = vrot.slane %v283, 5
      %v1329 = vrot.slane %v1328, 4
      %v1330 = vrot.slane %v284, 5
      %v1331 = vsel %vm1278, %v1329, %v1330
      %v1332 = vrot.slane %v1330, 4
      %v1333 = vrot.slane %v285, 5
      %v1334 = vsel %vm1278, %v1332, %v1333
      %v1335 = vrot.slane %v286, 5
      %v1336 = vrot.slane %v1335, 4
      %v1337 = vrot.slane %v287, 5
      %v1338 = vsel %vm1278, %v1336, %v1337
      %v1339 = vrot.slane %v1337, 4
      %v1340 = vrot.slane %v288, 5
      %v1341 = vsel %vm1278, %v1339, %v1340
      %v1342 = vrot.slane %v289, 5
      %v1343 = vrot.slane %v1342, 4
      %v1344 = vrot.slane %v290, 5
      %v1345 = vsel %vm1278, %v1343, %v1344
      %v1346 = vrot.slane %v1344, 4
      %v1347 = vrot.slane %v291, 5
      %v1348 = vsel %vm1278, %v1346, %v1347
      %v1349 = vrot.slane %v292, 5
      %v1350 = vrot.slane %v1349, 4
      %v1351 = vrot.slane %v293, 5
      %v1352 = vsel %vm1278, %v1350, %v1351
      %v1353 = vrot.slane %v1351, 4
      %v1354 = vrot.slane %v294, 5
      %v1355 = vsel %vm1278, %v1353, %v1354
      %v1356 = vrot.slane %v295, 5
      %v1357 = vrot.slane %v1356, 4
      %v1358 = vrot.slane %v296, 5
      %v1359 = vsel %vm1278, %v1357, %v1358
      %v1360 = vrot.slane %v1358, 4
      %v1361 = vrot.slane %v297, 5
      %v1362 = vsel %vm1278, %v1360, %v1361
      %v1363 = vrot.slane %v298, 5
      %v1364 = vrot.slane %v1363, 4
      %v1365 = vrot.slane %v299, 5
      %v1366 = vsel %vm1278, %v1364, %v1365
      %v1367 = vrot.slane %v1365, 4
      %v1368 = vrot.slane %v300, 5
      %v1369 = vsel %vm1278, %v1367, %v1368
      %v1370 = vrot.slane %v301, 5
      %v1371 = vrot.slane %v1370, 4
      %v1372 = vrot.slane %v302, 5
      %v1373 = vsel %vm1278, %v1371, %v1372
      %v1374 = vrot.slane %v1372, 4
      %v1375 = vrot.slane %v303, 5
      %v1376 = vsel %vm1278, %v1374, %v1375
      %v1377 = vrot.slane %v304, 5
      %v1378 = vrot.slane %v1377, 4
      %v1379 = vrot.slane %v305, 5
      %v1380 = vsel %vm1278, %v1378, %v1379
      %v1381 = vrot.slane %v1379, 4
      %v1382 = vrot.slane %v306, 5
      %v1383 = vsel %vm1278, %v1381, %v1382
      %v1384 = vrot.slane %v307, 5
      %v1385 = vrot.slane %v1384, 4
      %v1386 = vrot.slane %v308, 5
      %v1387 = vsel %vm1278, %v1385, %v1386
      %v1388 = vrot.slane %v1386, 4
      %v1389 = vrot.slane %v309, 5
      %v1390 = vsel %vm1278, %v1388, %v1389
      %s1391 = scalar_lea.vmem %s1, 4
      %v1392 = vld [vmem:[%s1391] sm:$0x3]
      %v1393 = vunpack.c.l.b16 %v1282
      %v1394 = vunpack.c.l.b16 %v1285
      %v1395 = vunpack.c.l.b16 %v1289
      %v1396 = vunpack.c.l.b16 %v1292
      %v1397 = vunpack.c.l.b16 %v1296
      %v1398 = vunpack.c.l.b16 %v1299
      %v1399 = vunpack.c.l.b16 %v1303
      %v1400 = vunpack.c.l.b16 %v1306
      %v1401 = vunpack.c.l.b16 %v1310
      %v1402 = vunpack.c.l.b16 %v1313
      %v1403 = vunpack.c.l.b16 %v1317
      %v1404 = vunpack.c.l.b16 %v1320
      %v1405 = vunpack.c.l.b16 %v1324
      %v1406 = vunpack.c.l.b16 %v1327
      %v1407 = vunpack.c.l.b16 %v1331
      %v1408 = vunpack.c.l.b16 %v1334
      %v1409 = vunpack.c.l.b16 %v1338
      %v1410 = vunpack.c.l.b16 %v1341
      %v1411 = vunpack.c.l.b16 %v1345
      %v1412 = vunpack.c.l.b16 %v1348
      %v1413 = vunpack.c.l.b16 %v1352
      %v1414 = vunpack.c.l.b16 %v1355
      %v1415 = vunpack.c.l.b16 %v1359
      %v1416 = vunpack.c.l.b16 %v1362
      %v1417 = vunpack.c.l.b16 %v1366
      %v1418 = vunpack.c.l.b16 %v1369
      %v1419 = vunpack.c.l.b16 %v1373
      %v1420 = vunpack.c.l.b16 %v1376
      %v1421 = vunpack.c.l.b16 %v1380
      %v1422 = vunpack.c.l.b16 %v1383
      %v1423 = vunpack.c.l.b16 %v1387
      %v1424 = vunpack.c.l.b16 %v1390
      %v1425 = vpack.c.b16 %v1394, %v1393
      %v1426 = vpack.c.b16 %v1396, %v1395
      %v1427 = vpack.c.b16 %v1398, %v1397
      %v1428 = vpack.c.b16 %v1400, %v1399
      %v1429 = vpack.c.b16 %v1402, %v1401
      %v1430 = vpack.c.b16 %v1404, %v1403
      %v1431 = vpack.c.b16 %v1406, %v1405
      %v1432 = vpack.c.b16 %v1408, %v1407
      %v1433 = vpack.c.b16 %v1410, %v1409
      %v1434 = vpack.c.b16 %v1412, %v1411
      %v1435 = vpack.c.b16 %v1414, %v1413
      %v1436 = vpack.c.b16 %v1416, %v1415
      %v1437 = vpack.c.b16 %v1418, %v1417
      %v1438 = vpack.c.b16 %v1420, %v1419
      %v1439 = vpack.c.b16 %v1422, %v1421
      %v1440 = vpack.c.b16 %v1424, %v1423
      %v1442 = vsel %vm754, %v1425, 0
      %v1445 = vsel %vm754, %v1426, 0
      %v1448 = vsel %vm754, %v1427, 0
      %v1451 = vsel %vm754, %v1428, 0
      %v1454 = vsel %vm754, %v1429, 0
      %v1457 = vsel %vm754, %v1430, 0
      %v1460 = vsel %vm754, %v1431, 0
      %v1463 = vsel %vm754, %v1432, 0
      %v1466 = vsel %vm754, %v1433, 0
      %v1469 = vsel %vm754, %v1434, 0
      %v1472 = vsel %vm754, %v1435, 0
      %v1475 = vsel %vm754, %v1436, 0
      %v1478 = vsel %vm754, %v1437, 0
      %v1481 = vsel %vm754, %v1438, 0
      %v1484 = vsel %vm754, %v1439, 0
      %v1487 = vsel %vm754, %v1440, 0
      %v1490 = vsel %vm803, %v1392, 0
      %1492 = vmatprep.subr.bf16.mxu0 0
      %1493 = vmatpush1.bf16.msra.mxu0 %v1490
      %1494 = vmatprep.subr.bf16.mxu0 0
      %1495 = vmatpush1.bf16.msra.mxu0 0
      %1496 = vmatprep.subr.bf16.mxu0 0
      %1497 = vmatpush1.bf16.msra.mxu0 0
      %1498 = vmatprep.subr.bf16.mxu0 0
      %1499 = vmatpush1.bf16.msra.mxu0 0
      %1500 = vmatprep.subr.bf16.mxu0 0
      %1501 = vmatpush1.bf16.msra.mxu0 0
      %1502 = vmatprep.subr.bf16.mxu0 0
      %1503 = vmatpush1.bf16.msra.mxu0 0
      %1504 = vmatprep.subr.bf16.mxu0 0
      %1505 = vmatpush1.bf16.msra.mxu0 0
      %1506 = vmatprep.subr.bf16.mxu0 0
      %1507 = vmatpush1.bf16.msra.mxu0 0
      %1508 = vmatprep.subr.bf16.mxu0 0
      %1509 = vmatpush1.bf16.msra.mxu0 0
      %1510 = vmatprep.subr.bf16.mxu0 0
      %1511 = vmatpush1.bf16.msra.mxu0 0
      %1512 = vmatprep.subr.bf16.mxu0 0
      %1513 = vmatpush1.bf16.msra.mxu0 0
      %1514 = vmatprep.subr.bf16.mxu0 0
      %1515 = vmatpush1.bf16.msra.mxu0 0
      %1516 = vmatprep.subr.bf16.mxu0 0
      %1517 = vmatpush1.bf16.msra.mxu0 0
      %1518 = vmatprep.subr.bf16.mxu0 0
      %1519 = vmatpush1.bf16.msra.mxu0 0
      %1520 = vmatprep.subr.bf16.mxu0 0
      %1521 = vmatpush1.bf16.msra.mxu0 0
      %1522 = vmatprep.subr.bf16.mxu0 0
      %1523 = vmatpush1.bf16.msra.mxu0 0
      %1524 = vmatprep.mubr.bf16.mxu0 0
      %1525 = vmatmul.mubr.bf16.gmra.mrb[0].mxu0 %v1442
      %v1526 = vpop.f32.mrb[0].mxu0
      %v1527 = vadd.f32 0.0, %v1526
      %v1528 = vpop.f32.mrb[0].mxu0
      %v1529 = vpop.f32.mrb[0].mxu0
      %v1530 = vadd.f32 0.0, %v1529
      %v1531 = vpop.f32.mrb[0].mxu0
      %1532 = vmatprep.mubr.bf16.mxu0 0
      %1533 = vmatmul.mubr.bf16.gmra.mrb[0].mxu0 %v1445
      %v1534 = vpop.f32.mrb[0].mxu0
      %v1535 = vadd.f32 0.0, %v1534
      %v1536 = vpop.f32.mrb[0].mxu0
      %v1537 = vpop.f32.mrb[0].mxu0
      %v1538 = vadd.f32 0.0, %v1537
      %v1539 = vpop.f32.mrb[0].mxu0
      %1540 = vmatprep.mubr.bf16.mxu0 0
      %1541 = vmatmul.mubr.bf16.gmra.mrb[0].mxu0 %v1448
      %v1542 = vpop.f32.mrb[0].mxu0
      %v1543 = vadd.f32 0.0, %v1542
      %v1544 = vpop.f32.mrb[0].mxu0
      %v1545 = vpop.f32.mrb[0].mxu0
      %v1546 = vadd.f32 0.0, %v1545
      %v1547 = vpop.f32.mrb[0].mxu0
      %1548 = vmatprep.mubr.bf16.mxu0 0
      %1549 = vmatmul.mubr.bf16.gmra.mrb[0].mxu0 %v1451
      %v1550 = vpop.f32.mrb[0].mxu0
      %v1551 = vadd.f32 0.0, %v1550
      %v1552 = vpop.f32.mrb[0].mxu0
      %v1553 = vpop.f32.mrb[0].mxu0
      %v1554 = vadd.f32 0.0, %v1553
      %v1555 = vpop.f32.mrb[0].mxu0
      %1556 = vmatprep.mubr.bf16.mxu0 0
      %1557 = vmatmul.mubr.bf16.gmra.mrb[0].mxu0 %v1454
      %v1558 = vpop.f32.mrb[0].mxu0
      %v1559 = vadd.f32 0.0, %v1558
      %v1560 = vpop.f32.mrb[0].mxu0
      %v1561 = vpop.f32.mrb[0].mxu0
      %v1562 = vadd.f32 0.0, %v1561
      %v1563 = vpop.f32.mrb[0].mxu0
      %1564 = vmatprep.mubr.bf16.mxu0 0
      %1565 = vmatmul.mubr.bf16.gmra.mrb[0].mxu0 %v1457
      %v1566 = vpop.f32.mrb[0].mxu0
      %v1567 = vadd.f32 0.0, %v1566
      %v1568 = vpop.f32.mrb[0].mxu0
      %v1569 = vpop.f32.mrb[0].mxu0
      %v1570 = vadd.f32 0.0, %v1569
      %v1571 = vpop.f32.mrb[0].mxu0
      %1572 = vmatprep.mubr.bf16.mxu0 0
      %1573 = vmatmul.mubr.bf16.gmra.mrb[0].mxu0 %v1460
      %v1574 = vpop.f32.mrb[0].mxu0
      %v1575 = vadd.f32 0.0, %v1574
      %v1576 = vpop.f32.mrb[0].mxu0
      %v1577 = vpop.f32.mrb[0].mxu0
      %v1578 = vadd.f32 0.0, %v1577
      %v1579 = vpop.f32.mrb[0].mxu0
      %1580 = vmatprep.mubr.bf16.mxu0 0
      %1581 = vmatmul.mubr.bf16.gmra.mrb[0].mxu0 %v1463
      %v1582 = vpop.f32.mrb[0].mxu0
      %v1583 = vadd.f32 0.0, %v1582
      %v1584 = vpop.f32.mrb[0].mxu0
      %v1585 = vpop.f32.mrb[0].mxu0
      %v1586 = vadd.f32 0.0, %v1585
      %v1587 = vpop.f32.mrb[0].mxu0
      %1588 = vmatprep.mubr.bf16.mxu0 0
      %1589 = vmatmul.mubr.bf16.gmra.mrb[0].mxu0 %v1466
      %v1590 = vpop.f32.mrb[0].mxu0
      %v1591 = vadd.f32 0.0, %v1590
      %v1592 = vpop.f32.mrb[0].mxu0
      %v1593 = vpop.f32.mrb[0].mxu0
      %v1594 = vadd.f32 0.0, %v1593
      %v1595 = vpop.f32.mrb[0].mxu0
      %1596 = vmatprep.mubr.bf16.mxu0 0
      %1597 = vmatmul.mubr.bf16.gmra.mrb[0].mxu0 %v1469
      %v1598 = vpop.f32.mrb[0].mxu0
      %v1599 = vadd.f32 0.0, %v1598
      %v1600 = vpop.f32.mrb[0].mxu0
      %v1601 = vpop.f32.mrb[0].mxu0
      %v1602 = vadd.f32 0.0, %v1601
      %v1603 = vpop.f32.mrb[0].mxu0
      %1604 = vmatprep.mubr.bf16.mxu0 0
      %1605 = vmatmul.mubr.bf16.gmra.mrb[0].mxu0 %v1472
      %v1606 = vpop.f32.mrb[0].mxu0
      %v1607 = vadd.f32 0.0, %v1606
      %v1608 = vpop.f32.mrb[0].mxu0
      %v1609 = vpop.f32.mrb[0].mxu0
      %v1610 = vadd.f32 0.0, %v1609
      %v1611 = vpop.f32.mrb[0].mxu0
      %1612 = vmatprep.mubr.bf16.mxu0 0
      %1613 = vmatmul.mubr.bf16.gmra.mrb[0].mxu0 %v1475
      %v1614 = vpop.f32.mrb[0].mxu0
      %v1615 = vadd.f32 0.0, %v1614
      %v1616 = vpop.f32.mrb[0].mxu0
      %v1617 = vpop.f32.mrb[0].mxu0
      %v1618 = vadd.f32 0.0, %v1617
      %v1619 = vpop.f32.mrb[0].mxu0
      %1620 = vmatprep.mubr.bf16.mxu0 0
      %1621 = vmatmul.mubr.bf16.gmra.mrb[0].mxu0 %v1478
      %v1622 = vpop.f32.mrb[0].mxu0
      %v1623 = vadd.f32 0.0, %v1622
      %v1624 = vpop.f32.mrb[0].mxu0
      %v1625 = vpop.f32.mrb[0].mxu0
      %v1626 = vadd.f32 0.0, %v1625
      %v1627 = vpop.f32.mrb[0].mxu0
      %1628 = vmatprep.mubr.bf16.mxu0 0
      %1629 = vmatmul.mubr.bf16.gmra.mrb[0].mxu0 %v1481
      %v1630 = vpop.f32.mrb[0].mxu0
      %v1631 = vadd.f32 0.0, %v1630
      %v1632 = vpop.f32.mrb[0].mxu0
      %v1633 = vpop.f32.mrb[0].mxu0
      %v1634 = vadd.f32 0.0, %v1633
      %v1635 = vpop.f32.mrb[0].mxu0
      %1636 = vmatprep.mubr.bf16.mxu0 0
      %1637 = vmatmul.mubr.bf16.gmra.mrb[0].mxu0 %v1484
      %v1638 = vpop.f32.mrb[0].mxu0
      %v1639 = vadd.f32 0.0, %v1638
      %v1640 = vpop.f32.mrb[0].mxu0
      %v1641 = vpop.f32.mrb[0].mxu0
      %v1642 = vadd.f32 0.0, %v1641
      %v1643 = vpop.f32.mrb[0].mxu0
      %1644 = vmatprep.mubr.bf16.mxu0 0
      %1645 = vmatmul.mubr.bf16.gmra.mrb[0].mxu0 %v1487
      %v1646 = vpop.f32.mrb[0].mxu0
      %v1647 = vadd.f32 0.0, %v1646
      %v1648 = vpop.f32.mrb[0].mxu0
      %v1649 = vpop.f32.mrb[0].mxu0
      %v1650 = vadd.f32 0.0, %v1649
      %v1651 = vpop.f32.mrb[0].mxu0
      %1652 = vdwg.mxu0
      %v1653 = vadd.f32 %v1134, %v1527
      %v1654 = vadd.f32 %v1137, %v1530
      %v1655 = vadd.f32 %v1142, %v1535
      %v1656 = vadd.f32 %v1145, %v1538
      %v1657 = vadd.f32 %v1150, %v1543
      %v1658 = vadd.f32 %v1153, %v1546
      %v1659 = vadd.f32 %v1158, %v1551
      %v1660 = vadd.f32 %v1161, %v1554
      %v1661 = vadd.f32 %v1166, %v1559
      %v1662 = vadd.f32 %v1169, %v1562
      %v1663 = vadd.f32 %v1174, %v1567
      %v1664 = vadd.f32 %v1177, %v1570
      %v1665 = vadd.f32 %v1182, %v1575
      %v1666 = vadd.f32 %v1185, %v1578
      %v1667 = vadd.f32 %v1190, %v1583
      %v1668 = vadd.f32 %v1193, %v1586
      %v1669 = vadd.f32 %v1198, %v1591
      %v1670 = vadd.f32 %v1201, %v1594
      %v1671 = vadd.f32 %v1206, %v1599
      %v1672 = vadd.f32 %v1209, %v1602
      %v1673 = vadd.f32 %v1214, %v1607
      %v1674 = vadd.f32 %v1217, %v1610
      %v1675 = vadd.f32 %v1222, %v1615
      %v1676 = vadd.f32 %v1225, %v1618
      %v1677 = vadd.f32 %v1230, %v1623
      %v1678 = vadd.f32 %v1233, %v1626
      %v1679 = vadd.f32 %v1238, %v1631
      %v1680 = vadd.f32 %v1241, %v1634
      %v1681 = vadd.f32 %v1246, %v1639
      %v1682 = vadd.f32 %v1249, %v1642
      %v1683 = vadd.f32 %v1254, %v1647
      %v1684 = vadd.f32 %v1257, %v1650
      %s1685 = scalar_lea.vmem %s1, 6
      %v1686 = vld [vmem:[%s1685] sm:$0x3]
      %v1689 = vunpack.c.l.b16 %v310
      %v1690 = vunpack.c.l.b16 %v311
      %v1691 = vpack.c.b16 %v1690, %v1689
      %v1693 = vsel %vm754, %v1691, 0
      %v1696 = vsel %vm803, %v1686, 0
      %1698 = vmatprep.subr.bf16.mxu0 0
      %1699 = vmatpush1.bf16.msra.mxu0 %v1696
      %1700 = vmatprep.subr.bf16.mxu0 0
      %1701 = vmatpush1.bf16.msra.mxu0 0
      %1702 = vmatprep.subr.bf16.mxu0 0
      %1703 = vmatpush1.bf16.msra.mxu0 0
      %1704 = vmatprep.subr.bf16.mxu0 0
      %1705 = vmatpush1.bf16.msra.mxu0 0
      %1706 = vmatprep.subr.bf16.mxu0 0
      %1707 = vmatpush1.bf16.msra.mxu0 0
      %1708 = vmatprep.subr.bf16.mxu0 0
      %1709 = vmatpush1.bf16.msra.mxu0 0
      %1710 = vmatprep.subr.bf16.mxu0 0
      %1711 = vmatpush1.bf16.msra.mxu0 0
      %1712 = vmatprep.subr.bf16.mxu0 0
      %1713 = vmatpush1.bf16.msra.mxu0 0
      %1714 = vmatprep.subr.bf16.mxu0 0
      %1715 = vmatpush1.bf16.msra.mxu0 0
      %1716 = vmatprep.subr.bf16.mxu0 0
      %1717 = vmatpush1.bf16.msra.mxu0 0
      %1718 = vmatprep.subr.bf16.mxu0 0
      %1719 = vmatpush1.bf16.msra.mxu0 0
      %1720 = vmatprep.subr.bf16.mxu0 0
      %1721 = vmatpush1.bf16.msra.mxu0 0
      %1722 = vmatprep.subr.bf16.mxu0 0
      %1723 = vmatpush1.bf16.msra.mxu0 0
      %1724 = vmatprep.subr.bf16.mxu0 0
      %1725 = vmatpush1.bf16.msra.mxu0 0
      %1726 = vmatprep.subr.bf16.mxu0 0
      %1727 = vmatpush1.bf16.msra.mxu0 0
      %1728 = vmatprep.subr.bf16.mxu0 0
      %1729 = vmatpush1.bf16.msra.mxu0 0
      %1730 = vmatprep.mubr.bf16.mxu0 0
      %1731 = vmatmul.mubr.bf16.gmra.mrb[0].mxu0 %v1052
      %v1732 = vpop.f32.mrb[0].mxu0
      %v1733 = vadd.f32 0.0, %v1732
      %v1734 = vpop.f32.mrb[0].mxu0
      %v1735 = vpop.f32.mrb[0].mxu0
      %v1736 = vadd.f32 0.0, %v1735
      %v1737 = vpop.f32.mrb[0].mxu0
      %1738 = vmatprep.mubr.bf16.mxu0 0
      %1739 = vmatmul.mubr.bf16.gmra.mrb[0].mxu0 %v1055
      %v1740 = vpop.f32.mrb[0].mxu0
      %v1741 = vadd.f32 0.0, %v1740
      %v1742 = vpop.f32.mrb[0].mxu0
      %v1743 = vpop.f32.mrb[0].mxu0
      %v1744 = vadd.f32 0.0, %v1743
      %v1745 = vpop.f32.mrb[0].mxu0
      %1746 = vmatprep.mubr.bf16.mxu0 0
      %1747 = vmatmul.mubr.bf16.gmra.mrb[0].mxu0 %v1058
      %v1748 = vpop.f32.mrb[0].mxu0
      %v1749 = vadd.f32 0.0, %v1748
      %v1750 = vpop.f32.mrb[0].mxu0
      %v1751 = vpop.f32.mrb[0].mxu0
      %v1752 = vadd.f32 0.0, %v1751
      %v1753 = vpop.f32.mrb[0].mxu0
      %1754 = vmatprep.mubr.bf16.mxu0 0
      %1755 = vmatmul.mubr.bf16.gmra.mrb[0].mxu0 %v1061
      %v1756 = vpop.f32.mrb[0].mxu0
      %v1757 = vadd.f32 0.0, %v1756
      %v1758 = vpop.f32.mrb[0].mxu0
      %v1759 = vpop.f32.mrb[0].mxu0
      %v1760 = vadd.f32 0.0, %v1759
      %v1761 = vpop.f32.mrb[0].mxu0
      %1762 = vmatprep.mubr.bf16.mxu0 0
      %1763 = vmatmul.mubr.bf16.gmra.mrb[0].mxu0 %v1064
      %v1764 = vpop.f32.mrb[0].mxu0
      %v1765 = vadd.f32 0.0, %v1764
      %v1766 = vpop.f32.mrb[0].mxu0
      %v1767 = vpop.f32.mrb[0].mxu0
      %v1768 = vadd.f32 0.0, %v1767
      %v1769 = vpop.f32.mrb[0].mxu0
      %1770 = vmatprep.mubr.bf16.mxu0 0
      %1771 = vmatmul.mubr.bf16.gmra.mrb[0].mxu0 %v1067
      %v1772 = vpop.f32.mrb[0].mxu0
      %v1773 = vadd.f32 0.0, %v1772
      %v1774 = vpop.f32.mrb[0].mxu0
      %v1775 = vpop.f32.mrb[0].mxu0
      %v1776 = vadd.f32 0.0, %v1775
      %v1777 = vpop.f32.mrb[0].mxu0
      %1778 = vmatprep.mubr.bf16.mxu0 0
      %1779 = vmatmul.mubr.bf16.gmra.mrb[0].mxu0 %v1070
      %v1780 = vpop.f32.mrb[0].mxu0
      %v1781 = vadd.f32 0.0, %v1780
      %v1782 = vpop.f32.mrb[0].mxu0
      %v1783 = vpop.f32.mrb[0].mxu0
      %v1784 = vadd.f32 0.0, %v1783
      %v1785 = vpop.f32.mrb[0].mxu0
      %1786 = vmatprep.mubr.bf16.mxu0 0
      %1787 = vmatmul.mubr.bf16.gmra.mrb[0].mxu0 %v1073
      %v1788 = vpop.f32.mrb[0].mxu0
      %v1789 = vadd.f32 0.0, %v1788
      %v1790 = vpop.f32.mrb[0].mxu0
      %v1791 = vpop.f32.mrb[0].mxu0
      %v1792 = vadd.f32 0.0, %v1791
      %v1793 = vpop.f32.mrb[0].mxu0
      %1794 = vmatprep.mubr.bf16.mxu0 0
      %1795 = vmatmul.mubr.bf16.gmra.mrb[0].mxu0 %v1076
      %v1796 = vpop.f32.mrb[0].mxu0
      %v1797 = vadd.f32 0.0, %v1796
      %v1798 = vpop.f32.mrb[0].mxu0
      %v1799 = vpop.f32.mrb[0].mxu0
      %v1800 = vadd.f32 0.0, %v1799
      %v1801 = vpop.f32.mrb[0].mxu0
      %1802 = vmatprep.mubr.bf16.mxu0 0
      %1803 = vmatmul.mubr.bf16.gmra.mrb[0].mxu0 %v1079
      %v1804 = vpop.f32.mrb[0].mxu0
      %v1805 = vadd.f32 0.0, %v1804
      %v1806 = vpop.f32.mrb[0].mxu0
      %v1807 = vpop.f32.mrb[0].mxu0
      %v1808 = vadd.f32 0.0, %v1807
      %v1809 = vpop.f32.mrb[0].mxu0
      %1810 = vmatprep.mubr.bf16.mxu0 0
      %1811 = vmatmul.mubr.bf16.gmra.mrb[0].mxu0 %v1082
      %v1812 = vpop.f32.mrb[0].mxu0
      %v1813 = vadd.f32 0.0, %v1812
      %v1814 = vpop.f32.mrb[0].mxu0
      %v1815 = vpop.f32.mrb[0].mxu0
      %v1816 = vadd.f32 0.0, %v1815
      %v1817 = vpop.f32.mrb[0].mxu0
      %1818 = vmatprep.mubr.bf16.mxu0 0
      %1819 = vmatmul.mubr.bf16.gmra.mrb[0].mxu0 %v1085
      %v1820 = vpop.f32.mrb[0].mxu0
      %v1821 = vadd.f32 0.0, %v1820
      %v1822 = vpop.f32.mrb[0].mxu0
      %v1823 = vpop.f32.mrb[0].mxu0
      %v1824 = vadd.f32 0.0, %v1823
      %v1825 = vpop.f32.mrb[0].mxu0
      %1826 = vmatprep.mubr.bf16.mxu0 0
      %1827 = vmatmul.mubr.bf16.gmra.mrb[0].mxu0 %v1088
      %v1828 = vpop.f32.mrb[0].mxu0
      %v1829 = vadd.f32 0.0, %v1828
      %v1830 = vpop.f32.mrb[0].mxu0
      %v1831 = vpop.f32.mrb[0].mxu0
      %v1832 = vadd.f32 0.0, %v1831
      %v1833 = vpop.f32.mrb[0].mxu0
      %1834 = vmatprep.mubr.bf16.mxu0 0
      %1835 = vmatmul.mubr.bf16.gmra.mrb[0].mxu0 %v1091
      %v1836 = vpop.f32.mrb[0].mxu0
      %v1837 = vadd.f32 0.0, %v1836
      %v1838 = vpop.f32.mrb[0].mxu0
      %v1839 = vpop.f32.mrb[0].mxu0
      %v1840 = vadd.f32 0.0, %v1839
      %v1841 = vpop.f32.mrb[0].mxu0
      %1842 = vmatprep.mubr.bf16.mxu0 0
      %1843 = vmatmul.mubr.bf16.gmra.mrb[0].mxu0 %v1094
      %v1844 = vpop.f32.mrb[0].mxu0
      %v1845 = vadd.f32 0.0, %v1844
      %v1846 = vpop.f32.mrb[0].mxu0
      %v1847 = vpop.f32.mrb[0].mxu0
      %v1848 = vadd.f32 0.0, %v1847
      %v1849 = vpop.f32.mrb[0].mxu0
      %1850 = vmatprep.mubr.bf16.mxu0 0
      %1851 = vmatmul.mubr.bf16.gmra.mrb[0].mxu0 %v1693
      %v1852 = vpop.f32.mrb[0].mxu0
      %v1853 = vadd.f32 0.0, %v1852
      %v1854 = vpop.f32.mrb[0].mxu0
      %v1855 = vpop.f32.mrb[0].mxu0
      %v1856 = vadd.f32 0.0, %v1855
      %v1857 = vpop.f32.mrb[0].mxu0
      %1858 = vdwg.mxu0
      %v1859 = vadd.f32 %v1653, %v1733
      %v1860 = vadd.f32 %v1654, %v1736
      %v1861 = vadd.f32 %v1655, %v1741
      %v1862 = vadd.f32 %v1656, %v1744
      %v1863 = vadd.f32 %v1657, %v1749
      %v1864 = vadd.f32 %v1658, %v1752
      %v1865 = vadd.f32 %v1659, %v1757
      %v1866 = vadd.f32 %v1660, %v1760
      %v1867 = vadd.f32 %v1661, %v1765
      %v1868 = vadd.f32 %v1662, %v1768
      %v1869 = vadd.f32 %v1663, %v1773
      %v1870 = vadd.f32 %v1664, %v1776
      %v1871 = vadd.f32 %v1665, %v1781
      %v1872 = vadd.f32 %v1666, %v1784
      %v1873 = vadd.f32 %v1667, %v1789
      %v1874 = vadd.f32 %v1668, %v1792
      %v1875 = vadd.f32 %v1669, %v1797
      %v1876 = vadd.f32 %v1670, %v1800
      %v1877 = vadd.f32 %v1671, %v1805
      %v1878 = vadd.f32 %v1672, %v1808
      %v1879 = vadd.f32 %v1673, %v1813
      %v1880 = vadd.f32 %v1674, %v1816
      %v1881 = vadd.f32 %v1675, %v1821
      %v1882 = vadd.f32 %v1676, %v1824
      %v1883 = vadd.f32 %v1677, %v1829
      %v1884 = vadd.f32 %v1678, %v1832
      %v1885 = vadd.f32 %v1679, %v1837
      %v1886 = vadd.f32 %v1680, %v1840
      %v1887 = vadd.f32 %v1681, %v1845
      %v1888 = vadd.f32 %v1682, %v1848
      %v1889 = vadd.f32 %v1683, %v1853
      %v1890 = vadd.f32 %v1684, %v1856
      %v1892 = vshrl.u32 %v310, 16
      %v1894 = vrot.slane %v1892, 4
      %v1895 = vshll.u32 %v310, 16
      %v1897 = vrot.slane %v1895, 5
      %v1898 = vor.u32 %v1894, %v1897
      %v1899 = vrot.slane %v1898, 4
      %v1901 = vshll.u32 %v311, 16
      %v1903 = vrot.slane %v1901, 5
      %v1904 = vsel %vm319, %v1899, %v1903
      %v1905 = vshrl.u32 %v311, 16
      %v1907 = vrot.slane %v1905, 4
      %v1908 = vor.u32 %v1907, %v1903
      %v1909 = vrot.slane %v1908, 4
      %v1911 = vshll.u32 %v312, 16
      %v1913 = vrot.slane %v1911, 5
      %v1914 = vsel %vm319, %v1909, %v1913
      %s1915 = scalar_lea.vmem %s1, 8
      %v1916 = vld [vmem:[%s1915] sm:$0x3]
      %v1917 = vunpack.c.l.b16 %v1904
      %v1918 = vunpack.c.l.b16 %v1914
      %v1919 = vpack.c.b16 %v1918, %v1917
      %v1921 = vsel %vm754, %v1919, 0
      %v1924 = vsel %vm803, %v1916, 0
      %1926 = vmatprep.subr.bf16.mxu0 0
      %1927 = vmatpush1.bf16.msra.mxu0 %v1924
      %1928 = vmatprep.subr.bf16.mxu0 0
      %1929 = vmatpush1.bf16.msra.mxu0 0
      %1930 = vmatprep.subr.bf16.mxu0 0
      %1931 = vmatpush1.bf16.msra.mxu0 0
      %1932 = vmatprep.subr.bf16.mxu0 0
      %1933 = vmatpush1.bf16.msra.mxu0 0
      %1934 = vmatprep.subr.bf16.mxu0 0
      %1935 = vmatpush1.bf16.msra.mxu0 0
      %1936 = vmatprep.subr.bf16.mxu0 0
      %1937 = vmatpush1.bf16.msra.mxu0 0
      %1938 = vmatprep.subr.bf16.mxu0 0
      %1939 = vmatpush1.bf16.msra.mxu0 0
      %1940 = vmatprep.subr.bf16.mxu0 0
      %1941 = vmatpush1.bf16.msra.mxu0 0
      %1942 = vmatprep.subr.bf16.mxu0 0
      %1943 = vmatpush1.bf16.msra.mxu0 0
      %1944 = vmatprep.subr.bf16.mxu0 0
      %1945 = vmatpush1.bf16.msra.mxu0 0
      %1946 = vmatprep.subr.bf16.mxu0 0
      %1947 = vmatpush1.bf16.msra.mxu0 0
      %1948 = vmatprep.subr.bf16.mxu0 0
      %1949 = vmatpush1.bf16.msra.mxu0 0
      %1950 = vmatprep.subr.bf16.mxu0 0
      %1951 = vmatpush1.bf16.msra.mxu0 0
      %1952 = vmatprep.subr.bf16.mxu0 0
      %1953 = vmatpush1.bf16.msra.mxu0 0
      %1954 = vmatprep.subr.bf16.mxu0 0
      %1955 = vmatpush1.bf16.msra.mxu0 0
      %1956 = vmatprep.subr.bf16.mxu0 0
      %1957 = vmatpush1.bf16.msra.mxu0 0
      %1958 = vmatprep.mubr.bf16.mxu0 0
      %1959 = vmatmul.mubr.bf16.gmra.mrb[0].mxu0 %v759
      %v1960 = vpop.f32.mrb[0].mxu0
      %v1961 = vadd.f32 0.0, %v1960
      %v1962 = vpop.f32.mrb[0].mxu0
      %v1963 = vpop.f32.mrb[0].mxu0
      %v1964 = vadd.f32 0.0, %v1963
      %v1965 = vpop.f32.mrb[0].mxu0
      %1966 = vmatprep.mubr.bf16.mxu0 0
      %1967 = vmatmul.mubr.bf16.gmra.mrb[0].mxu0 %v762
      %v1968 = vpop.f32.mrb[0].mxu0
      %v1969 = vadd.f32 0.0, %v1968
      %v1970 = vpop.f32.mrb[0].mxu0
      %v1971 = vpop.f32.mrb[0].mxu0
      %v1972 = vadd.f32 0.0, %v1971
      %v1973 = vpop.f32.mrb[0].mxu0
      %1974 = vmatprep.mubr.bf16.mxu0 0
      %1975 = vmatmul.mubr.bf16.gmra.mrb[0].mxu0 %v765
      %v1976 = vpop.f32.mrb[0].mxu0
      %v1977 = vadd.f32 0.0, %v1976
      %v1978 = vpop.f32.mrb[0].mxu0
      %v1979 = vpop.f32.mrb[0].mxu0
      %v1980 = vadd.f32 0.0, %v1979
      %v1981 = vpop.f32.mrb[0].mxu0
      %1982 = vmatprep.mubr.bf16.mxu0 0
      %1983 = vmatmul.mubr.bf16.gmra.mrb[0].mxu0 %v768
      %v1984 = vpop.f32.mrb[0].mxu0
      %v1985 = vadd.f32 0.0, %v1984
      %v1986 = vpop.f32.mrb[0].mxu0
      %v1987 = vpop.f32.mrb[0].mxu0
      %v1988 = vadd.f32 0.0, %v1987
      %v1989 = vpop.f32.mrb[0].mxu0
      %1990 = vmatprep.mubr.bf16.mxu0 0
      %1991 = vmatmul.mubr.bf16.gmra.mrb[0].mxu0 %v771
      %v1992 = vpop.f32.mrb[0].mxu0
      %v1993 = vadd.f32 0.0, %v1992
      %v1994 = vpop.f32.mrb[0].mxu0
      %v1995 = vpop.f32.mrb[0].mxu0
      %v1996 = vadd.f32 0.0, %v1995
      %v1997 = vpop.f32.mrb[0].mxu0
      %1998 = vmatprep.mubr.bf16.mxu0 0
      %1999 = vmatmul.mubr.bf16.gmra.mrb[0].mxu0 %v774
      %v2000 = vpop.f32.mrb[0].mxu0
      %v2001 = vadd.f32 0.0, %v2000
      %v2002 = vpop.f32.mrb[0].mxu0
      %v2003 = vpop.f32.mrb[0].mxu0
      %v2004 = vadd.f32 0.0, %v2003
      %v2005 = vpop.f32.mrb[0].mxu0
      %2006 = vmatprep.mubr.bf16.mxu0 0
      %2007 = vmatmul.mubr.bf16.gmra.mrb[0].mxu0 %v777
      %v2008 = vpop.f32.mrb[0].mxu0
      %v2009 = vadd.f32 0.0, %v2008
      %v2010 = vpop.f32.mrb[0].mxu0
      %v2011 = vpop.f32.mrb[0].mxu0
      %v2012 = vadd.f32 0.0, %v2011
      %v2013 = vpop.f32.mrb[0].mxu0
      %2014 = vmatprep.mubr.bf16.mxu0 0
      %2015 = vmatmul.mubr.bf16.gmra.mrb[0].mxu0 %v780
      %v2016 = vpop.f32.mrb[0].mxu0
      %v2017 = vadd.f32 0.0, %v2016
      %v2018 = vpop.f32.mrb[0].mxu0
      %v2019 = vpop.f32.mrb[0].mxu0
      %v2020 = vadd.f32 0.0, %v2019
      %v2021 = vpop.f32.mrb[0].mxu0
      %2022 = vmatprep.mubr.bf16.mxu0 0
      %2023 = vmatmul.mubr.bf16.gmra.mrb[0].mxu0 %v783
      %v2024 = vpop.f32.mrb[0].mxu0
      %v2025 = vadd.f32 0.0, %v2024
      %v2026 = vpop.f32.mrb[0].mxu0
      %v2027 = vpop.f32.mrb[0].mxu0
      %v2028 = vadd.f32 0.0, %v2027
      %v2029 = vpop.f32.mrb[0].mxu0
      %2030 = vmatprep.mubr.bf16.mxu0 0
      %2031 = vmatmul.mubr.bf16.gmra.mrb[0].mxu0 %v786
      %v2032 = vpop.f32.mrb[0].mxu0
      %v2033 = vadd.f32 0.0, %v2032
      %v2034 = vpop.f32.mrb[0].mxu0
      %v2035 = vpop.f32.mrb[0].mxu0
      %v2036 = vadd.f32 0.0, %v2035
      %v2037 = vpop.f32.mrb[0].mxu0
      %2038 = vmatprep.mubr.bf16.mxu0 0
      %2039 = vmatmul.mubr.bf16.gmra.mrb[0].mxu0 %v789
      %v2040 = vpop.f32.mrb[0].mxu0
      %v2041 = vadd.f32 0.0, %v2040
      %v2042 = vpop.f32.mrb[0].mxu0
      %v2043 = vpop.f32.mrb[0].mxu0
      %v2044 = vadd.f32 0.0, %v2043
      %v2045 = vpop.f32.mrb[0].mxu0
      %2046 = vmatprep.mubr.bf16.mxu0 0
      %2047 = vmatmul.mubr.bf16.gmra.mrb[0].mxu0 %v792
      %v2048 = vpop.f32.mrb[0].mxu0
      %v2049 = vadd.f32 0.0, %v2048
      %v2050 = vpop.f32.mrb[0].mxu0
      %v2051 = vpop.f32.mrb[0].mxu0
      %v2052 = vadd.f32 0.0, %v2051
      %v2053 = vpop.f32.mrb[0].mxu0
      %2054 = vmatprep.mubr.bf16.mxu0 0
      %2055 = vmatmul.mubr.bf16.gmra.mrb[0].mxu0 %v795
      %v2056 = vpop.f32.mrb[0].mxu0
      %v2057 = vadd.f32 0.0, %v2056
      %v2058 = vpop.f32.mrb[0].mxu0
      %v2059 = vpop.f32.mrb[0].mxu0
      %v2060 = vadd.f32 0.0, %v2059
      %v2061 = vpop.f32.mrb[0].mxu0
      %2062 = vmatprep.mubr.bf16.mxu0 0
      %2063 = vmatmul.mubr.bf16.gmra.mrb[0].mxu0 %v798
      %v2064 = vpop.f32.mrb[0].mxu0
      %v2065 = vadd.f32 0.0, %v2064
      %v2066 = vpop.f32.mrb[0].mxu0
      %v2067 = vpop.f32.mrb[0].mxu0
      %v2068 = vadd.f32 0.0, %v2067
      %v2069 = vpop.f32.mrb[0].mxu0
      %2070 = vmatprep.mubr.bf16.mxu0 0
      %2071 = vmatmul.mubr.bf16.gmra.mrb[0].mxu0 %v801
      %v2072 = vpop.f32.mrb[0].mxu0
      %v2073 = vadd.f32 0.0, %v2072
      %v2074 = vpop.f32.mrb[0].mxu0
      %v2075 = vpop.f32.mrb[0].mxu0
      %v2076 = vadd.f32 0.0, %v2075
      %v2077 = vpop.f32.mrb[0].mxu0
      %2078 = vmatprep.mubr.bf16.mxu0 0
      %2079 = vmatmul.mubr.bf16.gmra.mrb[0].mxu0 %v1921
      %v2080 = vpop.f32.mrb[0].mxu0
      %v2081 = vadd.f32 0.0, %v2080
      %v2082 = vpop.f32.mrb[0].mxu0
      %v2083 = vpop.f32.mrb[0].mxu0
      %v2084 = vadd.f32 0.0, %v2083
      %v2085 = vpop.f32.mrb[0].mxu0
      %2086 = vdwg.mxu0
      %v2087 = vadd.f32 %v1859, %v1961
      %v2088 = vadd.f32 %v1860, %v1964
      %v2089 = vadd.f32 %v1861, %v1969
      %v2090 = vadd.f32 %v1862, %v1972
      %v2091 = vadd.f32 %v1863, %v1977
      %v2092 = vadd.f32 %v1864, %v1980
      %v2093 = vadd.f32 %v1865, %v1985
      %v2094 = vadd.f32 %v1866, %v1988
      %v2095 = vadd.f32 %v1867, %v1993
      %v2096 = vadd.f32 %v1868, %v1996
      %v2097 = vadd.f32 %v1869, %v2001
      %v2098 = vadd.f32 %v1870, %v2004
      %v2099 = vadd.f32 %v1871, %v2009
      %v2100 = vadd.f32 %v1872, %v2012
      %v2101 = vadd.f32 %v1873, %v2017
      %v2102 = vadd.f32 %v1874, %v2020
      %v2103 = vadd.f32 %v1875, %v2025
      %v2104 = vadd.f32 %v1876, %v2028
      %v2105 = vadd.f32 %v1877, %v2033
      %v2106 = vadd.f32 %v1878, %v2036
      %v2107 = vadd.f32 %v1879, %v2041
      %v2108 = vadd.f32 %v1880, %v2044
      %v2109 = vadd.f32 %v1881, %v2049
      %v2110 = vadd.f32 %v1882, %v2052
      %v2111 = vadd.f32 %v1883, %v2057
      %v2112 = vadd.f32 %v1884, %v2060
      %v2113 = vadd.f32 %v1885, %v2065
      %v2114 = vadd.f32 %v1886, %v2068
      %v2115 = vadd.f32 %v1887, %v2073
      %v2116 = vadd.f32 %v1888, %v2076
      %v2117 = vadd.f32 %v1889, %v2081
      %v2118 = vadd.f32 %v1890, %v2084
      %v2120 = vrot.slane %v310, 5
      %v2121 = vrot.slane %v2120, 4
      %v2122 = vrot.slane %v311, 5
      %v2123 = vsel %vm1278, %v2121, %v2122
      %v2124 = vrot.slane %v2122, 4
      %v2125 = vrot.slane %v312, 5
      %v2126 = vsel %vm1278, %v2124, %v2125
      %s2127 = scalar_lea.vmem %s1, 10
      %v2128 = vld [vmem:[%s2127] sm:$0x3]
      %v2129 = vunpack.c.l.b16 %v2123
      %v2130 = vunpack.c.l.b16 %v2126
      %v2131 = vpack.c.b16 %v2130, %v2129
      %v2133 = vsel %vm754, %v2131, 0
      %v2136 = vsel %vm803, %v2128, 0
      %2138 = vmatprep.subr.bf16.mxu0 0
      %2139 = vmatpush1.bf16.msra.mxu0 %v2136
      %2140 = vmatprep.subr.bf16.mxu0 0
      %2141 = vmatpush1.bf16.msra.mxu0 0
      %2142 = vmatprep.subr.bf16.mxu0 0
      %2143 = vmatpush1.bf16.msra.mxu0 0
      %2144 = vmatprep.subr.bf16.mxu0 0
      %2145 = vmatpush1.bf16.msra.mxu0 0
      %2146 = vmatprep.subr.bf16.mxu0 0
      %2147 = vmatpush1.bf16.msra.mxu0 0
      %2148 = vmatprep.subr.bf16.mxu0 0
      %2149 = vmatpush1.bf16.msra.mxu0 0
      %2150 = vmatprep.subr.bf16.mxu0 0
      %2151 = vmatpush1.bf16.msra.mxu0 0
      %2152 = vmatprep.subr.bf16.mxu0 0
      %2153 = vmatpush1.bf16.msra.mxu0 0
      %2154 = vmatprep.subr.bf16.mxu0 0
      %2155 = vmatpush1.bf16.msra.mxu0 0
      %2156 = vmatprep.subr.bf16.mxu0 0
      %2157 = vmatpush1.bf16.msra.mxu0 0
      %2158 = vmatprep.subr.bf16.mxu0 0
      %2159 = vmatpush1.bf16.msra.mxu0 0
      %2160 = vmatprep.subr.bf16.mxu0 0
      %2161 = vmatpush1.bf16.msra.mxu0 0
      %2162 = vmatprep.subr.bf16.mxu0 0
      %2163 = vmatpush1.bf16.msra.mxu0 0
      %2164 = vmatprep.subr.bf16.mxu0 0
      %2165 = vmatpush1.bf16.msra.mxu0 0
      %2166 = vmatprep.subr.bf16.mxu0 0
      %2167 = vmatpush1.bf16.msra.mxu0 0
      %2168 = vmatprep.subr.bf16.mxu0 0
      %2169 = vmatpush1.bf16.msra.mxu0 0
      %2170 = vmatprep.mubr.bf16.mxu0 0
      %2171 = vmatmul.mubr.bf16.gmra.mrb[0].mxu0 %v1445
      %v2172 = vpop.f32.mrb[0].mxu0
      %v2173 = vadd.f32 0.0, %v2172
      %v2174 = vpop.f32.mrb[0].mxu0
      %v2175 = vpop.f32.mrb[0].mxu0
      %v2176 = vadd.f32 0.0, %v2175
      %v2177 = vpop.f32.mrb[0].mxu0
      %2178 = vmatprep.mubr.bf16.mxu0 0
      %2179 = vmatmul.mubr.bf16.gmra.mrb[0].mxu0 %v1448
      %v2180 = vpop.f32.mrb[0].mxu0
      %v2181 = vadd.f32 0.0, %v2180
      %v2182 = vpop.f32.mrb[0].mxu0
      %v2183 = vpop.f32.mrb[0].mxu0
      %v2184 = vadd.f32 0.0, %v2183
      %v2185 = vpop.f32.mrb[0].mxu0
      %2186 = vmatprep.mubr.bf16.mxu0 0
      %2187 = vmatmul.mubr.bf16.gmra.mrb[0].mxu0 %v1451
      %v2188 = vpop.f32.mrb[0].mxu0
      %v2189 = vadd.f32 0.0, %v2188
      %v2190 = vpop.f32.mrb[0].mxu0
      %v2191 = vpop.f32.mrb[0].mxu0
      %v2192 = vadd.f32 0.0, %v2191
      %v2193 = vpop.f32.mrb[0].mxu0
      %2194 = vmatprep.mubr.bf16.mxu0 0
      %2195 = vmatmul.mubr.bf16.gmra.mrb[0].mxu0 %v1454
      %v2196 = vpop.f32.mrb[0].mxu0
      %v2197 = vadd.f32 0.0, %v2196
      %v2198 = vpop.f32.mrb[0].mxu0
      %v2199 = vpop.f32.mrb[0].mxu0
      %v2200 = vadd.f32 0.0, %v2199
      %v2201 = vpop.f32.mrb[0].mxu0
      %2202 = vmatprep.mubr.bf16.mxu0 0
      %2203 = vmatmul.mubr.bf16.gmra.mrb[0].mxu0 %v1457
      %v2204 = vpop.f32.mrb[0].mxu0
      %v2205 = vadd.f32 0.0, %v2204
      %v2206 = vpop.f32.mrb[0].mxu0
      %v2207 = vpop.f32.mrb[0].mxu0
      %v2208 = vadd.f32 0.0, %v2207
      %v2209 = vpop.f32.mrb[0].mxu0
      %2210 = vmatprep.mubr.bf16.mxu0 0
      %2211 = vmatmul.mubr.bf16.gmra.mrb[0].mxu0 %v1460
      %v2212 = vpop.f32.mrb[0].mxu0
      %v2213 = vadd.f32 0.0, %v2212
      %v2214 = vpop.f32.mrb[0].mxu0
      %v2215 = vpop.f32.mrb[0].mxu0
      %v2216 = vadd.f32 0.0, %v2215
      %v2217 = vpop.f32.mrb[0].mxu0
      %2218 = vmatprep.mubr.bf16.mxu0 0
      %2219 = vmatmul.mubr.bf16.gmra.mrb[0].mxu0 %v1463
      %v2220 = vpop.f32.mrb[0].mxu0
      %v2221 = vadd.f32 0.0, %v2220
      %v2222 = vpop.f32.mrb[0].mxu0
      %v2223 = vpop.f32.mrb[0].mxu0
      %v2224 = vadd.f32 0.0, %v2223
      %v2225 = vpop.f32.mrb[0].mxu0
      %2226 = vmatprep.mubr.bf16.mxu0 0
      %2227 = vmatmul.mubr.bf16.gmra.mrb[0].mxu0 %v1466
      %v2228 = vpop.f32.mrb[0].mxu0
      %v2229 = vadd.f32 0.0, %v2228
      %v2230 = vpop.f32.mrb[0].mxu0
      %v2231 = vpop.f32.mrb[0].mxu0
      %v2232 = vadd.f32 0.0, %v2231
      %v2233 = vpop.f32.mrb[0].mxu0
      %2234 = vmatprep.mubr.bf16.mxu0 0
      %2235 = vmatmul.mubr.bf16.gmra.mrb[0].mxu0 %v1469
      %v2236 = vpop.f32.mrb[0].mxu0
      %v2237 = vadd.f32 0.0, %v2236
      %v2238 = vpop.f32.mrb[0].mxu0
      %v2239 = vpop.f32.mrb[0].mxu0
      %v2240 = vadd.f32 0.0, %v2239
      %v2241 = vpop.f32.mrb[0].mxu0
      %2242 = vmatprep.mubr.bf16.mxu0 0
      %2243 = vmatmul.mubr.bf16.gmra.mrb[0].mxu0 %v1472
      %v2244 = vpop.f32.mrb[0].mxu0
      %v2245 = vadd.f32 0.0, %v2244
      %v2246 = vpop.f32.mrb[0].mxu0
      %v2247 = vpop.f32.mrb[0].mxu0
      %v2248 = vadd.f32 0.0, %v2247
      %v2249 = vpop.f32.mrb[0].mxu0
      %2250 = vmatprep.mubr.bf16.mxu0 0
      %2251 = vmatmul.mubr.bf16.gmra.mrb[0].mxu0 %v1475
      %v2252 = vpop.f32.mrb[0].mxu0
      %v2253 = vadd.f32 0.0, %v2252
      %v2254 = vpop.f32.mrb[0].mxu0
      %v2255 = vpop.f32.mrb[0].mxu0
      %v2256 = vadd.f32 0.0, %v2255
      %v2257 = vpop.f32.mrb[0].mxu0
      %2258 = vmatprep.mubr.bf16.mxu0 0
      %2259 = vmatmul.mubr.bf16.gmra.mrb[0].mxu0 %v1478
      %v2260 = vpop.f32.mrb[0].mxu0
      %v2261 = vadd.f32 0.0, %v2260
      %v2262 = vpop.f32.mrb[0].mxu0
      %v2263 = vpop.f32.mrb[0].mxu0
      %v2264 = vadd.f32 0.0, %v2263
      %v2265 = vpop.f32.mrb[0].mxu0
      %2266 = vmatprep.mubr.bf16.mxu0 0
      %2267 = vmatmul.mubr.bf16.gmra.mrb[0].mxu0 %v1481
      %v2268 = vpop.f32.mrb[0].mxu0
      %v2269 = vadd.f32 0.0, %v2268
      %v2270 = vpop.f32.mrb[0].mxu0
      %v2271 = vpop.f32.mrb[0].mxu0
      %v2272 = vadd.f32 0.0, %v2271
      %v2273 = vpop.f32.mrb[0].mxu0
      %2274 = vmatprep.mubr.bf16.mxu0 0
      %2275 = vmatmul.mubr.bf16.gmra.mrb[0].mxu0 %v1484
      %v2276 = vpop.f32.mrb[0].mxu0
      %v2277 = vadd.f32 0.0, %v2276
      %v2278 = vpop.f32.mrb[0].mxu0
      %v2279 = vpop.f32.mrb[0].mxu0
      %v2280 = vadd.f32 0.0, %v2279
      %v2281 = vpop.f32.mrb[0].mxu0
      %2282 = vmatprep.mubr.bf16.mxu0 0
      %2283 = vmatmul.mubr.bf16.gmra.mrb[0].mxu0 %v1487
      %v2284 = vpop.f32.mrb[0].mxu0
      %v2285 = vadd.f32 0.0, %v2284
      %v2286 = vpop.f32.mrb[0].mxu0
      %v2287 = vpop.f32.mrb[0].mxu0
      %v2288 = vadd.f32 0.0, %v2287
      %v2289 = vpop.f32.mrb[0].mxu0
      %2290 = vmatprep.mubr.bf16.mxu0 0
      %2291 = vmatmul.mubr.bf16.gmra.mrb[0].mxu0 %v2133
      %v2292 = vpop.f32.mrb[0].mxu0
      %v2293 = vadd.f32 0.0, %v2292
      %v2294 = vpop.f32.mrb[0].mxu0
      %v2295 = vpop.f32.mrb[0].mxu0
      %v2296 = vadd.f32 0.0, %v2295
      %v2297 = vpop.f32.mrb[0].mxu0
      %2298 = vdwg.mxu0
      %v2299 = vadd.f32 %v2087, %v2173
      %v2300 = vadd.f32 %v2088, %v2176
      %v2301 = vadd.f32 %v2089, %v2181
      %v2302 = vadd.f32 %v2090, %v2184
      %v2303 = vadd.f32 %v2091, %v2189
      %v2304 = vadd.f32 %v2092, %v2192
      %v2305 = vadd.f32 %v2093, %v2197
      %v2306 = vadd.f32 %v2094, %v2200
      %v2307 = vadd.f32 %v2095, %v2205
      %v2308 = vadd.f32 %v2096, %v2208
      %v2309 = vadd.f32 %v2097, %v2213
      %v2310 = vadd.f32 %v2098, %v2216
      %v2311 = vadd.f32 %v2099, %v2221
      %v2312 = vadd.f32 %v2100, %v2224
      %v2313 = vadd.f32 %v2101, %v2229
      %v2314 = vadd.f32 %v2102, %v2232
      %v2315 = vadd.f32 %v2103, %v2237
      %v2316 = vadd.f32 %v2104, %v2240
      %v2317 = vadd.f32 %v2105, %v2245
      %v2318 = vadd.f32 %v2106, %v2248
      %v2319 = vadd.f32 %v2107, %v2253
      %v2320 = vadd.f32 %v2108, %v2256
      %v2321 = vadd.f32 %v2109, %v2261
      %v2322 = vadd.f32 %v2110, %v2264
      %v2323 = vadd.f32 %v2111, %v2269
      %v2324 = vadd.f32 %v2112, %v2272
      %v2325 = vadd.f32 %v2113, %v2277
      %v2326 = vadd.f32 %v2114, %v2280
      %v2327 = vadd.f32 %v2115, %v2285
      %v2328 = vadd.f32 %v2116, %v2288
      %v2329 = vadd.f32 %v2117, %v2293
      %v2330 = vadd.f32 %v2118, %v2296
      %s2331 = scalar_lea.vmem %s1, 12
      %v2332 = vld [vmem:[%s2331] sm:$0x3]
      %v2335 = vunpack.c.l.b16 %v313
      %v2336 = vunpack.c.l.b16 %v314
      %v2337 = vpack.c.b16 %v2336, %v2335
      %v2339 = vsel %vm754, %v2337, 0
      %v2342 = vsel %vm803, %v2332, 0
      %2344 = vmatprep.subr.bf16.mxu0 0
      %2345 = vmatpush1.bf16.msra.mxu0 %v2342
      %2346 = vmatprep.subr.bf16.mxu0 0
      %2347 = vmatpush1.bf16.msra.mxu0 0
      %2348 = vmatprep.subr.bf16.mxu0 0
      %2349 = vmatpush1.bf16.msra.mxu0 0
      %2350 = vmatprep.subr.bf16.mxu0 0
      %2351 = vmatpush1.bf16.msra.mxu0 0
      %2352 = vmatprep.subr.bf16.mxu0 0
      %2353 = vmatpush1.bf16.msra.mxu0 0
      %2354 = vmatprep.subr.bf16.mxu0 0
      %2355 = vmatpush1.bf16.msra.mxu0 0
      %2356 = vmatprep.subr.bf16.mxu0 0
      %2357 = vmatpush1.bf16.msra.mxu0 0
      %2358 = vmatprep.subr.bf16.mxu0 0
      %2359 = vmatpush1.bf16.msra.mxu0 0
      %2360 = vmatprep.subr.bf16.mxu0 0
      %2361 = vmatpush1.bf16.msra.mxu0 0
      %2362 = vmatprep.subr.bf16.mxu0 0
      %2363 = vmatpush1.bf16.msra.mxu0 0
      %2364 = vmatprep.subr.bf16.mxu0 0
      %2365 = vmatpush1.bf16.msra.mxu0 0
      %2366 = vmatprep.subr.bf16.mxu0 0
      %2367 = vmatpush1.bf16.msra.mxu0 0
      %2368 = vmatprep.subr.bf16.mxu0 0
      %2369 = vmatpush1.bf16.msra.mxu0 0
      %2370 = vmatprep.subr.bf16.mxu0 0
      %2371 = vmatpush1.bf16.msra.mxu0 0
      %2372 = vmatprep.subr.bf16.mxu0 0
      %2373 = vmatpush1.bf16.msra.mxu0 0
      %2374 = vmatprep.subr.bf16.mxu0 0
      %2375 = vmatpush1.bf16.msra.mxu0 0
      %2376 = vmatprep.mubr.bf16.mxu0 0
      %2377 = vmatmul.mubr.bf16.gmra.mrb[0].mxu0 %v1055
      %v2378 = vpop.f32.mrb[0].mxu0
      %v2379 = vadd.f32 0.0, %v2378
      %v2380 = vpop.f32.mrb[0].mxu0
      %v2381 = vpop.f32.mrb[0].mxu0
      %v2382 = vadd.f32 0.0, %v2381
      %v2383 = vpop.f32.mrb[0].mxu0
      %2384 = vmatprep.mubr.bf16.mxu0 0
      %2385 = vmatmul.mubr.bf16.gmra.mrb[0].mxu0 %v1058
      %v2386 = vpop.f32.mrb[0].mxu0
      %v2387 = vadd.f32 0.0, %v2386
      %v2388 = vpop.f32.mrb[0].mxu0
      %v2389 = vpop.f32.mrb[0].mxu0
      %v2390 = vadd.f32 0.0, %v2389
      %v2391 = vpop.f32.mrb[0].mxu0
      %2392 = vmatprep.mubr.bf16.mxu0 0
      %2393 = vmatmul.mubr.bf16.gmra.mrb[0].mxu0 %v1061
      %v2394 = vpop.f32.mrb[0].mxu0
      %v2395 = vadd.f32 0.0, %v2394
      %v2396 = vpop.f32.mrb[0].mxu0
      %v2397 = vpop.f32.mrb[0].mxu0
      %v2398 = vadd.f32 0.0, %v2397
      %v2399 = vpop.f32.mrb[0].mxu0
      %2400 = vmatprep.mubr.bf16.mxu0 0
      %2401 = vmatmul.mubr.bf16.gmra.mrb[0].mxu0 %v1064
      %v2402 = vpop.f32.mrb[0].mxu0
      %v2403 = vadd.f32 0.0, %v2402
      %v2404 = vpop.f32.mrb[0].mxu0
      %v2405 = vpop.f32.mrb[0].mxu0
      %v2406 = vadd.f32 0.0, %v2405
      %v2407 = vpop.f32.mrb[0].mxu0
      %2408 = vmatprep.mubr.bf16.mxu0 0
      %2409 = vmatmul.mubr.bf16.gmra.mrb[0].mxu0 %v1067
      %v2410 = vpop.f32.mrb[0].mxu0
      %v2411 = vadd.f32 0.0, %v2410
      %v2412 = vpop.f32.mrb[0].mxu0
      %v2413 = vpop.f32.mrb[0].mxu0
      %v2414 = vadd.f32 0.0, %v2413
      %v2415 = vpop.f32.mrb[0].mxu0
      %2416 = vmatprep.mubr.bf16.mxu0 0
      %2417 = vmatmul.mubr.bf16.gmra.mrb[0].mxu0 %v1070
      %v2418 = vpop.f32.mrb[0].mxu0
      %v2419 = vadd.f32 0.0, %v2418
      %v2420 = vpop.f32.mrb[0].mxu0
      %v2421 = vpop.f32.mrb[0].mxu0
      %v2422 = vadd.f32 0.0, %v2421
      %v2423 = vpop.f32.mrb[0].mxu0
      %2424 = vmatprep.mubr.bf16.mxu0 0
      %2425 = vmatmul.mubr.bf16.gmra.mrb[0].mxu0 %v1073
      %v2426 = vpop.f32.mrb[0].mxu0
      %v2427 = vadd.f32 0.0, %v2426
      %v2428 = vpop.f32.mrb[0].mxu0
      %v2429 = vpop.f32.mrb[0].mxu0
      %v2430 = vadd.f32 0.0, %v2429
      %v2431 = vpop.f32.mrb[0].mxu0
      %2432 = vmatprep.mubr.bf16.mxu0 0
      %2433 = vmatmul.mubr.bf16.gmra.mrb[0].mxu0 %v1076
      %v2434 = vpop.f32.mrb[0].mxu0
      %v2435 = vadd.f32 0.0, %v2434
      %v2436 = vpop.f32.mrb[0].mxu0
      %v2437 = vpop.f32.mrb[0].mxu0
      %v2438 = vadd.f32 0.0, %v2437
      %v2439 = vpop.f32.mrb[0].mxu0
      %2440 = vmatprep.mubr.bf16.mxu0 0
      %2441 = vmatmul.mubr.bf16.gmra.mrb[0].mxu0 %v1079
      %v2442 = vpop.f32.mrb[0].mxu0
      %v2443 = vadd.f32 0.0, %v2442
      %v2444 = vpop.f32.mrb[0].mxu0
      %v2445 = vpop.f32.mrb[0].mxu0
      %v2446 = vadd.f32 0.0, %v2445
      %v2447 = vpop.f32.mrb[0].mxu0
      %2448 = vmatprep.mubr.bf16.mxu0 0
      %2449 = vmatmul.mubr.bf16.gmra.mrb[0].mxu0 %v1082
      %v2450 = vpop.f32.mrb[0].mxu0
      %v2451 = vadd.f32 0.0, %v2450
      %v2452 = vpop.f32.mrb[0].mxu0
      %v2453 = vpop.f32.mrb[0].mxu0
      %v2454 = vadd.f32 0.0, %v2453
      %v2455 = vpop.f32.mrb[0].mxu0
      %2456 = vmatprep.mubr.bf16.mxu0 0
      %2457 = vmatmul.mubr.bf16.gmra.mrb[0].mxu0 %v1085
      %v2458 = vpop.f32.mrb[0].mxu0
      %v2459 = vadd.f32 0.0, %v2458
      %v2460 = vpop.f32.mrb[0].mxu0
      %v2461 = vpop.f32.mrb[0].mxu0
      %v2462 = vadd.f32 0.0, %v2461
      %v2463 = vpop.f32.mrb[0].mxu0
      %2464 = vmatprep.mubr.bf16.mxu0 0
      %2465 = vmatmul.mubr.bf16.gmra.mrb[0].mxu0 %v1088
      %v2466 = vpop.f32.mrb[0].mxu0
      %v2467 = vadd.f32 0.0, %v2466
      %v2468 = vpop.f32.mrb[0].mxu0
      %v2469 = vpop.f32.mrb[0].mxu0
      %v2470 = vadd.f32 0.0, %v2469
      %v2471 = vpop.f32.mrb[0].mxu0
      %2472 = vmatprep.mubr.bf16.mxu0 0
      %2473 = vmatmul.mubr.bf16.gmra.mrb[0].mxu0 %v1091
      %v2474 = vpop.f32.mrb[0].mxu0
      %v2475 = vadd.f32 0.0, %v2474
      %v2476 = vpop.f32.mrb[0].mxu0
      %v2477 = vpop.f32.mrb[0].mxu0
      %v2478 = vadd.f32 0.0, %v2477
      %v2479 = vpop.f32.mrb[0].mxu0
      %2480 = vmatprep.mubr.bf16.mxu0 0
      %2481 = vmatmul.mubr.bf16.gmra.mrb[0].mxu0 %v1094
      %v2482 = vpop.f32.mrb[0].mxu0
      %v2483 = vadd.f32 0.0, %v2482
      %v2484 = vpop.f32.mrb[0].mxu0
      %v2485 = vpop.f32.mrb[0].mxu0
      %v2486 = vadd.f32 0.0, %v2485
      %v2487 = vpop.f32.mrb[0].mxu0
      %2488 = vmatprep.mubr.bf16.mxu0 0
      %2489 = vmatmul.mubr.bf16.gmra.mrb[0].mxu0 %v1693
      %v2490 = vpop.f32.mrb[0].mxu0
      %v2491 = vadd.f32 0.0, %v2490
      %v2492 = vpop.f32.mrb[0].mxu0
      %v2493 = vpop.f32.mrb[0].mxu0
      %v2494 = vadd.f32 0.0, %v2493
      %v2495 = vpop.f32.mrb[0].mxu0
      %2496 = vmatprep.mubr.bf16.mxu0 0
      %2497 = vmatmul.mubr.bf16.gmra.mrb[0].mxu0 %v2339
      %v2498 = vpop.f32.mrb[0].mxu0
      %v2499 = vadd.f32 0.0, %v2498
      %v2500 = vpop.f32.mrb[0].mxu0
      %v2501 = vpop.f32.mrb[0].mxu0
      %v2502 = vadd.f32 0.0, %v2501
      %v2503 = vpop.f32.mrb[0].mxu0
      %2504 = vdwg.mxu0
      %v2505 = vadd.f32 %v2299, %v2379
      %v2506 = vadd.f32 %v2300, %v2382
      %v2507 = vadd.f32 %v2301, %v2387
      %v2508 = vadd.f32 %v2302, %v2390
      %v2509 = vadd.f32 %v2303, %v2395
      %v2510 = vadd.f32 %v2304, %v2398
      %v2511 = vadd.f32 %v2305, %v2403
      %v2512 = vadd.f32 %v2306, %v2406
      %v2513 = vadd.f32 %v2307, %v2411
      %v2514 = vadd.f32 %v2308, %v2414
      %v2515 = vadd.f32 %v2309, %v2419
      %v2516 = vadd.f32 %v2310, %v2422
      %v2517 = vadd.f32 %v2311, %v2427
      %v2518 = vadd.f32 %v2312, %v2430
      %v2519 = vadd.f32 %v2313, %v2435
      %v2520 = vadd.f32 %v2314, %v2438
      %v2521 = vadd.f32 %v2315, %v2443
      %v2522 = vadd.f32 %v2316, %v2446
      %v2523 = vadd.f32 %v2317, %v2451
      %v2524 = vadd.f32 %v2318, %v2454
      %v2525 = vadd.f32 %v2319, %v2459
      %v2526 = vadd.f32 %v2320, %v2462
      %v2527 = vadd.f32 %v2321, %v2467
      %v2528 = vadd.f32 %v2322, %v2470
      %v2529 = vadd.f32 %v2323, %v2475
      %v2530 = vadd.f32 %v2324, %v2478
      %v2531 = vadd.f32 %v2325, %v2483
      %v2532 = vadd.f32 %v2326, %v2486
      %v2533 = vadd.f32 %v2327, %v2491
      %v2534 = vadd.f32 %v2328, %v2494
      %v2535 = vadd.f32 %v2329, %v2499
      %v2536 = vadd.f32 %v2330, %v2502
      %v2538 = vshrl.u32 %v313, 16
      %v2540 = vrot.slane %v2538, 4
      %v2541 = vshll.u32 %v313, 16
      %v2543 = vrot.slane %v2541, 5
      %v2544 = vor.u32 %v2540, %v2543
      %v2545 = vrot.slane %v2544, 4
      %v2547 = vshll.u32 %v314, 16
      %v2549 = vrot.slane %v2547, 5
      %v2550 = vsel %vm319, %v2545, %v2549
      %v2551 = vshrl.u32 %v314, 16
      %v2553 = vrot.slane %v2551, 4
      %v2554 = vor.u32 %v2553, %v2549
      %v2555 = vrot.slane %v2554, 4
      %v2557 = vshll.u32 %v315, 16
      %v2559 = vrot.slane %v2557, 5
      %v2560 = vsel %vm319, %v2555, %v2559
      %s2561 = scalar_lea.vmem %s1, 14
      %v2562 = vld [vmem:[%s2561] sm:$0x3]
      %v2563 = vunpack.c.l.b16 %v2550
      %v2564 = vunpack.c.l.b16 %v2560
      %v2565 = vpack.c.b16 %v2564, %v2563
      %v2567 = vsel %vm754, %v2565, 0
      %v2570 = vsel %vm803, %v2562, 0
      %2572 = vmatprep.subr.bf16.mxu0 0
      %2573 = vmatpush1.bf16.msra.mxu0 %v2570
      %2574 = vmatprep.subr.bf16.mxu0 0
      %2575 = vmatpush1.bf16.msra.mxu0 0
      %2576 = vmatprep.subr.bf16.mxu0 0
      %2577 = vmatpush1.bf16.msra.mxu0 0
      %2578 = vmatprep.subr.bf16.mxu0 0
      %2579 = vmatpush1.bf16.msra.mxu0 0
      %2580 = vmatprep.subr.bf16.mxu0 0
      %2581 = vmatpush1.bf16.msra.mxu0 0
      %2582 = vmatprep.subr.bf16.mxu0 0
      %2583 = vmatpush1.bf16.msra.mxu0 0
      %2584 = vmatprep.subr.bf16.mxu0 0
      %2585 = vmatpush1.bf16.msra.mxu0 0
      %2586 = vmatprep.subr.bf16.mxu0 0
      %2587 = vmatpush1.bf16.msra.mxu0 0
      %2588 = vmatprep.subr.bf16.mxu0 0
      %2589 = vmatpush1.bf16.msra.mxu0 0
      %2590 = vmatprep.subr.bf16.mxu0 0
      %2591 = vmatpush1.bf16.msra.mxu0 0
      %2592 = vmatprep.subr.bf16.mxu0 0
      %2593 = vmatpush1.bf16.msra.mxu0 0
      %2594 = vmatprep.subr.bf16.mxu0 0
      %2595 = vmatpush1.bf16.msra.mxu0 0
      %2596 = vmatprep.subr.bf16.mxu0 0
      %2597 = vmatpush1.bf16.msra.mxu0 0
      %2598 = vmatprep.subr.bf16.mxu0 0
      %2599 = vmatpush1.bf16.msra.mxu0 0
      %2600 = vmatprep.subr.bf16.mxu0 0
      %2601 = vmatpush1.bf16.msra.mxu0 0
      %2602 = vmatprep.subr.bf16.mxu0 0
      %2603 = vmatpush1.bf16.msra.mxu0 0
      %2604 = vmatprep.mubr.bf16.mxu0 0
      %2605 = vmatmul.mubr.bf16.gmra.mrb[0].mxu0 %v762
      %v2606 = vpop.f32.mrb[0].mxu0
      %v2607 = vadd.f32 0.0, %v2606
      %v2608 = vpop.f32.mrb[0].mxu0
      %v2609 = vpop.f32.mrb[0].mxu0
      %v2610 = vadd.f32 0.0, %v2609
      %v2611 = vpop.f32.mrb[0].mxu0
      %2612 = vmatprep.mubr.bf16.mxu0 0
      %2613 = vmatmul.mubr.bf16.gmra.mrb[0].mxu0 %v765
      %v2614 = vpop.f32.mrb[0].mxu0
      %v2615 = vadd.f32 0.0, %v2614
      %v2616 = vpop.f32.mrb[0].mxu0
      %v2617 = vpop.f32.mrb[0].mxu0
      %v2618 = vadd.f32 0.0, %v2617
      %v2619 = vpop.f32.mrb[0].mxu0
      %2620 = vmatprep.mubr.bf16.mxu0 0
      %2621 = vmatmul.mubr.bf16.gmra.mrb[0].mxu0 %v768
      %v2622 = vpop.f32.mrb[0].mxu0
      %v2623 = vadd.f32 0.0, %v2622
      %v2624 = vpop.f32.mrb[0].mxu0
      %v2625 = vpop.f32.mrb[0].mxu0
      %v2626 = vadd.f32 0.0, %v2625
      %v2627 = vpop.f32.mrb[0].mxu0
      %2628 = vmatprep.mubr.bf16.mxu0 0
      %2629 = vmatmul.mubr.bf16.gmra.mrb[0].mxu0 %v771
      %v2630 = vpop.f32.mrb[0].mxu0
      %v2631 = vadd.f32 0.0, %v2630
      %v2632 = vpop.f32.mrb[0].mxu0
      %v2633 = vpop.f32.mrb[0].mxu0
      %v2634 = vadd.f32 0.0, %v2633
      %v2635 = vpop.f32.mrb[0].mxu0
      %2636 = vmatprep.mubr.bf16.mxu0 0
      %2637 = vmatmul.mubr.bf16.gmra.mrb[0].mxu0 %v774
      %v2638 = vpop.f32.mrb[0].mxu0
      %v2639 = vadd.f32 0.0, %v2638
      %v2640 = vpop.f32.mrb[0].mxu0
      %v2641 = vpop.f32.mrb[0].mxu0
      %v2642 = vadd.f32 0.0, %v2641
      %v2643 = vpop.f32.mrb[0].mxu0
      %2644 = vmatprep.mubr.bf16.mxu0 0
      %2645 = vmatmul.mubr.bf16.gmra.mrb[0].mxu0 %v777
      %v2646 = vpop.f32.mrb[0].mxu0
      %v2647 = vadd.f32 0.0, %v2646
      %v2648 = vpop.f32.mrb[0].mxu0
      %v2649 = vpop.f32.mrb[0].mxu0
      %v2650 = vadd.f32 0.0, %v2649
      %v2651 = vpop.f32.mrb[0].mxu0
      %2652 = vmatprep.mubr.bf16.mxu0 0
      %2653 = vmatmul.mubr.bf16.gmra.mrb[0].mxu0 %v780
      %v2654 = vpop.f32.mrb[0].mxu0
      %v2655 = vadd.f32 0.0, %v2654
      %v2656 = vpop.f32.mrb[0].mxu0
      %v2657 = vpop.f32.mrb[0].mxu0
      %v2658 = vadd.f32 0.0, %v2657
      %v2659 = vpop.f32.mrb[0].mxu0
      %2660 = vmatprep.mubr.bf16.mxu0 0
      %2661 = vmatmul.mubr.bf16.gmra.mrb[0].mxu0 %v783
      %v2662 = vpop.f32.mrb[0].mxu0
      %v2663 = vadd.f32 0.0, %v2662
      %v2664 = vpop.f32.mrb[0].mxu0
      %v2665 = vpop.f32.mrb[0].mxu0
      %v2666 = vadd.f32 0.0, %v2665
      %v2667 = vpop.f32.mrb[0].mxu0
      %2668 = vmatprep.mubr.bf16.mxu0 0
      %2669 = vmatmul.mubr.bf16.gmra.mrb[0].mxu0 %v786
      %v2670 = vpop.f32.mrb[0].mxu0
      %v2671 = vadd.f32 0.0, %v2670
      %v2672 = vpop.f32.mrb[0].mxu0
      %v2673 = vpop.f32.mrb[0].mxu0
      %v2674 = vadd.f32 0.0, %v2673
      %v2675 = vpop.f32.mrb[0].mxu0
      %2676 = vmatprep.mubr.bf16.mxu0 0
      %2677 = vmatmul.mubr.bf16.gmra.mrb[0].mxu0 %v789
      %v2678 = vpop.f32.mrb[0].mxu0
      %v2679 = vadd.f32 0.0, %v2678
      %v2680 = vpop.f32.mrb[0].mxu0
      %v2681 = vpop.f32.mrb[0].mxu0
      %v2682 = vadd.f32 0.0, %v2681
      %v2683 = vpop.f32.mrb[0].mxu0
      %2684 = vmatprep.mubr.bf16.mxu0 0
      %2685 = vmatmul.mubr.bf16.gmra.mrb[0].mxu0 %v792
      %v2686 = vpop.f32.mrb[0].mxu0
      %v2687 = vadd.f32 0.0, %v2686
      %v2688 = vpop.f32.mrb[0].mxu0
      %v2689 = vpop.f32.mrb[0].mxu0
      %v2690 = vadd.f32 0.0, %v2689
      %v2691 = vpop.f32.mrb[0].mxu0
      %2692 = vmatprep.mubr.bf16.mxu0 0
      %2693 = vmatmul.mubr.bf16.gmra.mrb[0].mxu0 %v795
      %v2694 = vpop.f32.mrb[0].mxu0
      %v2695 = vadd.f32 0.0, %v2694
      %v2696 = vpop.f32.mrb[0].mxu0
      %v2697 = vpop.f32.mrb[0].mxu0
      %v2698 = vadd.f32 0.0, %v2697
      %v2699 = vpop.f32.mrb[0].mxu0
      %2700 = vmatprep.mubr.bf16.mxu0 0
      %2701 = vmatmul.mubr.bf16.gmra.mrb[0].mxu0 %v798
      %v2702 = vpop.f32.mrb[0].mxu0
      %v2703 = vadd.f32 0.0, %v2702
      %v2704 = vpop.f32.mrb[0].mxu0
      %v2705 = vpop.f32.mrb[0].mxu0
      %v2706 = vadd.f32 0.0, %v2705
      %v2707 = vpop.f32.mrb[0].mxu0
      %2708 = vmatprep.mubr.bf16.mxu0 0
      %2709 = vmatmul.mubr.bf16.gmra.mrb[0].mxu0 %v801
      %v2710 = vpop.f32.mrb[0].mxu0
      %v2711 = vadd.f32 0.0, %v2710
      %v2712 = vpop.f32.mrb[0].mxu0
      %v2713 = vpop.f32.mrb[0].mxu0
      %v2714 = vadd.f32 0.0, %v2713
      %v2715 = vpop.f32.mrb[0].mxu0
      %2716 = vmatprep.mubr.bf16.mxu0 0
      %2717 = vmatmul.mubr.bf16.gmra.mrb[0].mxu0 %v1921
      %v2718 = vpop.f32.mrb[0].mxu0
      %v2719 = vadd.f32 0.0, %v2718
      %v2720 = vpop.f32.mrb[0].mxu0
      %v2721 = vpop.f32.mrb[0].mxu0
      %v2722 = vadd.f32 0.0, %v2721
      %v2723 = vpop.f32.mrb[0].mxu0
      %2724 = vmatprep.mubr.bf16.mxu0 0
      %2725 = vmatmul.mubr.bf16.gmra.mrb[0].mxu0 %v2567
      %v2726 = vpop.f32.mrb[0].mxu0
      %v2727 = vadd.f32 0.0, %v2726
      %v2728 = vpop.f32.mrb[0].mxu0
      %v2729 = vpop.f32.mrb[0].mxu0
      %v2730 = vadd.f32 0.0, %v2729
      %v2731 = vpop.f32.mrb[0].mxu0
      %2732 = vdwg.mxu0
      %v2733 = vadd.f32 %v2505, %v2607
      %v2734 = vadd.f32 %v2506, %v2610
      %v2735 = vadd.f32 %v2507, %v2615
      %v2736 = vadd.f32 %v2508, %v2618
      %v2737 = vadd.f32 %v2509, %v2623
      %v2738 = vadd.f32 %v2510, %v2626
      %v2739 = vadd.f32 %v2511, %v2631
      %v2740 = vadd.f32 %v2512, %v2634
      %v2741 = vadd.f32 %v2513, %v2639
      %v2742 = vadd.f32 %v2514, %v2642
      %v2743 = vadd.f32 %v2515, %v2647
      %v2744 = vadd.f32 %v2516, %v2650
      %v2745 = vadd.f32 %v2517, %v2655
      %v2746 = vadd.f32 %v2518, %v2658
      %v2747 = vadd.f32 %v2519, %v2663
      %v2748 = vadd.f32 %v2520, %v2666
      %v2749 = vadd.f32 %v2521, %v2671
      %v2750 = vadd.f32 %v2522, %v2674
      %v2751 = vadd.f32 %v2523, %v2679
      %v2752 = vadd.f32 %v2524, %v2682
      %v2753 = vadd.f32 %v2525, %v2687
      %v2754 = vadd.f32 %v2526, %v2690
      %v2755 = vadd.f32 %v2527, %v2695
      %v2756 = vadd.f32 %v2528, %v2698
      %v2757 = vadd.f32 %v2529, %v2703
      %v2758 = vadd.f32 %v2530, %v2706
      %v2759 = vadd.f32 %v2531, %v2711
      %v2760 = vadd.f32 %v2532, %v2714
      %v2761 = vadd.f32 %v2533, %v2719
      %v2762 = vadd.f32 %v2534, %v2722
      %v2763 = vadd.f32 %v2535, %v2727
      %v2764 = vadd.f32 %v2536, %v2730
      %v2766 = vrot.slane %v313, 5
      %v2767 = vrot.slane %v2766, 4
      %v2768 = vrot.slane %v314, 5
      %v2769 = vsel %vm1278, %v2767, %v2768
      %v2770 = vrot.slane %v2768, 4
      %v2771 = vrot.slane %v315, 5
      %v2772 = vsel %vm1278, %v2770, %v2771
      %s2773 = scalar_lea.vmem %s1, 16
      %v2774 = vld [vmem:[%s2773] sm:$0x3]
      %v2775 = vunpack.c.l.b16 %v2769
      %v2776 = vunpack.c.l.b16 %v2772
      %v2777 = vpack.c.b16 %v2776, %v2775
      %v2779 = vsel %vm754, %v2777, 0
      %v2782 = vsel %vm803, %v2774, 0
      %2784 = vmatprep.subr.bf16.mxu0 0
      %2785 = vmatpush1.bf16.msra.mxu0 %v2782
      %2786 = vmatprep.subr.bf16.mxu0 0
      %2787 = vmatpush1.bf16.msra.mxu0 0
      %2788 = vmatprep.subr.bf16.mxu0 0
      %2789 = vmatpush1.bf16.msra.mxu0 0
      %2790 = vmatprep.subr.bf16.mxu0 0
      %2791 = vmatpush1.bf16.msra.mxu0 0
      %2792 = vmatprep.subr.bf16.mxu0 0
      %2793 = vmatpush1.bf16.msra.mxu0 0
      %2794 = vmatprep.subr.bf16.mxu0 0
      %2795 = vmatpush1.bf16.msra.mxu0 0
      %2796 = vmatprep.subr.bf16.mxu0 0
      %2797 = vmatpush1.bf16.msra.mxu0 0
      %2798 = vmatprep.subr.bf16.mxu0 0
      %2799 = vmatpush1.bf16.msra.mxu0 0
      %2800 = vmatprep.subr.bf16.mxu0 0
      %2801 = vmatpush1.bf16.msra.mxu0 0
      %2802 = vmatprep.subr.bf16.mxu0 0
      %2803 = vmatpush1.bf16.msra.mxu0 0
      %2804 = vmatprep.subr.bf16.mxu0 0
      %2805 = vmatpush1.bf16.msra.mxu0 0
      %2806 = vmatprep.subr.bf16.mxu0 0
      %2807 = vmatpush1.bf16.msra.mxu0 0
      %2808 = vmatprep.subr.bf16.mxu0 0
      %2809 = vmatpush1.bf16.msra.mxu0 0
      %2810 = vmatprep.subr.bf16.mxu0 0
      %2811 = vmatpush1.bf16.msra.mxu0 0
      %2812 = vmatprep.subr.bf16.mxu0 0
      %2813 = vmatpush1.bf16.msra.mxu0 0
      %2814 = vmatprep.subr.bf16.mxu0 0
      %2815 = vmatpush1.bf16.msra.mxu0 0
      %2816 = vmatprep.mubr.bf16.mxu0 0
      %2817 = vmatmul.mubr.bf16.gmra.mrb[0].mxu0 %v1448
      %v2818 = vpop.f32.mrb[0].mxu0
      %v2819 = vadd.f32 0.0, %v2818
      %v2820 = vpop.f32.mrb[0].mxu0
      %v2821 = vpop.f32.mrb[0].mxu0
      %v2822 = vadd.f32 0.0, %v2821
      %v2823 = vpop.f32.mrb[0].mxu0
      %2824 = vmatprep.mubr.bf16.mxu0 0
      %2825 = vmatmul.mubr.bf16.gmra.mrb[0].mxu0 %v1451
      %v2826 = vpop.f32.mrb[0].mxu0
      %v2827 = vadd.f32 0.0, %v2826
      %v2828 = vpop.f32.mrb[0].mxu0
      %v2829 = vpop.f32.mrb[0].mxu0
      %v2830 = vadd.f32 0.0, %v2829
      %v2831 = vpop.f32.mrb[0].mxu0
      %2832 = vmatprep.mubr.bf16.mxu0 0
      %2833 = vmatmul.mubr.bf16.gmra.mrb[0].mxu0 %v1454
      %v2834 = vpop.f32.mrb[0].mxu0
      %v2835 = vadd.f32 0.0, %v2834
      %v2836 = vpop.f32.mrb[0].mxu0
      %v2837 = vpop.f32.mrb[0].mxu0
      %v2838 = vadd.f32 0.0, %v2837
      %v2839 = vpop.f32.mrb[0].mxu0
      %2840 = vmatprep.mubr.bf16.mxu0 0
      %2841 = vmatmul.mubr.bf16.gmra.mrb[0].mxu0 %v1457
      %v2842 = vpop.f32.mrb[0].mxu0
      %v2843 = vadd.f32 0.0, %v2842
      %v2844 = vpop.f32.mrb[0].mxu0
      %v2845 = vpop.f32.mrb[0].mxu0
      %v2846 = vadd.f32 0.0, %v2845
      %v2847 = vpop.f32.mrb[0].mxu0
      %2848 = vmatprep.mubr.bf16.mxu0 0
      %2849 = vmatmul.mubr.bf16.gmra.mrb[0].mxu0 %v1460
      %v2850 = vpop.f32.mrb[0].mxu0
      %v2851 = vadd.f32 0.0, %v2850
      %v2852 = vpop.f32.mrb[0].mxu0
      %v2853 = vpop.f32.mrb[0].mxu0
      %v2854 = vadd.f32 0.0, %v2853
      %v2855 = vpop.f32.mrb[0].mxu0
      %2856 = vmatprep.mubr.bf16.mxu0 0
      %2857 = vmatmul.mubr.bf16.gmra.mrb[0].mxu0 %v1463
      %v2858 = vpop.f32.mrb[0].mxu0
      %v2859 = vadd.f32 0.0, %v2858
      %v2860 = vpop.f32.mrb[0].mxu0
      %v2861 = vpop.f32.mrb[0].mxu0
      %v2862 = vadd.f32 0.0, %v2861
      %v2863 = vpop.f32.mrb[0].mxu0
      %2864 = vmatprep.mubr.bf16.mxu0 0
      %2865 = vmatmul.mubr.bf16.gmra.mrb[0].mxu0 %v1466
      %v2866 = vpop.f32.mrb[0].mxu0
      %v2867 = vadd.f32 0.0, %v2866
      %v2868 = vpop.f32.mrb[0].mxu0
      %v2869 = vpop.f32.mrb[0].mxu0
      %v2870 = vadd.f32 0.0, %v2869
      %v2871 = vpop.f32.mrb[0].mxu0
      %2872 = vmatprep.mubr.bf16.mxu0 0
      %2873 = vmatmul.mubr.bf16.gmra.mrb[0].mxu0 %v1469
      %v2874 = vpop.f32.mrb[0].mxu0
      %v2875 = vadd.f32 0.0, %v2874
      %v2876 = vpop.f32.mrb[0].mxu0
      %v2877 = vpop.f32.mrb[0].mxu0
      %v2878 = vadd.f32 0.0, %v2877
      %v2879 = vpop.f32.mrb[0].mxu0
      %2880 = vmatprep.mubr.bf16.mxu0 0
      %2881 = vmatmul.mubr.bf16.gmra.mrb[0].mxu0 %v1472
      %v2882 = vpop.f32.mrb[0].mxu0
      %v2883 = vadd.f32 0.0, %v2882
      %v2884 = vpop.f32.mrb[0].mxu0
      %v2885 = vpop.f32.mrb[0].mxu0
      %v2886 = vadd.f32 0.0, %v2885
      %v2887 = vpop.f32.mrb[0].mxu0
      %2888 = vmatprep.mubr.bf16.mxu0 0
      %2889 = vmatmul.mubr.bf16.gmra.mrb[0].mxu0 %v1475
      %v2890 = vpop.f32.mrb[0].mxu0
      %v2891 = vadd.f32 0.0, %v2890
      %v2892 = vpop.f32.mrb[0].mxu0
      %v2893 = vpop.f32.mrb[0].mxu0
      %v2894 = vadd.f32 0.0, %v2893
      %v2895 = vpop.f32.mrb[0].mxu0
      %2896 = vmatprep.mubr.bf16.mxu0 0
      %2897 = vmatmul.mubr.bf16.gmra.mrb[0].mxu0 %v1478
      %v2898 = vpop.f32.mrb[0].mxu0
      %v2899 = vadd.f32 0.0, %v2898
      %v2900 = vpop.f32.mrb[0].mxu0
      %v2901 = vpop.f32.mrb[0].mxu0
      %v2902 = vadd.f32 0.0, %v2901
      %v2903 = vpop.f32.mrb[0].mxu0
      %2904 = vmatprep.mubr.bf16.mxu0 0
      %2905 = vmatmul.mubr.bf16.gmra.mrb[0].mxu0 %v1481
      %v2906 = vpop.f32.mrb[0].mxu0
      %v2907 = vadd.f32 0.0, %v2906
      %v2908 = vpop.f32.mrb[0].mxu0
      %v2909 = vpop.f32.mrb[0].mxu0
      %v2910 = vadd.f32 0.0, %v2909
      %v2911 = vpop.f32.mrb[0].mxu0
      %2912 = vmatprep.mubr.bf16.mxu0 0
      %2913 = vmatmul.mubr.bf16.gmra.mrb[0].mxu0 %v1484
      %v2914 = vpop.f32.mrb[0].mxu0
      %v2915 = vadd.f32 0.0, %v2914
      %v2916 = vpop.f32.mrb[0].mxu0
      %v2917 = vpop.f32.mrb[0].mxu0
      %v2918 = vadd.f32 0.0, %v2917
      %v2919 = vpop.f32.mrb[0].mxu0
      %2920 = vmatprep.mubr.bf16.mxu0 0
      %2921 = vmatmul.mubr.bf16.gmra.mrb[0].mxu0 %v1487
      %v2922 = vpop.f32.mrb[0].mxu0
      %v2923 = vadd.f32 0.0, %v2922
      %v2924 = vpop.f32.mrb[0].mxu0
      %v2925 = vpop.f32.mrb[0].mxu0
      %v2926 = vadd.f32 0.0, %v2925
      %v2927 = vpop.f32.mrb[0].mxu0
      %2928 = vmatprep.mubr.bf16.mxu0 0
      %2929 = vmatmul.mubr.bf16.gmra.mrb[0].mxu0 %v2133
      %v2930 = vpop.f32.mrb[0].mxu0
      %v2931 = vadd.f32 0.0, %v2930
      %v2932 = vpop.f32.mrb[0].mxu0
      %v2933 = vpop.f32.mrb[0].mxu0
      %v2934 = vadd.f32 0.0, %v2933
      %v2935 = vpop.f32.mrb[0].mxu0
      %2936 = vmatprep.mubr.bf16.mxu0 0
      %2937 = vmatmul.mubr.bf16.gmra.mrb[0].mxu0 %v2779
      %v2938 = vpop.f32.mrb[0].mxu0
      %v2939 = vadd.f32 0.0, %v2938
      %v2940 = vpop.f32.mrb[0].mxu0
      %v2941 = vpop.f32.mrb[0].mxu0
      %v2942 = vadd.f32 0.0, %v2941
      %v2943 = vpop.f32.mrb[0].mxu0
      %2944 = vdwg.mxu0
      %v2945 = vadd.f32 %v2733, %v2819
      %v2946 = vadd.f32 %v2734, %v2822
      %v2947 = vadd.f32 %v2735, %v2827
      %v2948 = vadd.f32 %v2736, %v2830
      %v2949 = vadd.f32 %v2737, %v2835
      %v2950 = vadd.f32 %v2738, %v2838
      %v2951 = vadd.f32 %v2739, %v2843
      %v2952 = vadd.f32 %v2740, %v2846
      %v2953 = vadd.f32 %v2741, %v2851
      %v2954 = vadd.f32 %v2742, %v2854
      %v2955 = vadd.f32 %v2743, %v2859
      %v2956 = vadd.f32 %v2744, %v2862
      %v2957 = vadd.f32 %v2745, %v2867
      %v2958 = vadd.f32 %v2746, %v2870
      %v2959 = vadd.f32 %v2747, %v2875
      %v2960 = vadd.f32 %v2748, %v2878
      %v2961 = vadd.f32 %v2749, %v2883
      %v2962 = vadd.f32 %v2750, %v2886
      %v2963 = vadd.f32 %v2751, %v2891
      %v2964 = vadd.f32 %v2752, %v2894
      %v2965 = vadd.f32 %v2753, %v2899
      %v2966 = vadd.f32 %v2754, %v2902
      %v2967 = vadd.f32 %v2755, %v2907
      %v2968 = vadd.f32 %v2756, %v2910
      %v2969 = vadd.f32 %v2757, %v2915
      %v2970 = vadd.f32 %v2758, %v2918
      %v2971 = vadd.f32 %v2759, %v2923
      %v2972 = vadd.f32 %v2760, %v2926
      %v2973 = vadd.f32 %v2761, %v2931
      %v2974 = vadd.f32 %v2762, %v2934
      %v2975 = vadd.f32 %v2763, %v2939
      %v2976 = vadd.f32 %v2764, %v2942
      %v2977 = vadd.f32 %v2945, %v2946
      %v2978 = vadd.f32 %v2977, %v2947
      %v2979 = vadd.f32 %v2978, %v2948
      %v2980 = vadd.f32 %v2979, %v2949
      %v2981 = vadd.f32 %v2980, %v2950
      %v2982 = vadd.f32 %v2981, %v2951
      %v2983 = vadd.f32 %v2982, %v2952
      %v2984 = vadd.f32 %v2983, %v2953
      %v2985 = vadd.f32 %v2984, %v2954
      %v2986 = vadd.f32 %v2985, %v2955
      %v2987 = vadd.f32 %v2986, %v2956
      %v2988 = vadd.f32 %v2987, %v2957
      %v2989 = vadd.f32 %v2988, %v2958
      %v2990 = vadd.f32 %v2989, %v2959
      %v2991 = vadd.f32 %v2990, %v2960
      %v2992 = vadd.f32 %v2991, %v2961
      %v2993 = vadd.f32 %v2992, %v2962
      %v2994 = vadd.f32 %v2993, %v2963
      %v2995 = vadd.f32 %v2994, %v2964
      %v2996 = vadd.f32 %v2995, %v2965
      %v2997 = vadd.f32 %v2996, %v2966
      %v2998 = vadd.f32 %v2997, %v2967
      %v2999 = vadd.f32 %v2998, %v2968
      %v3000 = vadd.f32 %v2999, %v2969
      %v3001 = vadd.f32 %v3000, %v2970
      %v3002 = vadd.f32 %v3001, %v2971
      %v3003 = vadd.f32 %v3002, %v2972
      %v3004 = vadd.f32 %v3003, %v2973
      %v3005 = vadd.f32 %v3004, %v2974
      %v3006 = vadd.f32 %v3005, %v2975
      %v3007 = vadd.f32 %v3006, %v2976
      %3008 = vst [vmem:[%s249] sm:$0xff] %v3007
      %v3009 = vmul.f32 %v2945, %v2945
      %v3010 = vmul.f32 %v2946, %v2946
      %v3011 = vmul.f32 %v2947, %v2947
      %v3012 = vmul.f32 %v2948, %v2948
      %v3013 = vmul.f32 %v2949, %v2949
      %v3014 = vmul.f32 %v2950, %v2950
      %v3015 = vmul.f32 %v2951, %v2951
      %v3016 = vmul.f32 %v2952, %v2952
      %v3017 = vmul.f32 %v2953, %v2953
      %v3018 = vmul.f32 %v2954, %v2954
      %v3019 = vmul.f32 %v2955, %v2955
      %v3020 = vmul.f32 %v2956, %v2956
      %v3021 = vmul.f32 %v2957, %v2957
      %v3022 = vmul.f32 %v2958, %v2958
      %v3023 = vmul.f32 %v2959, %v2959
      %v3024 = vmul.f32 %v2960, %v2960
      %v3025 = vmul.f32 %v2961, %v2961
      %v3026 = vmul.f32 %v2962, %v2962
      %v3027 = vmul.f32 %v2963, %v2963
      %v3028 = vmul.f32 %v2964, %v2964
      %v3029 = vmul.f32 %v2965, %v2965
      %v3030 = vmul.f32 %v2966, %v2966
      %v3031 = vmul.f32 %v2967, %v2967
      %v3032 = vmul.f32 %v2968, %v2968
      %v3033 = vmul.f32 %v2969, %v2969
      %v3034 = vmul.f32 %v2970, %v2970
      %v3035 = vmul.f32 %v2971, %v2971
      %v3036 = vmul.f32 %v2972, %v2972
      %v3037 = vmul.f32 %v2973, %v2973
      %v3038 = vmul.f32 %v2974, %v2974
      %v3039 = vmul.f32 %v2975, %v2975
      %v3040 = vmul.f32 %v2976, %v2976
      %v3041 = vadd.f32 %v3009, %v3010
      %v3042 = vadd.f32 %v3041, %v3011
      %v3043 = vadd.f32 %v3042, %v3012
      %v3044 = vadd.f32 %v3043, %v3013
      %v3045 = vadd.f32 %v3044, %v3014
      %v3046 = vadd.f32 %v3045, %v3015
      %v3047 = vadd.f32 %v3046, %v3016
      %v3048 = vadd.f32 %v3047, %v3017
      %v3049 = vadd.f32 %v3048, %v3018
      %v3050 = vadd.f32 %v3049, %v3019
      %v3051 = vadd.f32 %v3050, %v3020
      %v3052 = vadd.f32 %v3051, %v3021
      %v3053 = vadd.f32 %v3052, %v3022
      %v3054 = vadd.f32 %v3053, %v3023
      %v3055 = vadd.f32 %v3054, %v3024
      %v3056 = vadd.f32 %v3055, %v3025
      %v3057 = vadd.f32 %v3056, %v3026
      %v3058 = vadd.f32 %v3057, %v3027
      %v3059 = vadd.f32 %v3058, %v3028
      %v3060 = vadd.f32 %v3059, %v3029
      %v3061 = vadd.f32 %v3060, %v3030
      %v3062 = vadd.f32 %v3061, %v3031
      %v3063 = vadd.f32 %v3062, %v3032
      %v3064 = vadd.f32 %v3063, %v3033
      %v3065 = vadd.f32 %v3064, %v3034
      %v3066 = vadd.f32 %v3065, %v3035
      %v3067 = vadd.f32 %v3066, %v3036
      %v3068 = vadd.f32 %v3067, %v3037
      %v3069 = vadd.f32 %v3068, %v3038
      %v3070 = vadd.f32 %v3069, %v3039
      %v3071 = vadd.f32 %v3070, %v3040
      %3072 = vst [vmem:[%s256] sm:$0xff] %v3071
      %3073 = vxpose.xlu0.b32.start [1/16] %v2945, 128
      %3074 = vxpose.xlu0.b32.cont [2/16] %v2946, 128
      %3075 = vxpose.xlu0.b32.cont [3/16] %v2947, 128
      %3076 = vxpose.xlu0.b32.cont [4/16] %v2948, 128
      %3077 = vxpose.xlu0.b32.cont [5/16] %v2949, 128
      %3078 = vxpose.xlu0.b32.cont [6/16] %v2950, 128
      %3079 = vxpose.xlu0.b32.cont [7/16] %v2951, 128
      %3080 = vxpose.xlu0.b32.cont [8/16] %v2952, 128
      %3081 = vxpose.xlu0.b32.cont [9/16] %v2953, 128
      %3082 = vxpose.xlu0.b32.cont [10/16] %v2954, 128
      %3083 = vxpose.xlu0.b32.cont [11/16] %v2955, 128
      %3084 = vxpose.xlu0.b32.cont [12/16] %v2956, 128
      %3085 = vxpose.xlu0.b32.cont [13/16] %v2957, 128
      %3086 = vxpose.xlu0.b32.cont [14/16] %v2958, 128
      %3087 = vxpose.xlu0.b32.cont [15/16] %v2959, 128
      %3088 = vxpose.xlu0.b32.end [16/16] %v2960, 128
      %v3089 = vpop.trf.xlu0
      %v3090 = vpop.trf.xlu0
      %v3091 = vpop.trf.xlu0
      %v3092 = vpop.trf.xlu0
      %v3093 = vpop.trf.xlu0
      %v3094 = vpop.trf.xlu0
      %v3095 = vpop.trf.xlu0
      %v3096 = vpop.trf.xlu0
      %v3097 = vpop.trf.xlu0
      %v3098 = vpop.trf.xlu0
      %v3099 = vpop.trf.xlu0
      %v3100 = vpop.trf.xlu0
      %v3101 = vpop.trf.xlu0
      %v3102 = vpop.trf.xlu0
      %v3103 = vpop.trf.xlu0
      %v3104 = vpop.trf.xlu0
      %3105 = vxpose.xlu0.b32.start [1/16] %v2961, 128
      %3106 = vxpose.xlu0.b32.cont [2/16] %v2962, 128
      %3107 = vxpose.xlu0.b32.cont [3/16] %v2963, 128
      %3108 = vxpose.xlu0.b32.cont [4/16] %v2964, 128
      %3109 = vxpose.xlu0.b32.cont [5/16] %v2965, 128
      %3110 = vxpose.xlu0.b32.cont [6/16] %v2966, 128
      %3111 = vxpose.xlu0.b32.cont [7/16] %v2967, 128
      %3112 = vxpose.xlu0.b32.cont [8/16] %v2968, 128
      %3113 = vxpose.xlu0.b32.cont [9/16] %v2969, 128
      %3114 = vxpose.xlu0.b32.cont [10/16] %v2970, 128
      %3115 = vxpose.xlu0.b32.cont [11/16] %v2971, 128
      %3116 = vxpose.xlu0.b32.cont [12/16] %v2972, 128
      %3117 = vxpose.xlu0.b32.cont [13/16] %v2973, 128
      %3118 = vxpose.xlu0.b32.cont [14/16] %v2974, 128
      %3119 = vxpose.xlu0.b32.cont [15/16] %v2975, 128
      %3120 = vxpose.xlu0.b32.end [16/16] %v2976, 128
      %v3121 = vpop.trf.xlu0
      %v3122 = vpop.trf.xlu0
      %v3123 = vpop.trf.xlu0
      %v3124 = vpop.trf.xlu0
      %v3125 = vpop.trf.xlu0
      %v3126 = vpop.trf.xlu0
      %v3127 = vpop.trf.xlu0
      %v3128 = vpop.trf.xlu0
      %v3129 = vpop.trf.xlu0
      %v3130 = vpop.trf.xlu0
      %v3131 = vpop.trf.xlu0
      %v3132 = vpop.trf.xlu0
      %v3133 = vpop.trf.xlu0
      %v3134 = vpop.trf.xlu0
      %v3135 = vpop.trf.xlu0
      %v3136 = vpop.trf.xlu0
      %v3137 = vpack.c.bf16 %v3090, %v3089
      %v3138 = vpack.c.bf16 %v3122, %v3121
      %v3139 = vpack.c.bf16 %v3092, %v3091
      %v3140 = vpack.c.bf16 %v3124, %v3123
      %v3141 = vpack.c.bf16 %v3094, %v3093
      %v3142 = vpack.c.bf16 %v3126, %v3125
      %v3143 = vpack.c.bf16 %v3096, %v3095
      %v3144 = vpack.c.bf16 %v3128, %v3127
      %v3145 = vpack.c.bf16 %v3098, %v3097
      %v3146 = vpack.c.bf16 %v3130, %v3129
      %v3147 = vpack.c.bf16 %v3100, %v3099
      %v3148 = vpack.c.bf16 %v3132, %v3131
      %v3149 = vpack.c.bf16 %v3102, %v3101
      %v3150 = vpack.c.bf16 %v3134, %v3133
      %v3151 = vpack.c.bf16 %v3104, %v3103
      %v3152 = vpack.c.bf16 %v3136, %v3135
      %v3169 = vunpack.c.l.b16 %v3137
      %v3170 = vunpack.c.l.b16 %v3138
      %v3171 = vunpack.c.h.b16 %v3137
      %v3172 = vunpack.c.h.b16 %v3138
      %v3173 = vunpack.c.l.b16 %v3139
      %v3174 = vunpack.c.l.b16 %v3140
      %v3175 = vunpack.c.h.b16 %v3139
      %v3176 = vunpack.c.h.b16 %v3140
      %v3177 = vunpack.c.l.b16 %v3141
      %v3178 = vunpack.c.l.b16 %v3142
      %v3179 = vunpack.c.h.b16 %v3141
      %v3180 = vunpack.c.h.b16 %v3142
      %v3181 = vunpack.c.l.b16 %v3143
      %v3182 = vunpack.c.l.b16 %v3144
      %v3183 = vunpack.c.h.b16 %v3143
      %v3184 = vunpack.c.h.b16 %v3144
      %v3185 = vunpack.c.l.b16 %v3145
      %v3186 = vunpack.c.l.b16 %v3146
      %v3187 = vunpack.c.h.b16 %v3145
      %v3188 = vunpack.c.h.b16 %v3146
      %v3189 = vunpack.c.l.b16 %v3147
      %v3190 = vunpack.c.l.b16 %v3148
      %v3191 = vunpack.c.h.b16 %v3147
      %v3192 = vunpack.c.h.b16 %v3148
      %v3193 = vunpack.c.l.b16 %v3149
      %v3194 = vunpack.c.l.b16 %v3150
      %v3195 = vunpack.c.h.b16 %v3149
      %v3196 = vunpack.c.h.b16 %v3150
      %v3197 = vunpack.c.l.b16 %v3151
      %v3198 = vunpack.c.l.b16 %v3152
      %v3199 = vunpack.c.h.b16 %v3151
      %v3200 = vunpack.c.h.b16 %v3152
      %v3201 = vpack.c.b16 %v3170, %v3169
      %v3202 = vpack.c.b16 %v3172, %v3171
      %v3203 = vpack.c.b16 %v3174, %v3173
      %v3204 = vpack.c.b16 %v3176, %v3175
      %v3205 = vpack.c.b16 %v3178, %v3177
      %v3206 = vpack.c.b16 %v3180, %v3179
      %v3207 = vpack.c.b16 %v3182, %v3181
      %v3208 = vpack.c.b16 %v3184, %v3183
      %v3209 = vpack.c.b16 %v3186, %v3185
      %v3210 = vpack.c.b16 %v3188, %v3187
      %v3211 = vpack.c.b16 %v3190, %v3189
      %v3212 = vpack.c.b16 %v3192, %v3191
      %v3213 = vpack.c.b16 %v3194, %v3193
      %v3214 = vpack.c.b16 %v3196, %v3195
      %v3215 = vpack.c.b16 %v3198, %v3197
      %v3216 = vpack.c.b16 %v3200, %v3199
      %3233 = vst [vmem:[%s242] sm:$0xff] %v3201
      %3234 = vst [vmem:[%s242 + $0x8] sm:$0xff] %v3202
      %3235 = vst [vmem:[%s242 + $0x10] sm:$0xff] %v3203
      %3236 = vst [vmem:[%s242 + $0x18] sm:$0xff] %v3204
      %3237 = vst [vmem:[%s242 + $0x20] sm:$0xff] %v3205
      %3238 = vst [vmem:[%s242 + $0x28] sm:$0xff] %v3206
      %3239 = vst [vmem:[%s242 + $0x30] sm:$0xff] %v3207
      %3240 = vst [vmem:[%s242 + $0x38] sm:$0xff] %v3208
      %3241 = vst [vmem:[%s242 + $0x40] sm:$0xff] %v3209
      %3242 = vst [vmem:[%s242 + $0x48] sm:$0xff] %v3210
      %3243 = vst [vmem:[%s242 + $0x50] sm:$0xff] %v3211
      %3244 = vst [vmem:[%s242 + $0x58] sm:$0xff] %v3212
      %3245 = vst [vmem:[%s242 + $0x60] sm:$0xff] %v3213
      %3246 = vst [vmem:[%s242 + $0x68] sm:$0xff] %v3214
      %3247 = vst [vmem:[%s242 + $0x70] sm:$0xff] %v3215
      %3248 = vst [vmem:[%s242 + $0x78] sm:$0xff] %v3216
      %p3249 = scmp.lt.s32.totalorder %s20, 1
      %s3250 = scalar_select %p3249, %s20, 1
      %p3251 = scmp.lt.s32.totalorder %s21, 0
      %s3252 = scalar_select %p3251, %s21, 0
      %s3253 = smul.addr %s3252, 32
      %s3254 = smul.addr %s3250, 32
      %s3255 = sadd.s32 %s3253, %s3254
      %s3256 = smul.addr %s3255, 4
      %s3257 = scalar_lea.vmem %s2, %s3256
      %p3258 = scmp.lt.s32.totalorder %s20, 1
      %s3259 = scalar_select %p3258, %s20, 1
      %p3260 = scmp.lt.s32.totalorder %s21, 0
      %s3261 = scalar_select %p3260, %s21, 0
      %s3262 = sadd.s32 %s3261, %s3259
      %s3263 = smul.addr %s3262, 8
      %s3264 = scalar_lea.vmem %s3, %s3263
      %p3265 = scmp.lt.s32.totalorder %s20, 1
      %s3266 = scalar_select %p3265, %s20, 1
      %p3267 = scmp.lt.s32.totalorder %s21, 0
      %s3268 = scalar_select %p3267, %s21, 0
      %s3269 = sadd.s32 %s3268, %s3266
      %s3270 = smul.addr %s3269, 8
      %s3271 = scalar_lea.vmem %s4, %s3270
      // Predicated region
      $region29: #{cnn_block_forward.2} parent=27 // pred_check
        %p3272 = pneg %p95
      $region30: #{cnn_block_forward.2} parent=27 // pred_check_branch
        %3274 = sbr.rel (%p3272) target = $region32
      $region31: #{cnn_block_forward.2} parent=27 // pred_region
        _
      $region32: #{cnn_block_forward.2} parent=27 // pred_fallthru
        _
      // Predicated region
      $region33: #{cnn_block_forward.2} parent=27 // pred_check
        %p3275 = pneg %p123
      $region34: #{cnn_block_forward.2} parent=27 // pred_check_branch
        %3277 = sbr.rel (%p3275) target = $region36
      $region35: #{cnn_block_forward.2} parent=27 // pred_region
        _
      $region36: #{cnn_block_forward.2} parent=27 // pred_fallthru
        _
      // Predicated region
      $region37: #{cnn_block_forward.2} parent=27 // pred_check
        %p3278 = pneg %p151
      $region38: #{cnn_block_forward.2} parent=27 // pred_check_branch
        %3280 = sbr.rel (%p3278) target = $region40
      $region39: #{cnn_block_forward.2} parent=27 // pred_region
        _
      $region40: #{cnn_block_forward.2} parent=27 // pred_fallthru
        _
    $region28: #{cnn_block_forward.2} parent=5 // pred_fallthru
      _
    %p3281 = scmp.le.s32.totalorder 2, %s11
    // Predicated region
    $region41: #{cnn_block_forward.2} parent=5 // pred_check
      %p3282 = pneg %p3281
    $region42: #{cnn_block_forward.2} parent=5 // pred_check_branch
      %3284 = sbr.rel (%p3282) target = $region44
    $region43: #{cnn_block_forward.2} parent=5 // pred_region
      %s3285 = ssub.s32 %s11, 2
      // Predicated region
      $region45: #{cnn_block_forward.2} parent=43 // pred_check
        %p3286 = pneg %p101
      $region46: #{cnn_block_forward.2} parent=43 // pred_check_branch
        %3288 = sbr.rel (%p3286) target = $region48
      $region47: #{cnn_block_forward.2} parent=43 // pred_region
        %p3289 = scmp.lt.s32.totalorder %s22, 1
        %s3290 = scalar_select %p3289, %s22, 1
        %p3291 = scmp.lt.s32.totalorder %s23, 0
        %s3292 = scalar_select %p3291, %s23, 0
        %s3293 = smul.addr %s3292, 32
        %s3294 = smul.addr %s3290, 32
        %s3295 = sadd.s32 %s3293, %s3294
        %s3296 = smul.addr %s3295, 4
        %s3297 = scalar_lea.vmem %s2, %s3296
      $region48: #{cnn_block_forward.2} parent=43 // pred_fallthru
        _
      // Predicated region
      $region49: #{cnn_block_forward.2} parent=43 // pred_check
        %p3298 = pneg %p129
      $region50: #{cnn_block_forward.2} parent=43 // pred_check_branch
        %3300 = sbr.rel (%p3298) target = $region52
      $region51: #{cnn_block_forward.2} parent=43 // pred_region
        %p3301 = scmp.lt.s32.totalorder %s22, 1
        %s3302 = scalar_select %p3301, %s22, 1
        %p3303 = scmp.lt.s32.totalorder %s23, 0
        %s3304 = scalar_select %p3303, %s23, 0
        %s3305 = sadd.s32 %s3304, %s3302
        %s3306 = smul.addr %s3305, 8
        %s3307 = scalar_lea.vmem %s3, %s3306
      $region52: #{cnn_block_forward.2} parent=43 // pred_fallthru
        _
      // Predicated region
      $region53: #{cnn_block_forward.2} parent=43 // pred_check
        %p3308 = pneg %p157
      $region54: #{cnn_block_forward.2} parent=43 // pred_check_branch
        %3310 = sbr.rel (%p3308) target = $region56
      $region55: #{cnn_block_forward.2} parent=43 // pred_region
        %p3311 = scmp.lt.s32.totalorder %s22, 1
        %s3312 = scalar_select %p3311, %s22, 1
        %p3313 = scmp.lt.s32.totalorder %s23, 0
        %s3314 = scalar_select %p3313, %s23, 0
        %s3315 = sadd.s32 %s3314, %s3312
        %s3316 = smul.addr %s3315, 8
        %s3317 = scalar_lea.vmem %s4, %s3316
      $region56: #{cnn_block_forward.2} parent=43 // pred_fallthru
        _
    $region44: #{cnn_block_forward.2} parent=5 // pred_fallthru
      _
  $region6: #{cnn_block_forward.2} parent=0 // loop_footer
    %s15 = sadd.s32 1, %s11
  $region7: #{cnn_block_forward.2} parent=0 // loop_footer_branch
    %10 = sbr.rel target = $region3
  $region8: #{cnn_block_forward.2} parent=0 // loop_exit
    _

</llo_original>
